<compile_context>
chip_gen: v6e
topology: v6e:2x2x1
jax: 0.10.0
libtpu: 0.0.40
codegen_flags: <defaults>
</compile_context>

<pallas_src>
import jax
import jax.numpy as jnp
from jax.experimental import pallas as pl
from jax.experimental.pallas import tpu as pltpu

B, CIN, H, W = 8, 3, 16, 16
K = 3
HW = H * W
CKK = CIN * K * K            # 27
CKK_PAD = 32                 # 27 weight rows + 1 bias row + 4 zero rows
FEAT = 128                   # backbone.fc.in_features of the synthetic backbone
HIDDEN = 1024                # MLPHead default hidden_dim
OUT = 256                    # MLPHead default out_dim
SMALLS = 3 * HIDDEN + OUT    # packed [bias1 | gamma | beta | bias2] per head
EPS = 1e-5                   # nn.BatchNorm1d default eps


# ----------------------------- Pallas kernel -------------------------------

def _byol_kernel(patches_ref, wc_ref, w1_ref, w2_ref, sm_ref, p_ref, z_ref, hin_ref):
    f32, bf16 = jnp.float32, jnp.bfloat16
    step = pl.program_id(0)          # 0 = backbone + projector, 1 = predictor

    # --- step 0 only: synthetic backbone conv3x3 (bias folded into the matmul) ---
    @pl.when(step == 0)
    def _():
        conv = jnp.dot(patches_ref[...], wc_ref[...], preferred_element_type=f32)
        conv = jnp.maximum(conv, 0.0)                                  # (B*HW, FEAT)
        feats = jnp.sum(conv.reshape(B, HW, FEAT), axis=1) * (1.0 / HW)  # (B, FEAT)
        # zero-pad features 128 -> 256 so both heads share one first-Linear shape
        hin_ref[...] = jnp.concatenate(
            [feats, jnp.zeros((B, OUT - FEAT), f32)], axis=-1)

    # --- shared MLP head: Linear -> BatchNorm1d (batch stats) -> ReLU -> Linear ---
    sm = sm_ref[0]                                                     # (1, SMALLS) f32
    b1 = sm[:, :HIDDEN]
    gamma = sm[:, HIDDEN:2 * HIDDEN]
    beta = sm[:, 2 * HIDDEN:3 * HIDDEN]
    b2 = sm[:, 3 * HIDDEN:3 * HIDDEN + OUT]

    h = jnp.dot(hin_ref[...].astype(bf16), w1_ref[0],
                preferred_element_type=f32) + b1                       # (B, HIDDEN) f32
    mean = jnp.mean(h, axis=0, keepdims=True)
    var = jnp.mean(jnp.square(h - mean), axis=0, keepdims=True)
    h = (h - mean) * jax.lax.rsqrt(var + EPS) * gamma + beta
    h = jnp.maximum(h, 0.0)
    out = jnp.dot(h.astype(bf16), w2_ref[0],
                  preferred_element_type=f32) + b2                     # (B, OUT) f32

    @pl.when(step == 0)
    def _():
        z_ref[...] = out
        hin_ref[...] = out          # carry z into the predictor at step 1

    @pl.when(step == 1)
    def _():
        p_ref[...] = out


# ------------------------------- JAX glue ----------------------------------

def _im2col(x):
    # 3x3 patches with padding 1, lane-dense (B*HW, CKK_PAD) slab in bf16.
    # Column CKK (=27) is all-ones so the conv bias (row 27 of the padded conv weight)
    # is folded into the matmul; columns 28..31 are zero padding.
    # TODO(synk): on v7x it would be worth fusing this im2col into the kernel (pass the
    # padded (B, CIN, H+2, W+2) input and build the 9 shifted views in-kernel).
    xp = jnp.pad(x, ((0, 0), (0, 0), (1, 1), (1, 1)))
    cols = []
    for dh in range(K):
        for dw in range(K):
            cols.append(xp[:, :, dh:dh + H, dw:dw + W])
    cols = jnp.stack(cols, axis=2)                 # (B, CIN, K*K, H, W)
    cols = cols.transpose(0, 3, 4, 1, 2)           # (B, H, W, CIN, K*K)
    cols = cols.reshape(B * HW, CKK)
    ones = jnp.ones((B * HW, 1), cols.dtype)
    zeros = jnp.zeros((B * HW, CKK_PAD - CKK - 1), cols.dtype)
    return jnp.concatenate([cols, ones, zeros], axis=1).astype(jnp.bfloat16)


@jax.jit
def byol_forward(x, params):
    patches = _im2col(x)                           # (B*HW, CKK_PAD) bf16

    p, z = pl.pallas_call(
        _byol_kernel,
        out_shape=(jax.ShapeDtypeStruct((B, OUT), jnp.float32),
                   jax.ShapeDtypeStruct((B, OUT), jnp.float32)),
        grid=(2,),
        in_specs=[
            pl.BlockSpec((B * HW, CKK_PAD), lambda i: (0, 0)),    # patches (used at step 0)
            pl.BlockSpec((CKK_PAD, FEAT), lambda i: (0, 0)),      # conv weight (+ bias row)
            pl.BlockSpec((1, OUT, HIDDEN), lambda i: (i, 0, 0)),  # per-head w1 (prefetched)
            pl.BlockSpec((1, HIDDEN, OUT), lambda i: (i, 0, 0)),  # per-head w2 (prefetched)
            pl.BlockSpec((1, 1, SMALLS), lambda i: (i, 0, 0)),    # per-head packed smalls
        ],
        out_specs=(pl.BlockSpec((B, OUT), lambda i: (0, 0)),
                   pl.BlockSpec((B, OUT), lambda i: (0, 0))),
        scratch_shapes=[pltpu.VMEM((B, OUT), jnp.float32)],       # head-input carry
        compiler_params=pltpu.CompilerParams(
            dimension_semantics=("arbitrary",),
            vmem_limit_bytes=16 * 1024 * 1024),
    )(patches, params["wc"], params["w1"], params["w2"], params["smalls"])

    # z.detach() -> stop_gradient (forward values identical).
    return p, jax.lax.stop_gradient(z)


def byol_reference(x, params):
    # Pure-JAX reference with identical rounding points (bf16 matmul inputs, f32 math).
    f32, bf16 = jnp.float32, jnp.bfloat16
    patches = _im2col(x).astype(f32)
    conv = jnp.maximum(patches @ params["wc"].astype(f32), 0.0)
    feats = conv.reshape(B, HW, FEAT).mean(axis=1)
    hin = jnp.pad(feats, ((0, 0), (0, OUT - FEAT)))

    def head(hin, w1, w2, sm):
        b1 = sm[:, :HIDDEN]
        g = sm[:, HIDDEN:2 * HIDDEN]
        bt = sm[:, 2 * HIDDEN:3 * HIDDEN]
        b2 = sm[:, 3 * HIDDEN:3 * HIDDEN + OUT]
        h = hin.astype(bf16).astype(f32) @ w1.astype(f32) + b1
        m = h.mean(0, keepdims=True)
        v = ((h - m) ** 2).mean(0, keepdims=True)
        h = jnp.maximum((h - m) * jax.lax.rsqrt(v + EPS) * g + bt, 0.0)
        return h.astype(bf16).astype(f32) @ w2.astype(f32) + b2

    z = head(hin, params["w1"][0], params["w2"][0], params["smalls"][0])
    p = head(z, params["w1"][1], params["w2"][1], params["smalls"][1])
    return p, z


def _linear_init(key, fan_in, fan_out):
    kw, kb = jax.random.split(key)
    bound = 1.0 / float(fan_in) ** 0.5
    w = jax.random.uniform(kw, (fan_in, fan_out), jnp.float32, -bound, bound)
    b = jax.random.uniform(kb, (1, fan_out), jnp.float32, -bound, bound)
    return w, b


if __name__ == "__main__":
    key = jax.random.PRNGKey(0)
    kx, kc, kp1, kp2, kq1, kq2 = jax.random.split(key, 6)

    x = jax.random.normal(kx, (B, CIN, H, W), jnp.float32)

    # Synthetic backbone conv weights; bias folded in as row CKK of the padded weight.
    wc, bc = _linear_init(kc, CKK, FEAT)
    wc_full = jnp.zeros((CKK_PAD, FEAT), jnp.float32)
    wc_full = wc_full.at[:CKK].set(wc).at[CKK].set(bc[0])

    pw1, pb1 = _linear_init(kp1, FEAT, HIDDEN)
    pw2, pb2 = _linear_init(kp2, HIDDEN, OUT)
    qw1, qb1 = _linear_init(kq1, OUT, HIDDEN)
    qw2, qb2 = _linear_init(kq2, HIDDEN, OUT)

    # Stack both heads' weights along a leading head axis (projector's w1 input dim is
    # zero-padded 128 -> 256 so both heads share one shape for the grid index_map).
    w1_stack = jnp.stack([jnp.pad(pw1, ((0, OUT - FEAT), (0, 0))), qw1], axis=0)
    w2_stack = jnp.stack([pw2, qw2], axis=0)

    ones_h = jnp.ones((1, HIDDEN), jnp.float32)    # BN gamma init
    zeros_h = jnp.zeros((1, HIDDEN), jnp.float32)  # BN beta init
    smalls = jnp.stack([
        jnp.concatenate([pb1, ones_h, zeros_h, pb2], axis=1),
        jnp.concatenate([qb1, ones_h, zeros_h, qb2], axis=1),
    ], axis=0)                                     # (2, 1, SMALLS) f32

    bf16 = jnp.bfloat16
    params = dict(
        wc=wc_full.astype(bf16),       # big weights stored in bf16 (halves weight DMA)
        w1=w1_stack.astype(bf16),
        w2=w2_stack.astype(bf16),
        smalls=smalls,                 # biases / BN params stay f32
    )

    p_out, z_out = byol_forward(x, params)
    jax.block_until_ready((p_out, z_out))

    p_ref, z_ref = byol_reference(x, params)
    assert p_out.shape == (B, OUT) and z_out.shape == (B, OUT)
    assert jnp.allclose(p_out, p_ref, atol=1e-3, rtol=1e-3)
    assert jnp.allclose(z_out, z_ref, atol=1e-3, rtol=1e-3)

    print("KERNEL_OK")
</pallas_src>

<mosaic_0001>
module attributes {stable_mosaic.version = 11 : i64} {
  func.func @_byol_kernel(%arg0: i32, %arg1: memref<2048x32xbf16, #tpu.memory_space<vmem>>, %arg2: memref<32x128xbf16, #tpu.memory_space<vmem>>, %arg3: memref<1x256x1024xbf16, #tpu.memory_space<vmem>>, %arg4: memref<1x1024x256xbf16, #tpu.memory_space<vmem>>, %arg5: memref<1x1x3328xf32, #tpu.memory_space<vmem>>, %arg6: memref<8x256xf32, #tpu.memory_space<vmem>>, %arg7: memref<8x256xf32, #tpu.memory_space<vmem>>, %arg8: memref<8x256xf32, #tpu.memory_space<vmem>>) attributes {dimension_semantics = [#tpu.dimension_semantics<arbitrary>], iteration_bounds = array<i64: 2>, scalar_prefetch = 0 : i64, scratch_operands = 1 : i64, tpu.core_type = #tpu.core_type<tc>, window_params = [{pipeline_mode = #tpu.pipeline_mode<synchronous>, transform_indices = @transform_0, window_bounds = array<i64: 2048, 32>}, {pipeline_mode = #tpu.pipeline_mode<synchronous>, transform_indices = @transform_1, window_bounds = array<i64: 32, 128>}, {transform_indices = @transform_2, window_bounds = array<i64: 1, 256, 1024>}, {transform_indices = @transform_3, window_bounds = array<i64: 1, 1024, 256>}, {transform_indices = @transform_4, window_bounds = array<i64: 1, 1, 3328>}, {pipeline_mode = #tpu.pipeline_mode<synchronous>, transform_indices = @transform_5, window_bounds = array<i64: 8, 256>}, {pipeline_mode = #tpu.pipeline_mode<synchronous>, transform_indices = @transform_6, window_bounds = array<i64: 8, 256>}]} {
    %c0_i32 = arith.constant 0 : i32
    %0 = arith.cmpi eq, %arg0, %c0_i32 : i32
    %1 = arith.extui %0 : i1 to i32
    %c0_i32_0 = arith.constant 0 : i32
    %2 = arith.cmpi ne, %1, %c0_i32_0 : i32
    scf.if %2 {
      %c0_21 = arith.constant 0 : index
      %c0_22 = arith.constant 0 : index
      %52 = vector.load %arg1[%c0_21, %c0_22] : memref<2048x32xbf16, #tpu.memory_space<vmem>>, vector<2048x32xbf16>
      %c0_23 = arith.constant 0 : index
      %c0_24 = arith.constant 0 : index
      %53 = vector.load %arg2[%c0_23, %c0_24] : memref<32x128xbf16, #tpu.memory_space<vmem>>, vector<32x128xbf16>
      %cst_25 = arith.constant dense<0.000000e+00> : vector<2048x128xf32>
      %54 = tpu.matmul %52, %53, %cst_25 {dimension_numbers = #tpu.dot_dimension_numbers<[1], [0], [0], [1], [0, 0, 1, 1], [], []>} : vector<2048x32xbf16>, vector<32x128xbf16>, vector<2048x128xf32> -> vector<2048x128xf32>
      %cst_26 = arith.constant 0.000000e+00 : f32
      %55 = vector.broadcast %cst_26 : f32 to vector<2048x128xf32>
      %56 = arith.maximumf %54, %55 : vector<2048x128xf32>
      %57 = vector.shape_cast %56 : vector<2048x128xf32> to vector<8x256x128xf32>
      %cst_27 = arith.constant dense<0.000000e+00> : vector<8x128xf32>
      %58 = vector.multi_reduction <add>, %57, %cst_27 [1] : vector<8x256x128xf32> to vector<8x128xf32>
      %cst_28 = arith.constant 3.906250e-03 : f32
      %59 = vector.broadcast %cst_28 : f32 to vector<8x128xf32>
      %60 = arith.mulf %58, %59 : vector<8x128xf32>
      %cst_29 = arith.constant 0.000000e+00 : f32
      %61 = vector.broadcast %cst_29 : f32 to vector<8x128xf32>
      %62 = tpu.concatenate %60, %61 in 1 : vector<8x128xf32>, vector<8x128xf32> -> vector<8x256xf32>
      %c0_30 = arith.constant 0 : index
      %c0_31 = arith.constant 0 : index
      %63 = vector.load %arg8[%c0_30, %c0_31] : memref<8x256xf32, #tpu.memory_space<vmem>>, vector<8x256xf32>
      tpu.vector_store %arg8[%c0_30, %c0_31], %62 {strides = array<i32>} : memref<8x256xf32, #tpu.memory_space<vmem>>, vector<8x256xf32>,
    } else {
    }
    %c0 = arith.constant 0 : index
    %c0_1 = arith.constant 0 : index
    %c0_2 = arith.constant 0 : index
    %3 = vector.load %arg5[%c0, %c0_1, %c0_2] : memref<1x1x3328xf32, #tpu.memory_space<vmem>>, vector<1x1x3328xf32>
    %4 = vector.shape_cast %3 : vector<1x1x3328xf32> to vector<1x3328xf32>
    %5 = vector.extract_strided_slice %4 {offsets = [0, 0], sizes = [1, 1024], strides = [1, 1]} : vector<1x3328xf32> to vector<1x1024xf32>
    %6 = vector.extract_strided_slice %4 {offsets = [0, 1024], sizes = [1, 1024], strides = [1, 1]} : vector<1x3328xf32> to vector<1x1024xf32>
    %7 = vector.extract_strided_slice %4 {offsets = [0, 2048], sizes = [1, 1024], strides = [1, 1]} : vector<1x3328xf32> to vector<1x1024xf32>
    %8 = vector.extract_strided_slice %4 {offsets = [0, 3072], sizes = [1, 256], strides = [1, 1]} : vector<1x3328xf32> to vector<1x256xf32>
    %c0_3 = arith.constant 0 : index
    %c0_4 = arith.constant 0 : index
    %9 = vector.load %arg8[%c0_3, %c0_4] : memref<8x256xf32, #tpu.memory_space<vmem>>, vector<8x256xf32>
    %10 = arith.truncf %9 : vector<8x256xf32> to vector<8x256xbf16>
    %c0_5 = arith.constant 0 : index
    %c0_6 = arith.constant 0 : index
    %c0_7 = arith.constant 0 : index
    %11 = vector.load %arg3[%c0_5, %c0_6, %c0_7] : memref<1x256x1024xbf16, #tpu.memory_space<vmem>>, vector<1x256x1024xbf16>
    %12 = vector.shape_cast %11 : vector<1x256x1024xbf16> to vector<256x1024xbf16>
    %cst = arith.constant dense<0.000000e+00> : vector<8x1024xf32>
    %13 = tpu.matmul %10, %12, %cst {dimension_numbers = #tpu.dot_dimension_numbers<[1], [0], [0], [1], [0, 0, 1, 1], [], []>} : vector<8x256xbf16>, vector<256x1024xbf16>, vector<8x1024xf32> -> vector<8x1024xf32>
    %14 = vector.broadcast %5 : vector<1x1024xf32> to vector<8x1024xf32>
    %15 = arith.addf %13, %14 : vector<8x1024xf32>
    %cst_8 = arith.constant dense<0.000000e+00> : vector<1024xf32>
    %16 = vector.multi_reduction <add>, %15, %cst_8 [0] : vector<8x1024xf32> to vector<1024xf32>
    %17 = vector.shape_cast %16 : vector<1024xf32> to vector<1x1024xf32>
    %cst_9 = arith.constant 8.000000e+00 : f32
    %18 = vector.broadcast %cst_9 : f32 to vector<1x1024xf32>
    %19 = arith.divf %17, %18 : vector<1x1024xf32>
    %20 = vector.broadcast %19 : vector<1x1024xf32> to vector<8x1024xf32>
    %21 = arith.subf %15, %20 : vector<8x1024xf32>
    %22 = arith.mulf %21, %21 : vector<8x1024xf32>
    %cst_10 = arith.constant dense<0.000000e+00> : vector<1024xf32>
    %23 = vector.multi_reduction <add>, %22, %cst_10 [0] : vector<8x1024xf32> to vector<1024xf32>
    %24 = vector.shape_cast %23 : vector<1024xf32> to vector<1x1024xf32>
    %cst_11 = arith.constant 8.000000e+00 : f32
    %25 = vector.broadcast %cst_11 : f32 to vector<1x1024xf32>
    %26 = arith.divf %24, %25 : vector<1x1024xf32>
    %27 = vector.broadcast %19 : vector<1x1024xf32> to vector<8x1024xf32>
    %28 = arith.subf %15, %27 : vector<8x1024xf32>
    %cst_12 = arith.constant 9.99999974E-6 : f32
    %29 = vector.broadcast %cst_12 : f32 to vector<1x1024xf32>
    %30 = arith.addf %26, %29 : vector<1x1024xf32>
    %31 = math.rsqrt %30 : vector<1x1024xf32>
    %32 = vector.broadcast %31 : vector<1x1024xf32> to vector<8x1024xf32>
    %33 = arith.mulf %28, %32 : vector<8x1024xf32>
    %34 = vector.broadcast %6 : vector<1x1024xf32> to vector<8x1024xf32>
    %35 = arith.mulf %33, %34 : vector<8x1024xf32>
    %36 = vector.broadcast %7 : vector<1x1024xf32> to vector<8x1024xf32>
    %37 = arith.addf %35, %36 : vector<8x1024xf32>
    %cst_13 = arith.constant 0.000000e+00 : f32
    %38 = vector.broadcast %cst_13 : f32 to vector<8x1024xf32>
    %39 = arith.maximumf %37, %38 : vector<8x1024xf32>
    %40 = arith.truncf %39 : vector<8x1024xf32> to vector<8x1024xbf16>
    %c0_14 = arith.constant 0 : index
    %c0_15 = arith.constant 0 : index
    %c0_16 = arith.constant 0 : index
    %41 = vector.load %arg4[%c0_14, %c0_15, %c0_16] : memref<1x1024x256xbf16, #tpu.memory_space<vmem>>, vector<1x1024x256xbf16>
    %42 = vector.shape_cast %41 : vector<1x1024x256xbf16> to vector<1024x256xbf16>
    %cst_17 = arith.constant dense<0.000000e+00> : vector<8x256xf32>
    %43 = tpu.matmul %40, %42, %cst_17 {dimension_numbers = #tpu.dot_dimension_numbers<[1], [0], [0], [1], [0, 0, 1, 1], [], []>} : vector<8x1024xbf16>, vector<1024x256xbf16>, vector<8x256xf32> -> vector<8x256xf32>
    %44 = vector.broadcast %8 : vector<1x256xf32> to vector<8x256xf32>
    %45 = arith.addf %43, %44 : vector<8x256xf32>
    %c0_i32_18 = arith.constant 0 : i32
    %46 = arith.cmpi eq, %arg0, %c0_i32_18 : i32
    %47 = arith.extui %46 : i1 to i32
    %c0_i32_19 = arith.constant 0 : i32
    %48 = arith.cmpi ne, %47, %c0_i32_19 : i32
    scf.if %48 {
      %c0_21 = arith.constant 0 : index
      %c0_22 = arith.constant 0 : index
      %52 = vector.load %arg7[%c0_21, %c0_22] : memref<8x256xf32, #tpu.memory_space<vmem>>, vector<8x256xf32>
      tpu.vector_store %arg7[%c0_21, %c0_22], %45 {strides = array<i32>} : memref<8x256xf32, #tpu.memory_space<vmem>>, vector<8x256xf32>,
      %c0_23 = arith.constant 0 : index
      %c0_24 = arith.constant 0 : index
      %53 = vector.load %arg8[%c0_23, %c0_24] : memref<8x256xf32, #tpu.memory_space<vmem>>, vector<8x256xf32>
      tpu.vector_store %arg8[%c0_23, %c0_24], %45 {strides = array<i32>} : memref<8x256xf32, #tpu.memory_space<vmem>>, vector<8x256xf32>,
    } else {
    }
    %c1_i32 = arith.constant 1 : i32
    %49 = arith.cmpi eq, %arg0, %c1_i32 : i32
    %50 = arith.extui %49 : i1 to i32
    %c0_i32_20 = arith.constant 0 : i32
    %51 = arith.cmpi ne, %50, %c0_i32_20 : i32
    scf.if %51 {
      %c0_21 = arith.constant 0 : index
      %c0_22 = arith.constant 0 : index
      %52 = vector.load %arg6[%c0_21, %c0_22] : memref<8x256xf32, #tpu.memory_space<vmem>>, vector<8x256xf32>
      tpu.vector_store %arg6[%c0_21, %c0_22], %45 {strides = array<i32>} : memref<8x256xf32, #tpu.memory_space<vmem>>, vector<8x256xf32>,
    } else {
    }
    return
  }
  func.func @transform_0(%arg0: i32) -> (i32, i32) {
    %c0_i32 = arith.constant 0 : i32
    %c0_i32_0 = arith.constant 0 : i32
    %c0_i32_1 = arith.constant 0 : i32
    return %c0_i32, %c0_i32_0 : i32, i32
  }
  func.func @transform_1(%arg0: i32) -> (i32, i32) {
    %c0_i32 = arith.constant 0 : i32
    %c0_i32_0 = arith.constant 0 : i32
    %c0_i32_1 = arith.constant 0 : i32
    return %c0_i32, %c0_i32_0 : i32, i32
  }
  func.func @transform_2(%arg0: i32) -> (i32, i32, i32) {
    %c0_i32 = arith.constant 0 : i32
    %c0_i32_0 = arith.constant 0 : i32
    %c0_i32_1 = arith.constant 0 : i32
    return %arg0, %c0_i32, %c0_i32_0 : i32, i32, i32
  }
  func.func @transform_3(%arg0: i32) -> (i32, i32, i32) {
    %c0_i32 = arith.constant 0 : i32
    %c0_i32_0 = arith.constant 0 : i32
    %c0_i32_1 = arith.constant 0 : i32
    return %arg0, %c0_i32, %c0_i32_0 : i32, i32, i32
  }
  func.func @transform_4(%arg0: i32) -> (i32, i32, i32) {
    %c0_i32 = arith.constant 0 : i32
    %c0_i32_0 = arith.constant 0 : i32
    %c0_i32_1 = arith.constant 0 : i32
    return %arg0, %c0_i32, %c0_i32_0 : i32, i32, i32
  }
  func.func @transform_5(%arg0: i32) -> (i32, i32) {
    %c0_i32 = arith.constant 0 : i32
    %c0_i32_0 = arith.constant 0 : i32
    %c0_i32_1 = arith.constant 0 : i32
    return %c0_i32, %c0_i32_0 : i32, i32
  }
  func.func @transform_6(%arg0: i32) -> (i32, i32) {
    %c0_i32 = arith.constant 0 : i32
    %c0_i32_0 = arith.constant 0 : i32
    %c0_i32_1 = arith.constant 0 : i32
    return %c0_i32, %c0_i32_0 : i32, i32
  }
}

</mosaic_0001>

<llo_original>
// kernel: byol_forward.1
$region0: #{byol_forward.1}
  #allocation0 [shape = 'u32[]', space=smem, size = 0x4, offset = 0x4, fixed_abs, tag = 'smem constant byte address 0x4 - core index']
  #allocation1 [shape = 'u32[144,128]{1,0:T(1,128)}', space=vmem, size = 0x12000, scoped, tag = 'internal scratch']
  #allocation2 [shape = 'f32[8,256]{1,0:T(8,128)}', space=vmem, size = 0x2000, scoped, tag = 'scratch operand']
  %s0 = inlined_call_operand.vmem [shape: bf16[2048,32], index: 0, kind: input, shape index: {}]
  %s1 = inlined_call_operand.vmem [shape: bf16[32,128], index: 1, kind: input, shape index: {}]
  %s2 = inlined_call_operand.vmem [shape: bf16[2,256,1024], index: 2, kind: input, shape index: {}]
  %s3 = inlined_call_operand.vmem [shape: bf16[2,1024,256], index: 3, kind: input, shape index: {}]
  %s4 = inlined_call_operand.vmem [shape: f32[2,1,3328], index: 4, kind: input, shape index: {}]
  %s5 = inlined_call_operand.hbm [shape: f32[8,256], index: 5, kind: output, shape index: {0}]
  %s6 = inlined_call_operand.hbm [shape: f32[8,256], index: 6, kind: output, shape index: {1}]
  %7 = xla_tuple %s5, %s6
  %s8 = sld [smem:[#allocation0]]
  $region73: #{byol_forward.1} parent=0
    _
  %s10 = ssub.s32 1, %s8
  %s11 = scalar_select 0, %s10, %s8
  $region1: #{byol_forward.1} parent=0
    #allocation3 [shape = 'u8[8192]{0}', space=vmem, size = 0x2000, scoped, tag = 'output window, operand 0, single buffered']
    #allocation4 [shape = 's32[2]{0}', space=sflag, size = 0x8, scoped, tag = 'scoped memory for byol_forward.1']
    #allocation5 [shape = 'u8[8192]{0}', space=vmem, size = 0x2000, scoped, tag = 'output window, operand 1, single buffered']
    #allocation6 [shape = 's32[1]{0}', space=sflag, size = 0x4, scoped, tag = 'scoped memory for byol_forward.1']
    %12 = vsyncpa [#allocation4], 0
    %13 = vsyncpa [#allocation6], 0
    loop: start=0, step=1, limit=4
    $region2: #{byol_forward.1} parent=1 // loop_pre_header
      _
    $region3: #{byol_forward.1} parent=1 // loop_header
      %s15 = sphi 0, %s19
      %p16 = scmp.ge.s32.totalorder %s15, 4
      %s23 = sphi 0, %s23
      %s25 = sphi 0, %s23
      %s26 = sphi 0, %s25
      %s40 = sphi 0, %s26
      %s44 = sphi 0, %s44
      %s46 = sphi 0, %s44
      %s47 = sphi 0, %s46
      %s61 = sphi 0, %s47
      %s67 = sphi 0, %s69
      %s70 = sphi 0, %s67
      %s71 = sphi 0, %s70
      %s87 = sphi 0, %s71
      %s93 = sphi 0, %s95
      %s96 = sphi 0, %s93
      %s97 = sphi 0, %s96
      %s113 = sphi 0, %s97
      %s119 = sphi 0, %s121
      %s122 = sphi 0, %s119
      %s123 = sphi 0, %s122
      %s139 = sphi 0, %s123
      %s143 = sphi 0, %s143
      %s145 = sphi 0, %s143
      %s146 = sphi 0, %s145
      %s160 = sphi 0, %s146
      %s164 = sphi 0, %s164
      %s166 = sphi 0, %s164
      %s167 = sphi 0, %s166
      %s181 = sphi 0, %s167
    $region4: #{byol_forward.1} parent=1 // loop_header_branch
      %18 = sbr.rel (%p16) target = $region8
    $region5: #{byol_forward.1} parent=1 // loop_body
      %s20 = ssub.s32 %s15, 1
      %s21 = ssub.s32 %s15, 2
      %s22 = sadd.s32 %s15, 1
      %s24 = sadd.s32 %s23, 1
      %p27 = scmp.eq.s32.totalorder %s15, 1
      %p28 = scmp.ne.s32.totalorder %s23, %s25
      %p29 = scmp.eq.s32.totalorder %s15, 0
      %p30 = por %p28, %p29
      %p31 = scmp.ne.s32.totalorder %s23, %s25
      %p32 = scmp.eq.s32.totalorder %s20, 1
      %p33 = por %p31, %p32
      %p34 = scmp.ne.s32.totalorder %s25, %s26
      %p35 = scmp.eq.s32.totalorder %s20, 0
      %p36 = por %p34, %p35
      %p37 = scmp.ne.s32.totalorder %s25, %s26
      %p38 = scmp.eq.s32.totalorder %s21, 1
      %p39 = por %p37, %p38
      %p41 = scmp.ne.s32.totalorder %s26, %s40
      %p42 = scmp.eq.s32.totalorder %s21, 0
      %p43 = por %p41, %p42
      %s45 = sadd.s32 %s44, 1
      %p48 = scmp.eq.s32.totalorder %s15, 1
      %p49 = scmp.ne.s32.totalorder %s44, %s46
      %p50 = scmp.eq.s32.totalorder %s15, 0
      %p51 = por %p49, %p50
      %p52 = scmp.ne.s32.totalorder %s44, %s46
      %p53 = scmp.eq.s32.totalorder %s20, 1
      %p54 = por %p52, %p53
      %p55 = scmp.ne.s32.totalorder %s46, %s47
      %p56 = scmp.eq.s32.totalorder %s20, 0
      %p57 = por %p55, %p56
      %p58 = scmp.ne.s32.totalorder %s46, %s47
      %p59 = scmp.eq.s32.totalorder %s21, 1
      %p60 = por %p58, %p59
      %p62 = scmp.ne.s32.totalorder %s47, %s61
      %p63 = scmp.eq.s32.totalorder %s21, 0
      %p64 = por %p62, %p63
      %s65 = ssub.s32 %s15, %s22
      %p66 = scmp.eq.s32.totalorder %s65, 0
      %s68 = sadd.s32 %s67, 1
      %s69 = scalar_select %p66, %s67, %s68
      %p72 = pneg %p66
      %p73 = scmp.eq.s32.totalorder %s15, 1
      %p74 = por %p72, %p73
      %p75 = scmp.ne.s32.totalorder %s67, %s70
      %p76 = scmp.eq.s32.totalorder %s15, 0
      %p77 = por %p75, %p76
      %p78 = scmp.ne.s32.totalorder %s67, %s70
      %p79 = scmp.eq.s32.totalorder %s20, 1
      %p80 = por %p78, %p79
      %p81 = scmp.ne.s32.totalorder %s70, %s71
      %p82 = scmp.eq.s32.totalorder %s20, 0
      %p83 = por %p81, %p82
      %p84 = scmp.ne.s32.totalorder %s70, %s71
      %p85 = scmp.eq.s32.totalorder %s21, 1
      %p86 = por %p84, %p85
      %p88 = scmp.ne.s32.totalorder %s71, %s87
      %p89 = scmp.eq.s32.totalorder %s21, 0
      %p90 = por %p88, %p89
      %s91 = ssub.s32 %s15, %s22
      %p92 = scmp.eq.s32.totalorder %s91, 0
      %s94 = sadd.s32 %s93, 1
      %s95 = scalar_select %p92, %s93, %s94
      %p98 = pneg %p92
      %p99 = scmp.eq.s32.totalorder %s15, 1
      %p100 = por %p98, %p99
      %p101 = scmp.ne.s32.totalorder %s93, %s96
      %p102 = scmp.eq.s32.totalorder %s15, 0
      %p103 = por %p101, %p102
      %p104 = scmp.ne.s32.totalorder %s93, %s96
      %p105 = scmp.eq.s32.totalorder %s20, 1
      %p106 = por %p104, %p105
      %p107 = scmp.ne.s32.totalorder %s96, %s97
      %p108 = scmp.eq.s32.totalorder %s20, 0
      %p109 = por %p107, %p108
      %p110 = scmp.ne.s32.totalorder %s96, %s97
      %p111 = scmp.eq.s32.totalorder %s21, 1
      %p112 = por %p110, %p111
      %p114 = scmp.ne.s32.totalorder %s97, %s113
      %p115 = scmp.eq.s32.totalorder %s21, 0
      %p116 = por %p114, %p115
      %s117 = ssub.s32 %s15, %s22
      %p118 = scmp.eq.s32.totalorder %s117, 0
      %s120 = sadd.s32 %s119, 1
      %s121 = scalar_select %p118, %s119, %s120
      %p124 = pneg %p118
      %p125 = scmp.eq.s32.totalorder %s15, 1
      %p126 = por %p124, %p125
      %p127 = scmp.ne.s32.totalorder %s119, %s122
      %p128 = scmp.eq.s32.totalorder %s15, 0
      %p129 = por %p127, %p128
      %p130 = scmp.ne.s32.totalorder %s119, %s122
      %p131 = scmp.eq.s32.totalorder %s20, 1
      %p132 = por %p130, %p131
      %p133 = scmp.ne.s32.totalorder %s122, %s123
      %p134 = scmp.eq.s32.totalorder %s20, 0
      %p135 = por %p133, %p134
      %p136 = scmp.ne.s32.totalorder %s122, %s123
      %p137 = scmp.eq.s32.totalorder %s21, 1
      %p138 = por %p136, %p137
      %p140 = scmp.ne.s32.totalorder %s123, %s139
      %p141 = scmp.eq.s32.totalorder %s21, 0
      %p142 = por %p140, %p141
      %s144 = sadd.s32 %s143, 1
      %p147 = scmp.eq.s32.totalorder %s15, 1
      %p148 = scmp.ne.s32.totalorder %s143, %s145
      %p149 = scmp.eq.s32.totalorder %s15, 0
      %p150 = por %p148, %p149
      %p151 = scmp.ne.s32.totalorder %s143, %s145
      %p152 = scmp.eq.s32.totalorder %s20, 1
      %p153 = por %p151, %p152
      %p154 = scmp.ne.s32.totalorder %s145, %s146
      %p155 = scmp.eq.s32.totalorder %s20, 0
      %p156 = por %p154, %p155
      %p157 = scmp.ne.s32.totalorder %s145, %s146
      %p158 = scmp.eq.s32.totalorder %s21, 1
      %p159 = por %p157, %p158
      %p161 = scmp.ne.s32.totalorder %s146, %s160
      %p162 = scmp.eq.s32.totalorder %s21, 0
      %p163 = por %p161, %p162
      %s165 = sadd.s32 %s164, 1
      %p168 = scmp.eq.s32.totalorder %s15, 1
      %p169 = scmp.ne.s32.totalorder %s164, %s166
      %p170 = scmp.eq.s32.totalorder %s15, 0
      %p171 = por %p169, %p170
      %p172 = scmp.ne.s32.totalorder %s164, %s166
      %p173 = scmp.eq.s32.totalorder %s20, 1
      %p174 = por %p172, %p173
      %p175 = scmp.ne.s32.totalorder %s166, %s167
      %p176 = scmp.eq.s32.totalorder %s20, 0
      %p177 = por %p175, %p176
      %p178 = scmp.ne.s32.totalorder %s166, %s167
      %p179 = scmp.eq.s32.totalorder %s21, 1
      %p180 = por %p178, %p179
      %p182 = scmp.ne.s32.totalorder %s167, %s181
      %p183 = scmp.eq.s32.totalorder %s21, 0
      %p184 = por %p182, %p183
      %p185 = scmp.le.s32.totalorder 1, %s15
      %p186 = scmp.lt.s32.totalorder %s15, 3
      %p187 = pnand %p185, %p186
      %p188 = pneg %p187
      // Predicated region
      $region9: #{byol_forward.1} parent=5 // pred_check
        _
      $region10: #{byol_forward.1} parent=5 // pred_check_branch
        %190 = sbr.rel (%p187) target = $region12
      $region11: #{byol_forward.1} parent=5 // pred_region
        %s191 = ssub.s32 %s15, 1
        // Predicated region
        $region13: #{byol_forward.1} parent=11 // pred_check
          %p192 = pneg %p36
        $region14: #{byol_forward.1} parent=11 // pred_check_branch
          %194 = sbr.rel (%p192) target = $region16
        $region15: #{byol_forward.1} parent=11 // pred_region
          _
        $region16: #{byol_forward.1} parent=11 // pred_fallthru
          _
        // Predicated region
        $region17: #{byol_forward.1} parent=11 // pred_check
          %p195 = pneg %p57
        $region18: #{byol_forward.1} parent=11 // pred_check_branch
          %197 = sbr.rel (%p195) target = $region20
        $region19: #{byol_forward.1} parent=11 // pred_region
          _
        $region20: #{byol_forward.1} parent=11 // pred_fallthru
          _
      $region12: #{byol_forward.1} parent=5 // pred_fallthru
        _
      %p198 = scmp.lt.s32.totalorder %s15, 2
      // Predicated region
      $region21: #{byol_forward.1} parent=5 // pred_check
        %p199 = pneg %p198
      $region22: #{byol_forward.1} parent=5 // pred_check_branch
        %201 = sbr.rel (%p199) target = $region24
      $region23: #{byol_forward.1} parent=5 // pred_region
        // Predicated region
        $region25: #{byol_forward.1} parent=23 // pred_check
          %p202 = pneg %p77
        $region26: #{byol_forward.1} parent=23 // pred_check_branch
          %204 = sbr.rel (%p202) target = $region28
        $region27: #{byol_forward.1} parent=23 // pred_region
          %p205 = scmp.lt.s32.totalorder %s15, 1
          %s206 = scalar_select %p205, %s15, 1
          %s207 = smul.addr %s206, 256
          %s208 = smul.addr %s207, 4
          %s209 = scalar_lea.vmem %s2, %s208
        $region28: #{byol_forward.1} parent=23 // pred_fallthru
          _
        // Predicated region
        $region29: #{byol_forward.1} parent=23 // pred_check
          %p210 = pneg %p103
        $region30: #{byol_forward.1} parent=23 // pred_check_branch
          %212 = sbr.rel (%p210) target = $region32
        $region31: #{byol_forward.1} parent=23 // pred_region
          %p213 = scmp.lt.s32.totalorder %s15, 1
          %s214 = scalar_select %p213, %s15, 1
          %s215 = smul.addr %s214, 256
          %s216 = smul.addr %s215, 4
          %s217 = scalar_lea.vmem %s3, %s216
        $region32: #{byol_forward.1} parent=23 // pred_fallthru
          _
        // Predicated region
        $region33: #{byol_forward.1} parent=23 // pred_check
          %p218 = pneg %p129
        $region34: #{byol_forward.1} parent=23 // pred_check_branch
          %220 = sbr.rel (%p218) target = $region36
        $region35: #{byol_forward.1} parent=23 // pred_region
          %p221 = scmp.lt.s32.totalorder %s15, 1
          %s222 = scalar_select %p221, %s15, 1
          %s223 = smul.addr %s222, 26
          %s224 = scalar_lea.vmem %s4, %s223
        $region36: #{byol_forward.1} parent=23 // pred_fallthru
          _
      $region24: #{byol_forward.1} parent=5 // pred_fallthru
        _
      %p225 = scmp.le.s32.totalorder 1, %s15
      %p226 = scmp.lt.s32.totalorder %s15, 3
      %p227 = pnand %p225, %p226
      %p228 = pneg %p227
      // Predicated region
      $region37: #{byol_forward.1} parent=5 // pred_check
        _
      $region38: #{byol_forward.1} parent=5 // pred_check_branch
        %230 = sbr.rel (%p227) target = $region40
      $region39: #{byol_forward.1} parent=5 // pred_region
        %s231 = ssub.s32 %s15, 1
        %p232 = pneg %p36
        %p233 = pneg %p33
        %p234 = pneg %p57
        %p235 = pneg %p54
        %p236 = scmp.lt.s32.totalorder %s20, 1
        %s237 = scalar_select %p236, %s20, 1
        %s238 = smul.addr %s237, 256
        %s239 = smul.addr %s238, 4
        %s240 = scalar_lea.vmem %s2, %s239
        %p241 = pneg %p83
        %p242 = pneg %p80
        %p243 = scmp.lt.s32.totalorder %s20, 1
        %s244 = scalar_select %p243, %s20, 1
        %s245 = smul.addr %s244, 256
        %s246 = smul.addr %s245, 4
        %s247 = scalar_lea.vmem %s3, %s246
        %p248 = pneg %p109
        %p249 = pneg %p106
        %p250 = scmp.lt.s32.totalorder %s20, 1
        %s251 = scalar_select %p250, %s20, 1
        %s252 = smul.addr %s251, 26
        %s253 = scalar_lea.vmem %s4, %s252
        %p254 = pneg %p135
        %p255 = pneg %p132
        %p256 = pneg %p156
        %p257 = pneg %p153
        %p258 = pneg %p177
        %p259 = pneg %p174
        %p260 = scmp.lt.s32.totalorder %s20, 1
        %s261 = scalar_select %p260, %s20, 1
        %s262 = smul.addr %s261, 256
        %s263 = smul.addr %s262, 4
        %s264 = scalar_lea.vmem %s2, %s263
        %p265 = scmp.lt.s32.totalorder %s20, 1
        %s266 = scalar_select %p265, %s20, 1
        %s267 = smul.addr %s266, 256
        %s268 = smul.addr %s267, 4
        %s269 = scalar_lea.vmem %s3, %s268
        %p270 = scmp.lt.s32.totalorder %s20, 1
        %s271 = scalar_select %p270, %s20, 1
        %s272 = smul.addr %s271, 26
        %s273 = scalar_lea.vmem %s4, %s272
        %p275 = scmp.eq.s32.totalorder %s20, 0
        // Predicated region
        $region41: #{byol_forward.1} parent=39 // pred_check
          %p276 = pneg %p275
        $region42: #{byol_forward.1} parent=39 // pred_check_branch
          %278 = sbr.rel (%p276) target = $region44
        $region43: #{byol_forward.1} parent=39 // pred_region
          %v279 = vld [vmem:[%s0] sm:$0xf]
          %v280 = vld [vmem:[%s0 + $0x4] sm:$0xf]
          %v281 = vld [vmem:[%s0 + $0x8] sm:$0xf]
          %v282 = vld [vmem:[%s0 + $0xc] sm:$0xf]
          %v283 = vld [vmem:[%s0 + $0x10] sm:$0xf]
          %v284 = vld [vmem:[%s0 + $0x14] sm:$0xf]
          %v285 = vld [vmem:[%s0 + $0x18] sm:$0xf]
          %v286 = vld [vmem:[%s0 + $0x1c] sm:$0xf]
          %v287 = vld [vmem:[%s0 + $0x20] sm:$0xf]
          %v288 = vld [vmem:[%s0 + $0x24] sm:$0xf]
          %v289 = vld [vmem:[%s0 + $0x28] sm:$0xf]
          %v290 = vld [vmem:[%s0 + $0x2c] sm:$0xf]
          %v291 = vld [vmem:[%s0 + $0x30] sm:$0xf]
          %v292 = vld [vmem:[%s0 + $0x34] sm:$0xf]
          %v293 = vld [vmem:[%s0 + $0x38] sm:$0xf]
          %v294 = vld [vmem:[%s0 + $0x3c] sm:$0xf]
          %v295 = vld [vmem:[%s0 + $0x40] sm:$0xf]
          %v296 = vld [vmem:[%s0 + $0x44] sm:$0xf]
          %v297 = vld [vmem:[%s0 + $0x48] sm:$0xf]
          %v298 = vld [vmem:[%s0 + $0x4c] sm:$0xf]
          %v299 = vld [vmem:[%s0 + $0x50] sm:$0xf]
          %v300 = vld [vmem:[%s0 + $0x54] sm:$0xf]
          %v301 = vld [vmem:[%s0 + $0x58] sm:$0xf]
          %v302 = vld [vmem:[%s0 + $0x5c] sm:$0xf]
          %v303 = vld [vmem:[%s0 + $0x60] sm:$0xf]
          %v304 = vld [vmem:[%s0 + $0x64] sm:$0xf]
          %v305 = vld [vmem:[%s0 + $0x68] sm:$0xf]
          %v306 = vld [vmem:[%s0 + $0x6c] sm:$0xf]
          %v307 = vld [vmem:[%s0 + $0x70] sm:$0xf]
          %v308 = vld [vmem:[%s0 + $0x74] sm:$0xf]
          %v309 = vld [vmem:[%s0 + $0x78] sm:$0xf]
          %v310 = vld [vmem:[%s0 + $0x7c] sm:$0xf]
          %v311 = vld [vmem:[%s0 + $0x80] sm:$0xf]
          %v312 = vld [vmem:[%s0 + $0x84] sm:$0xf]
          %v313 = vld [vmem:[%s0 + $0x88] sm:$0xf]
          %v314 = vld [vmem:[%s0 + $0x8c] sm:$0xf]
          %v315 = vld [vmem:[%s0 + $0x90] sm:$0xf]
          %v316 = vld [vmem:[%s0 + $0x94] sm:$0xf]
          %v317 = vld [vmem:[%s0 + $0x98] sm:$0xf]
          %v318 = vld [vmem:[%s0 + $0x9c] sm:$0xf]
          %v319 = vld [vmem:[%s0 + $0xa0] sm:$0xf]
          %v320 = vld [vmem:[%s0 + $0xa4] sm:$0xf]
          %v321 = vld [vmem:[%s0 + $0xa8] sm:$0xf]
          %v322 = vld [vmem:[%s0 + $0xac] sm:$0xf]
          %v323 = vld [vmem:[%s0 + $0xb0] sm:$0xf]
          %v324 = vld [vmem:[%s0 + $0xb4] sm:$0xf]
          %v325 = vld [vmem:[%s0 + $0xb8] sm:$0xf]
          %v326 = vld [vmem:[%s0 + $0xbc] sm:$0xf]
          %v327 = vld [vmem:[%s0 + $0xc0] sm:$0xf]
          %v328 = vld [vmem:[%s0 + $0xc4] sm:$0xf]
          %v329 = vld [vmem:[%s0 + $0xc8] sm:$0xf]
          %v330 = vld [vmem:[%s0 + $0xcc] sm:$0xf]
          %v331 = vld [vmem:[%s0 + $0xd0] sm:$0xf]
          %v332 = vld [vmem:[%s0 + $0xd4] sm:$0xf]
          %v333 = vld [vmem:[%s0 + $0xd8] sm:$0xf]
          %v334 = vld [vmem:[%s0 + $0xdc] sm:$0xf]
          %v335 = vld [vmem:[%s0 + $0xe0] sm:$0xf]
          %v336 = vld [vmem:[%s0 + $0xe4] sm:$0xf]
          %v337 = vld [vmem:[%s0 + $0xe8] sm:$0xf]
          %v338 = vld [vmem:[%s0 + $0xec] sm:$0xf]
          %v339 = vld [vmem:[%s0 + $0xf0] sm:$0xf]
          %v340 = vld [vmem:[%s0 + $0xf4] sm:$0xf]
          %v341 = vld [vmem:[%s0 + $0xf8] sm:$0xf]
          %v342 = vld [vmem:[%s0 + $0xfc] sm:$0xf]
          %v343 = vld [vmem:[%s0 + $0x100] sm:$0xf]
          %v344 = vld [vmem:[%s0 + $0x104] sm:$0xf]
          %v345 = vld [vmem:[%s0 + $0x108] sm:$0xf]
          %v346 = vld [vmem:[%s0 + $0x10c] sm:$0xf]
          %v347 = vld [vmem:[%s0 + $0x110] sm:$0xf]
          %v348 = vld [vmem:[%s0 + $0x114] sm:$0xf]
          %v349 = vld [vmem:[%s0 + $0x118] sm:$0xf]
          %v350 = vld [vmem:[%s0 + $0x11c] sm:$0xf]
          %v351 = vld [vmem:[%s0 + $0x120] sm:$0xf]
          %v352 = vld [vmem:[%s0 + $0x124] sm:$0xf]
          %v353 = vld [vmem:[%s0 + $0x128] sm:$0xf]
          %v354 = vld [vmem:[%s0 + $0x12c] sm:$0xf]
          %v355 = vld [vmem:[%s0 + $0x130] sm:$0xf]
          %v356 = vld [vmem:[%s0 + $0x134] sm:$0xf]
          %v357 = vld [vmem:[%s0 + $0x138] sm:$0xf]
          %v358 = vld [vmem:[%s0 + $0x13c] sm:$0xf]
          %v359 = vld [vmem:[%s0 + $0x140] sm:$0xf]
          %v360 = vld [vmem:[%s0 + $0x144] sm:$0xf]
          %v361 = vld [vmem:[%s0 + $0x148] sm:$0xf]
          %v362 = vld [vmem:[%s0 + $0x14c] sm:$0xf]
          %v363 = vld [vmem:[%s0 + $0x150] sm:$0xf]
          %v364 = vld [vmem:[%s0 + $0x154] sm:$0xf]
          %v365 = vld [vmem:[%s0 + $0x158] sm:$0xf]
          %v366 = vld [vmem:[%s0 + $0x15c] sm:$0xf]
          %v367 = vld [vmem:[%s0 + $0x160] sm:$0xf]
          %v368 = vld [vmem:[%s0 + $0x164] sm:$0xf]
          %v369 = vld [vmem:[%s0 + $0x168] sm:$0xf]
          %v370 = vld [vmem:[%s0 + $0x16c] sm:$0xf]
          %v371 = vld [vmem:[%s0 + $0x170] sm:$0xf]
          %v372 = vld [vmem:[%s0 + $0x174] sm:$0xf]
          %v373 = vld [vmem:[%s0 + $0x178] sm:$0xf]
          %v374 = vld [vmem:[%s0 + $0x17c] sm:$0xf]
          %v375 = vld [vmem:[%s0 + $0x180] sm:$0xf]
          %v376 = vld [vmem:[%s0 + $0x184] sm:$0xf]
          %v377 = vld [vmem:[%s0 + $0x188] sm:$0xf]
          %v378 = vld [vmem:[%s0 + $0x18c] sm:$0xf]
          %v379 = vld [vmem:[%s0 + $0x190] sm:$0xf]
          %v380 = vld [vmem:[%s0 + $0x194] sm:$0xf]
          %v381 = vld [vmem:[%s0 + $0x198] sm:$0xf]
          %v382 = vld [vmem:[%s0 + $0x19c] sm:$0xf]
          %v383 = vld [vmem:[%s0 + $0x1a0] sm:$0xf]
          %v384 = vld [vmem:[%s0 + $0x1a4] sm:$0xf]
          %v385 = vld [vmem:[%s0 + $0x1a8] sm:$0xf]
          %v386 = vld [vmem:[%s0 + $0x1ac] sm:$0xf]
          %v387 = vld [vmem:[%s0 + $0x1b0] sm:$0xf]
          %v388 = vld [vmem:[%s0 + $0x1b4] sm:$0xf]
          %v389 = vld [vmem:[%s0 + $0x1b8] sm:$0xf]
          %v390 = vld [vmem:[%s0 + $0x1bc] sm:$0xf]
          %v391 = vld [vmem:[%s0 + $0x1c0] sm:$0xf]
          %v392 = vld [vmem:[%s0 + $0x1c4] sm:$0xf]
          %v393 = vld [vmem:[%s0 + $0x1c8] sm:$0xf]
          %v394 = vld [vmem:[%s0 + $0x1cc] sm:$0xf]
          %v395 = vld [vmem:[%s0 + $0x1d0] sm:$0xf]
          %v396 = vld [vmem:[%s0 + $0x1d4] sm:$0xf]
          %v397 = vld [vmem:[%s0 + $0x1d8] sm:$0xf]
          %v398 = vld [vmem:[%s0 + $0x1dc] sm:$0xf]
          %v399 = vld [vmem:[%s0 + $0x1e0] sm:$0xf]
          %v400 = vld [vmem:[%s0 + $0x1e4] sm:$0xf]
          %v401 = vld [vmem:[%s0 + $0x1e8] sm:$0xf]
          %v402 = vld [vmem:[%s0 + $0x1ec] sm:$0xf]
          %v403 = vld [vmem:[%s0 + $0x1f0] sm:$0xf]
          %v404 = vld [vmem:[%s0 + $0x1f4] sm:$0xf]
          %v405 = vld [vmem:[%s0 + $0x1f8] sm:$0xf]
          %v406 = vld [vmem:[%s0 + $0x1fc] sm:$0xf]
          %v407 = vld [vmem:[%s0 + $0x200] sm:$0xf]
          %v408 = vld [vmem:[%s0 + $0x204] sm:$0xf]
          %v409 = vld [vmem:[%s0 + $0x208] sm:$0xf]
          %v410 = vld [vmem:[%s0 + $0x20c] sm:$0xf]
          %v411 = vld [vmem:[%s0 + $0x210] sm:$0xf]
          %v412 = vld [vmem:[%s0 + $0x214] sm:$0xf]
          %v413 = vld [vmem:[%s0 + $0x218] sm:$0xf]
          %v414 = vld [vmem:[%s0 + $0x21c] sm:$0xf]
          %v415 = vld [vmem:[%s0 + $0x220] sm:$0xf]
          %v416 = vld [vmem:[%s0 + $0x224] sm:$0xf]
          %v417 = vld [vmem:[%s0 + $0x228] sm:$0xf]
          %v418 = vld [vmem:[%s0 + $0x22c] sm:$0xf]
          %v419 = vld [vmem:[%s0 + $0x230] sm:$0xf]
          %v420 = vld [vmem:[%s0 + $0x234] sm:$0xf]
          %v421 = vld [vmem:[%s0 + $0x238] sm:$0xf]
          %v422 = vld [vmem:[%s0 + $0x23c] sm:$0xf]
          %v423 = vld [vmem:[%s0 + $0x240] sm:$0xf]
          %v424 = vld [vmem:[%s0 + $0x244] sm:$0xf]
          %v425 = vld [vmem:[%s0 + $0x248] sm:$0xf]
          %v426 = vld [vmem:[%s0 + $0x24c] sm:$0xf]
          %v427 = vld [vmem:[%s0 + $0x250] sm:$0xf]
          %v428 = vld [vmem:[%s0 + $0x254] sm:$0xf]
          %v429 = vld [vmem:[%s0 + $0x258] sm:$0xf]
          %v430 = vld [vmem:[%s0 + $0x25c] sm:$0xf]
          %v431 = vld [vmem:[%s0 + $0x260] sm:$0xf]
          %v432 = vld [vmem:[%s0 + $0x264] sm:$0xf]
          %v433 = vld [vmem:[%s0 + $0x268] sm:$0xf]
          %v434 = vld [vmem:[%s0 + $0x26c] sm:$0xf]
          %v435 = vld [vmem:[%s0 + $0x270] sm:$0xf]
          %v436 = vld [vmem:[%s0 + $0x274] sm:$0xf]
          %v437 = vld [vmem:[%s0 + $0x278] sm:$0xf]
          %v438 = vld [vmem:[%s0 + $0x27c] sm:$0xf]
          %v439 = vld [vmem:[%s0 + $0x280] sm:$0xf]
          %v440 = vld [vmem:[%s0 + $0x284] sm:$0xf]
          %v441 = vld [vmem:[%s0 + $0x288] sm:$0xf]
          %v442 = vld [vmem:[%s0 + $0x28c] sm:$0xf]
          %v443 = vld [vmem:[%s0 + $0x290] sm:$0xf]
          %v444 = vld [vmem:[%s0 + $0x294] sm:$0xf]
          %v445 = vld [vmem:[%s0 + $0x298] sm:$0xf]
          %v446 = vld [vmem:[%s0 + $0x29c] sm:$0xf]
          %v447 = vld [vmem:[%s0 + $0x2a0] sm:$0xf]
          %v448 = vld [vmem:[%s0 + $0x2a4] sm:$0xf]
          %v449 = vld [vmem:[%s0 + $0x2a8] sm:$0xf]
          %v450 = vld [vmem:[%s0 + $0x2ac] sm:$0xf]
          %v451 = vld [vmem:[%s0 + $0x2b0] sm:$0xf]
          %v452 = vld [vmem:[%s0 + $0x2b4] sm:$0xf]
          %v453 = vld [vmem:[%s0 + $0x2b8] sm:$0xf]
          %v454 = vld [vmem:[%s0 + $0x2bc] sm:$0xf]
          %v455 = vld [vmem:[%s0 + $0x2c0] sm:$0xf]
          %v456 = vld [vmem:[%s0 + $0x2c4] sm:$0xf]
          %v457 = vld [vmem:[%s0 + $0x2c8] sm:$0xf]
          %v458 = vld [vmem:[%s0 + $0x2cc] sm:$0xf]
          %v459 = vld [vmem:[%s0 + $0x2d0] sm:$0xf]
          %v460 = vld [vmem:[%s0 + $0x2d4] sm:$0xf]
          %v461 = vld [vmem:[%s0 + $0x2d8] sm:$0xf]
          %v462 = vld [vmem:[%s0 + $0x2dc] sm:$0xf]
          %v463 = vld [vmem:[%s0 + $0x2e0] sm:$0xf]
          %v464 = vld [vmem:[%s0 + $0x2e4] sm:$0xf]
          %v465 = vld [vmem:[%s0 + $0x2e8] sm:$0xf]
          %v466 = vld [vmem:[%s0 + $0x2ec] sm:$0xf]
          %v467 = vld [vmem:[%s0 + $0x2f0] sm:$0xf]
          %v468 = vld [vmem:[%s0 + $0x2f4] sm:$0xf]
          %v469 = vld [vmem:[%s0 + $0x2f8] sm:$0xf]
          %v470 = vld [vmem:[%s0 + $0x2fc] sm:$0xf]
          %v471 = vld [vmem:[%s0 + $0x300] sm:$0xf]
          %v472 = vld [vmem:[%s0 + $0x304] sm:$0xf]
          %v473 = vld [vmem:[%s0 + $0x308] sm:$0xf]
          %v474 = vld [vmem:[%s0 + $0x30c] sm:$0xf]
          %v475 = vld [vmem:[%s0 + $0x310] sm:$0xf]
          %v476 = vld [vmem:[%s0 + $0x314] sm:$0xf]
          %v477 = vld [vmem:[%s0 + $0x318] sm:$0xf]
          %v478 = vld [vmem:[%s0 + $0x31c] sm:$0xf]
          %v479 = vld [vmem:[%s0 + $0x320] sm:$0xf]
          %v480 = vld [vmem:[%s0 + $0x324] sm:$0xf]
          %v481 = vld [vmem:[%s0 + $0x328] sm:$0xf]
          %v482 = vld [vmem:[%s0 + $0x32c] sm:$0xf]
          %v483 = vld [vmem:[%s0 + $0x330] sm:$0xf]
          %v484 = vld [vmem:[%s0 + $0x334] sm:$0xf]
          %v485 = vld [vmem:[%s0 + $0x338] sm:$0xf]
          %v486 = vld [vmem:[%s0 + $0x33c] sm:$0xf]
          %v487 = vld [vmem:[%s0 + $0x340] sm:$0xf]
          %v488 = vld [vmem:[%s0 + $0x344] sm:$0xf]
          %v489 = vld [vmem:[%s0 + $0x348] sm:$0xf]
          %v490 = vld [vmem:[%s0 + $0x34c] sm:$0xf]
          %v491 = vld [vmem:[%s0 + $0x350] sm:$0xf]
          %v492 = vld [vmem:[%s0 + $0x354] sm:$0xf]
          %v493 = vld [vmem:[%s0 + $0x358] sm:$0xf]
          %v494 = vld [vmem:[%s0 + $0x35c] sm:$0xf]
          %v495 = vld [vmem:[%s0 + $0x360] sm:$0xf]
          %v496 = vld [vmem:[%s0 + $0x364] sm:$0xf]
          %v497 = vld [vmem:[%s0 + $0x368] sm:$0xf]
          %v498 = vld [vmem:[%s0 + $0x36c] sm:$0xf]
          %v499 = vld [vmem:[%s0 + $0x370] sm:$0xf]
          %v500 = vld [vmem:[%s0 + $0x374] sm:$0xf]
          %v501 = vld [vmem:[%s0 + $0x378] sm:$0xf]
          %v502 = vld [vmem:[%s0 + $0x37c] sm:$0xf]
          %v503 = vld [vmem:[%s0 + $0x380] sm:$0xf]
          %v504 = vld [vmem:[%s0 + $0x384] sm:$0xf]
          %v505 = vld [vmem:[%s0 + $0x388] sm:$0xf]
          %v506 = vld [vmem:[%s0 + $0x38c] sm:$0xf]
          %v507 = vld [vmem:[%s0 + $0x390] sm:$0xf]
          %v508 = vld [vmem:[%s0 + $0x394] sm:$0xf]
          %v509 = vld [vmem:[%s0 + $0x398] sm:$0xf]
          %v510 = vld [vmem:[%s0 + $0x39c] sm:$0xf]
          %v511 = vld [vmem:[%s0 + $0x3a0] sm:$0xf]
          %v512 = vld [vmem:[%s0 + $0x3a4] sm:$0xf]
          %v513 = vld [vmem:[%s0 + $0x3a8] sm:$0xf]
          %v514 = vld [vmem:[%s0 + $0x3ac] sm:$0xf]
          %v515 = vld [vmem:[%s0 + $0x3b0] sm:$0xf]
          %v516 = vld [vmem:[%s0 + $0x3b4] sm:$0xf]
          %v517 = vld [vmem:[%s0 + $0x3b8] sm:$0xf]
          %v518 = vld [vmem:[%s0 + $0x3bc] sm:$0xf]
          %v519 = vld [vmem:[%s0 + $0x3c0] sm:$0xf]
          %v520 = vld [vmem:[%s0 + $0x3c4] sm:$0xf]
          %v521 = vld [vmem:[%s0 + $0x3c8] sm:$0xf]
          %v522 = vld [vmem:[%s0 + $0x3cc] sm:$0xf]
          %v523 = vld [vmem:[%s0 + $0x3d0] sm:$0xf]
          %v524 = vld [vmem:[%s0 + $0x3d4] sm:$0xf]
          %v525 = vld [vmem:[%s0 + $0x3d8] sm:$0xf]
          %v526 = vld [vmem:[%s0 + $0x3dc] sm:$0xf]
          %v527 = vld [vmem:[%s0 + $0x3e0] sm:$0xf]
          %v528 = vld [vmem:[%s0 + $0x3e4] sm:$0xf]
          %v529 = vld [vmem:[%s0 + $0x3e8] sm:$0xf]
          %v530 = vld [vmem:[%s0 + $0x3ec] sm:$0xf]
          %v531 = vld [vmem:[%s0 + $0x3f0] sm:$0xf]
          %v532 = vld [vmem:[%s0 + $0x3f4] sm:$0xf]
          %v533 = vld [vmem:[%s0 + $0x3f8] sm:$0xf]
          %v534 = vld [vmem:[%s0 + $0x3fc] sm:$0xf]
          %v535 = vld [vmem:[%s1] sm:$0xf]
          %v536 = vld [vmem:[%s1 + $0x4] sm:$0xf]
          %v537 = vld [vmem:[%s1 + $0x8] sm:$0xf]
          %v538 = vld [vmem:[%s1 + $0xc] sm:$0xf]
          %v795 = vunpack.c.l.b16 %v279
          %v796 = vunpack.c.l.b16 %v280
          %v797 = vunpack.c.l.b16 %v281
          %v798 = vunpack.c.l.b16 %v282
          %v799 = vunpack.c.l.b16 %v283
          %v800 = vunpack.c.l.b16 %v284
          %v801 = vunpack.c.l.b16 %v285
          %v802 = vunpack.c.l.b16 %v286
          %v803 = vunpack.c.l.b16 %v287
          %v804 = vunpack.c.l.b16 %v288
          %v805 = vunpack.c.l.b16 %v289
          %v806 = vunpack.c.l.b16 %v290
          %v807 = vunpack.c.l.b16 %v291
          %v808 = vunpack.c.l.b16 %v292
          %v809 = vunpack.c.l.b16 %v293
          %v810 = vunpack.c.l.b16 %v294
          %v811 = vunpack.c.l.b16 %v295
          %v812 = vunpack.c.l.b16 %v296
          %v813 = vunpack.c.l.b16 %v297
          %v814 = vunpack.c.l.b16 %v298
          %v815 = vunpack.c.l.b16 %v299
          %v816 = vunpack.c.l.b16 %v300
          %v817 = vunpack.c.l.b16 %v301
          %v818 = vunpack.c.l.b16 %v302
          %v819 = vunpack.c.l.b16 %v303
          %v820 = vunpack.c.l.b16 %v304
          %v821 = vunpack.c.l.b16 %v305
          %v822 = vunpack.c.l.b16 %v306
          %v823 = vunpack.c.l.b16 %v307
          %v824 = vunpack.c.l.b16 %v308
          %v825 = vunpack.c.l.b16 %v309
          %v826 = vunpack.c.l.b16 %v310
          %v827 = vunpack.c.l.b16 %v311
          %v828 = vunpack.c.l.b16 %v312
          %v829 = vunpack.c.l.b16 %v313
          %v830 = vunpack.c.l.b16 %v314
          %v831 = vunpack.c.l.b16 %v315
          %v832 = vunpack.c.l.b16 %v316
          %v833 = vunpack.c.l.b16 %v317
          %v834 = vunpack.c.l.b16 %v318
          %v835 = vunpack.c.l.b16 %v319
          %v836 = vunpack.c.l.b16 %v320
          %v837 = vunpack.c.l.b16 %v321
          %v838 = vunpack.c.l.b16 %v322
          %v839 = vunpack.c.l.b16 %v323
          %v840 = vunpack.c.l.b16 %v324
          %v841 = vunpack.c.l.b16 %v325
          %v842 = vunpack.c.l.b16 %v326
          %v843 = vunpack.c.l.b16 %v327
          %v844 = vunpack.c.l.b16 %v328
          %v845 = vunpack.c.l.b16 %v329
          %v846 = vunpack.c.l.b16 %v330
          %v847 = vunpack.c.l.b16 %v331
          %v848 = vunpack.c.l.b16 %v332
          %v849 = vunpack.c.l.b16 %v333
          %v850 = vunpack.c.l.b16 %v334
          %v851 = vunpack.c.l.b16 %v335
          %v852 = vunpack.c.l.b16 %v336
          %v853 = vunpack.c.l.b16 %v337
          %v854 = vunpack.c.l.b16 %v338
          %v855 = vunpack.c.l.b16 %v339
          %v856 = vunpack.c.l.b16 %v340
          %v857 = vunpack.c.l.b16 %v341
          %v858 = vunpack.c.l.b16 %v342
          %v859 = vunpack.c.l.b16 %v343
          %v860 = vunpack.c.l.b16 %v344
          %v861 = vunpack.c.l.b16 %v345
          %v862 = vunpack.c.l.b16 %v346
          %v863 = vunpack.c.l.b16 %v347
          %v864 = vunpack.c.l.b16 %v348
          %v865 = vunpack.c.l.b16 %v349
          %v866 = vunpack.c.l.b16 %v350
          %v867 = vunpack.c.l.b16 %v351
          %v868 = vunpack.c.l.b16 %v352
          %v869 = vunpack.c.l.b16 %v353
          %v870 = vunpack.c.l.b16 %v354
          %v871 = vunpack.c.l.b16 %v355
          %v872 = vunpack.c.l.b16 %v356
          %v873 = vunpack.c.l.b16 %v357
          %v874 = vunpack.c.l.b16 %v358
          %v875 = vunpack.c.l.b16 %v359
          %v876 = vunpack.c.l.b16 %v360
          %v877 = vunpack.c.l.b16 %v361
          %v878 = vunpack.c.l.b16 %v362
          %v879 = vunpack.c.l.b16 %v363
          %v880 = vunpack.c.l.b16 %v364
          %v881 = vunpack.c.l.b16 %v365
          %v882 = vunpack.c.l.b16 %v366
          %v883 = vunpack.c.l.b16 %v367
          %v884 = vunpack.c.l.b16 %v368
          %v885 = vunpack.c.l.b16 %v369
          %v886 = vunpack.c.l.b16 %v370
          %v887 = vunpack.c.l.b16 %v371
          %v888 = vunpack.c.l.b16 %v372
          %v889 = vunpack.c.l.b16 %v373
          %v890 = vunpack.c.l.b16 %v374
          %v891 = vunpack.c.l.b16 %v375
          %v892 = vunpack.c.l.b16 %v376
          %v893 = vunpack.c.l.b16 %v377
          %v894 = vunpack.c.l.b16 %v378
          %v895 = vunpack.c.l.b16 %v379
          %v896 = vunpack.c.l.b16 %v380
          %v897 = vunpack.c.l.b16 %v381
          %v898 = vunpack.c.l.b16 %v382
          %v899 = vunpack.c.l.b16 %v383
          %v900 = vunpack.c.l.b16 %v384
          %v901 = vunpack.c.l.b16 %v385
          %v902 = vunpack.c.l.b16 %v386
          %v903 = vunpack.c.l.b16 %v387
          %v904 = vunpack.c.l.b16 %v388
          %v905 = vunpack.c.l.b16 %v389
          %v906 = vunpack.c.l.b16 %v390
          %v907 = vunpack.c.l.b16 %v391
          %v908 = vunpack.c.l.b16 %v392
          %v909 = vunpack.c.l.b16 %v393
          %v910 = vunpack.c.l.b16 %v394
          %v911 = vunpack.c.l.b16 %v395
          %v912 = vunpack.c.l.b16 %v396
          %v913 = vunpack.c.l.b16 %v397
          %v914 = vunpack.c.l.b16 %v398
          %v915 = vunpack.c.l.b16 %v399
          %v916 = vunpack.c.l.b16 %v400
          %v917 = vunpack.c.l.b16 %v401
          %v918 = vunpack.c.l.b16 %v402
          %v919 = vunpack.c.l.b16 %v403
          %v920 = vunpack.c.l.b16 %v404
          %v921 = vunpack.c.l.b16 %v405
          %v922 = vunpack.c.l.b16 %v406
          %v923 = vunpack.c.l.b16 %v407
          %v924 = vunpack.c.l.b16 %v408
          %v925 = vunpack.c.l.b16 %v409
          %v926 = vunpack.c.l.b16 %v410
          %v927 = vunpack.c.l.b16 %v411
          %v928 = vunpack.c.l.b16 %v412
          %v929 = vunpack.c.l.b16 %v413
          %v930 = vunpack.c.l.b16 %v414
          %v931 = vunpack.c.l.b16 %v415
          %v932 = vunpack.c.l.b16 %v416
          %v933 = vunpack.c.l.b16 %v417
          %v934 = vunpack.c.l.b16 %v418
          %v935 = vunpack.c.l.b16 %v419
          %v936 = vunpack.c.l.b16 %v420
          %v937 = vunpack.c.l.b16 %v421
          %v938 = vunpack.c.l.b16 %v422
          %v939 = vunpack.c.l.b16 %v423
          %v940 = vunpack.c.l.b16 %v424
          %v941 = vunpack.c.l.b16 %v425
          %v942 = vunpack.c.l.b16 %v426
          %v943 = vunpack.c.l.b16 %v427
          %v944 = vunpack.c.l.b16 %v428
          %v945 = vunpack.c.l.b16 %v429
          %v946 = vunpack.c.l.b16 %v430
          %v947 = vunpack.c.l.b16 %v431
          %v948 = vunpack.c.l.b16 %v432
          %v949 = vunpack.c.l.b16 %v433
          %v950 = vunpack.c.l.b16 %v434
          %v951 = vunpack.c.l.b16 %v435
          %v952 = vunpack.c.l.b16 %v436
          %v953 = vunpack.c.l.b16 %v437
          %v954 = vunpack.c.l.b16 %v438
          %v955 = vunpack.c.l.b16 %v439
          %v956 = vunpack.c.l.b16 %v440
          %v957 = vunpack.c.l.b16 %v441
          %v958 = vunpack.c.l.b16 %v442
          %v959 = vunpack.c.l.b16 %v443
          %v960 = vunpack.c.l.b16 %v444
          %v961 = vunpack.c.l.b16 %v445
          %v962 = vunpack.c.l.b16 %v446
          %v963 = vunpack.c.l.b16 %v447
          %v964 = vunpack.c.l.b16 %v448
          %v965 = vunpack.c.l.b16 %v449
          %v966 = vunpack.c.l.b16 %v450
          %v967 = vunpack.c.l.b16 %v451
          %v968 = vunpack.c.l.b16 %v452
          %v969 = vunpack.c.l.b16 %v453
          %v970 = vunpack.c.l.b16 %v454
          %v971 = vunpack.c.l.b16 %v455
          %v972 = vunpack.c.l.b16 %v456
          %v973 = vunpack.c.l.b16 %v457
          %v974 = vunpack.c.l.b16 %v458
          %v975 = vunpack.c.l.b16 %v459
          %v976 = vunpack.c.l.b16 %v460
          %v977 = vunpack.c.l.b16 %v461
          %v978 = vunpack.c.l.b16 %v462
          %v979 = vunpack.c.l.b16 %v463
          %v980 = vunpack.c.l.b16 %v464
          %v981 = vunpack.c.l.b16 %v465
          %v982 = vunpack.c.l.b16 %v466
          %v983 = vunpack.c.l.b16 %v467
          %v984 = vunpack.c.l.b16 %v468
          %v985 = vunpack.c.l.b16 %v469
          %v986 = vunpack.c.l.b16 %v470
          %v987 = vunpack.c.l.b16 %v471
          %v988 = vunpack.c.l.b16 %v472
          %v989 = vunpack.c.l.b16 %v473
          %v990 = vunpack.c.l.b16 %v474
          %v991 = vunpack.c.l.b16 %v475
          %v992 = vunpack.c.l.b16 %v476
          %v993 = vunpack.c.l.b16 %v477
          %v994 = vunpack.c.l.b16 %v478
          %v995 = vunpack.c.l.b16 %v479
          %v996 = vunpack.c.l.b16 %v480
          %v997 = vunpack.c.l.b16 %v481
          %v998 = vunpack.c.l.b16 %v482
          %v999 = vunpack.c.l.b16 %v483
          %v1000 = vunpack.c.l.b16 %v484
          %v1001 = vunpack.c.l.b16 %v485
          %v1002 = vunpack.c.l.b16 %v486
          %v1003 = vunpack.c.l.b16 %v487
          %v1004 = vunpack.c.l.b16 %v488
          %v1005 = vunpack.c.l.b16 %v489
          %v1006 = vunpack.c.l.b16 %v490
          %v1007 = vunpack.c.l.b16 %v491
          %v1008 = vunpack.c.l.b16 %v492
          %v1009 = vunpack.c.l.b16 %v493
          %v1010 = vunpack.c.l.b16 %v494
          %v1011 = vunpack.c.l.b16 %v495
          %v1012 = vunpack.c.l.b16 %v496
          %v1013 = vunpack.c.l.b16 %v497
          %v1014 = vunpack.c.l.b16 %v498
          %v1015 = vunpack.c.l.b16 %v499
          %v1016 = vunpack.c.l.b16 %v500
          %v1017 = vunpack.c.l.b16 %v501
          %v1018 = vunpack.c.l.b16 %v502
          %v1019 = vunpack.c.l.b16 %v503
          %v1020 = vunpack.c.l.b16 %v504
          %v1021 = vunpack.c.l.b16 %v505
          %v1022 = vunpack.c.l.b16 %v506
          %v1023 = vunpack.c.l.b16 %v507
          %v1024 = vunpack.c.l.b16 %v508
          %v1025 = vunpack.c.l.b16 %v509
          %v1026 = vunpack.c.l.b16 %v510
          %v1027 = vunpack.c.l.b16 %v511
          %v1028 = vunpack.c.l.b16 %v512
          %v1029 = vunpack.c.l.b16 %v513
          %v1030 = vunpack.c.l.b16 %v514
          %v1031 = vunpack.c.l.b16 %v515
          %v1032 = vunpack.c.l.b16 %v516
          %v1033 = vunpack.c.l.b16 %v517
          %v1034 = vunpack.c.l.b16 %v518
          %v1035 = vunpack.c.l.b16 %v519
          %v1036 = vunpack.c.l.b16 %v520
          %v1037 = vunpack.c.l.b16 %v521
          %v1038 = vunpack.c.l.b16 %v522
          %v1039 = vunpack.c.l.b16 %v523
          %v1040 = vunpack.c.l.b16 %v524
          %v1041 = vunpack.c.l.b16 %v525
          %v1042 = vunpack.c.l.b16 %v526
          %v1043 = vunpack.c.l.b16 %v527
          %v1044 = vunpack.c.l.b16 %v528
          %v1045 = vunpack.c.l.b16 %v529
          %v1046 = vunpack.c.l.b16 %v530
          %v1047 = vunpack.c.l.b16 %v531
          %v1048 = vunpack.c.l.b16 %v532
          %v1049 = vunpack.c.l.b16 %v533
          %v1050 = vunpack.c.l.b16 %v534
          %v1051 = vpack.c.b16 %v796, %v795
          %v1052 = vpack.c.b16 %v798, %v797
          %v1053 = vpack.c.b16 %v800, %v799
          %v1054 = vpack.c.b16 %v802, %v801
          %v1055 = vpack.c.b16 %v804, %v803
          %v1056 = vpack.c.b16 %v806, %v805
          %v1057 = vpack.c.b16 %v808, %v807
          %v1058 = vpack.c.b16 %v810, %v809
          %v1059 = vpack.c.b16 %v812, %v811
          %v1060 = vpack.c.b16 %v814, %v813
          %v1061 = vpack.c.b16 %v816, %v815
          %v1062 = vpack.c.b16 %v818, %v817
          %v1063 = vpack.c.b16 %v820, %v819
          %v1064 = vpack.c.b16 %v822, %v821
          %v1065 = vpack.c.b16 %v824, %v823
          %v1066 = vpack.c.b16 %v826, %v825
          %v1067 = vpack.c.b16 %v828, %v827
          %v1068 = vpack.c.b16 %v830, %v829
          %v1069 = vpack.c.b16 %v832, %v831
          %v1070 = vpack.c.b16 %v834, %v833
          %v1071 = vpack.c.b16 %v836, %v835
          %v1072 = vpack.c.b16 %v838, %v837
          %v1073 = vpack.c.b16 %v840, %v839
          %v1074 = vpack.c.b16 %v842, %v841
          %v1075 = vpack.c.b16 %v844, %v843
          %v1076 = vpack.c.b16 %v846, %v845
          %v1077 = vpack.c.b16 %v848, %v847
          %v1078 = vpack.c.b16 %v850, %v849
          %v1079 = vpack.c.b16 %v852, %v851
          %v1080 = vpack.c.b16 %v854, %v853
          %v1081 = vpack.c.b16 %v856, %v855
          %v1082 = vpack.c.b16 %v858, %v857
          %v1083 = vpack.c.b16 %v860, %v859
          %v1084 = vpack.c.b16 %v862, %v861
          %v1085 = vpack.c.b16 %v864, %v863
          %v1086 = vpack.c.b16 %v866, %v865
          %v1087 = vpack.c.b16 %v868, %v867
          %v1088 = vpack.c.b16 %v870, %v869
          %v1089 = vpack.c.b16 %v872, %v871
          %v1090 = vpack.c.b16 %v874, %v873
          %v1091 = vpack.c.b16 %v876, %v875
          %v1092 = vpack.c.b16 %v878, %v877
          %v1093 = vpack.c.b16 %v880, %v879
          %v1094 = vpack.c.b16 %v882, %v881
          %v1095 = vpack.c.b16 %v884, %v883
          %v1096 = vpack.c.b16 %v886, %v885
          %v1097 = vpack.c.b16 %v888, %v887
          %v1098 = vpack.c.b16 %v890, %v889
          %v1099 = vpack.c.b16 %v892, %v891
          %v1100 = vpack.c.b16 %v894, %v893
          %v1101 = vpack.c.b16 %v896, %v895
          %v1102 = vpack.c.b16 %v898, %v897
          %v1103 = vpack.c.b16 %v900, %v899
          %v1104 = vpack.c.b16 %v902, %v901
          %v1105 = vpack.c.b16 %v904, %v903
          %v1106 = vpack.c.b16 %v906, %v905
          %v1107 = vpack.c.b16 %v908, %v907
          %v1108 = vpack.c.b16 %v910, %v909
          %v1109 = vpack.c.b16 %v912, %v911
          %v1110 = vpack.c.b16 %v914, %v913
          %v1111 = vpack.c.b16 %v916, %v915
          %v1112 = vpack.c.b16 %v918, %v917
          %v1113 = vpack.c.b16 %v920, %v919
          %v1114 = vpack.c.b16 %v922, %v921
          %v1115 = vpack.c.b16 %v924, %v923
          %v1116 = vpack.c.b16 %v926, %v925
          %v1117 = vpack.c.b16 %v928, %v927
          %v1118 = vpack.c.b16 %v930, %v929
          %v1119 = vpack.c.b16 %v932, %v931
          %v1120 = vpack.c.b16 %v934, %v933
          %v1121 = vpack.c.b16 %v936, %v935
          %v1122 = vpack.c.b16 %v938, %v937
          %v1123 = vpack.c.b16 %v940, %v939
          %v1124 = vpack.c.b16 %v942, %v941
          %v1125 = vpack.c.b16 %v944, %v943
          %v1126 = vpack.c.b16 %v946, %v945
          %v1127 = vpack.c.b16 %v948, %v947
          %v1128 = vpack.c.b16 %v950, %v949
          %v1129 = vpack.c.b16 %v952, %v951
          %v1130 = vpack.c.b16 %v954, %v953
          %v1131 = vpack.c.b16 %v956, %v955
          %v1132 = vpack.c.b16 %v958, %v957
          %v1133 = vpack.c.b16 %v960, %v959
          %v1134 = vpack.c.b16 %v962, %v961
          %v1135 = vpack.c.b16 %v964, %v963
          %v1136 = vpack.c.b16 %v966, %v965
          %v1137 = vpack.c.b16 %v968, %v967
          %v1138 = vpack.c.b16 %v970, %v969
          %v1139 = vpack.c.b16 %v972, %v971
          %v1140 = vpack.c.b16 %v974, %v973
          %v1141 = vpack.c.b16 %v976, %v975
          %v1142 = vpack.c.b16 %v978, %v977
          %v1143 = vpack.c.b16 %v980, %v979
          %v1144 = vpack.c.b16 %v982, %v981
          %v1145 = vpack.c.b16 %v984, %v983
          %v1146 = vpack.c.b16 %v986, %v985
          %v1147 = vpack.c.b16 %v988, %v987
          %v1148 = vpack.c.b16 %v990, %v989
          %v1149 = vpack.c.b16 %v992, %v991
          %v1150 = vpack.c.b16 %v994, %v993
          %v1151 = vpack.c.b16 %v996, %v995
          %v1152 = vpack.c.b16 %v998, %v997
          %v1153 = vpack.c.b16 %v1000, %v999
          %v1154 = vpack.c.b16 %v1002, %v1001
          %v1155 = vpack.c.b16 %v1004, %v1003
          %v1156 = vpack.c.b16 %v1006, %v1005
          %v1157 = vpack.c.b16 %v1008, %v1007
          %v1158 = vpack.c.b16 %v1010, %v1009
          %v1159 = vpack.c.b16 %v1012, %v1011
          %v1160 = vpack.c.b16 %v1014, %v1013
          %v1161 = vpack.c.b16 %v1016, %v1015
          %v1162 = vpack.c.b16 %v1018, %v1017
          %v1163 = vpack.c.b16 %v1020, %v1019
          %v1164 = vpack.c.b16 %v1022, %v1021
          %v1165 = vpack.c.b16 %v1024, %v1023
          %v1166 = vpack.c.b16 %v1026, %v1025
          %v1167 = vpack.c.b16 %v1028, %v1027
          %v1168 = vpack.c.b16 %v1030, %v1029
          %v1169 = vpack.c.b16 %v1032, %v1031
          %v1170 = vpack.c.b16 %v1034, %v1033
          %v1171 = vpack.c.b16 %v1036, %v1035
          %v1172 = vpack.c.b16 %v1038, %v1037
          %v1173 = vpack.c.b16 %v1040, %v1039
          %v1174 = vpack.c.b16 %v1042, %v1041
          %v1175 = vpack.c.b16 %v1044, %v1043
          %v1176 = vpack.c.b16 %v1046, %v1045
          %v1177 = vpack.c.b16 %v1048, %v1047
          %v1178 = vpack.c.b16 %v1050, %v1049
          %v1183 = vunpack.c.l.b16 %v535
          %v1184 = vunpack.c.l.b16 %v536
          %v1185 = vunpack.c.l.b16 %v537
          %v1186 = vunpack.c.l.b16 %v538
          %v1187 = vpack.c.b16 %v1184, %v1183
          %v1188 = vpack.c.b16 %v1186, %v1185
          %vm1191 = vcmask 261120
          %v1193 = vsel %vm1191, %v1051, 0
          %v1196 = vsel %vm1191, %v1052, 0
          %v1199 = vsel %vm1191, %v1053, 0
          %v1202 = vsel %vm1191, %v1054, 0
          %v1205 = vsel %vm1191, %v1055, 0
          %v1208 = vsel %vm1191, %v1056, 0
          %v1211 = vsel %vm1191, %v1057, 0
          %v1214 = vsel %vm1191, %v1058, 0
          %v1217 = vsel %vm1191, %v1059, 0
          %v1220 = vsel %vm1191, %v1060, 0
          %v1223 = vsel %vm1191, %v1061, 0
          %v1226 = vsel %vm1191, %v1062, 0
          %v1229 = vsel %vm1191, %v1063, 0
          %v1232 = vsel %vm1191, %v1064, 0
          %v1235 = vsel %vm1191, %v1065, 0
          %v1238 = vsel %vm1191, %v1066, 0
          %v1241 = vsel %vm1191, %v1067, 0
          %v1244 = vsel %vm1191, %v1068, 0
          %v1247 = vsel %vm1191, %v1069, 0
          %v1250 = vsel %vm1191, %v1070, 0
          %v1253 = vsel %vm1191, %v1071, 0
          %v1256 = vsel %vm1191, %v1072, 0
          %v1259 = vsel %vm1191, %v1073, 0
          %v1262 = vsel %vm1191, %v1074, 0
          %v1265 = vsel %vm1191, %v1075, 0
          %v1268 = vsel %vm1191, %v1076, 0
          %v1271 = vsel %vm1191, %v1077, 0
          %v1274 = vsel %vm1191, %v1078, 0
          %v1277 = vsel %vm1191, %v1079, 0
          %v1280 = vsel %vm1191, %v1080, 0
          %v1283 = vsel %vm1191, %v1081, 0
          %v1286 = vsel %vm1191, %v1082, 0
          %v1289 = vsel %vm1191, %v1083, 0
          %v1292 = vsel %vm1191, %v1084, 0
          %v1295 = vsel %vm1191, %v1085, 0
          %v1298 = vsel %vm1191, %v1086, 0
          %v1301 = vsel %vm1191, %v1087, 0
          %v1304 = vsel %vm1191, %v1088, 0
          %v1307 = vsel %vm1191, %v1089, 0
          %v1310 = vsel %vm1191, %v1090, 0
          %v1313 = vsel %vm1191, %v1091, 0
          %v1316 = vsel %vm1191, %v1092, 0
          %v1319 = vsel %vm1191, %v1093, 0
          %v1322 = vsel %vm1191, %v1094, 0
          %v1325 = vsel %vm1191, %v1095, 0
          %v1328 = vsel %vm1191, %v1096, 0
          %v1331 = vsel %vm1191, %v1097, 0
          %v1334 = vsel %vm1191, %v1098, 0
          %v1337 = vsel %vm1191, %v1099, 0
          %v1340 = vsel %vm1191, %v1100, 0
          %v1343 = vsel %vm1191, %v1101, 0
          %v1346 = vsel %vm1191, %v1102, 0
          %v1349 = vsel %vm1191, %v1103, 0
          %v1352 = vsel %vm1191, %v1104, 0
          %v1355 = vsel %vm1191, %v1105, 0
          %v1358 = vsel %vm1191, %v1106, 0
          %v1361 = vsel %vm1191, %v1107, 0
          %v1364 = vsel %vm1191, %v1108, 0
          %v1367 = vsel %vm1191, %v1109, 0
          %v1370 = vsel %vm1191, %v1110, 0
          %v1373 = vsel %vm1191, %v1111, 0
          %v1376 = vsel %vm1191, %v1112, 0
          %v1379 = vsel %vm1191, %v1113, 0
          %v1382 = vsel %vm1191, %v1114, 0
          %v1385 = vsel %vm1191, %v1115, 0
          %v1388 = vsel %vm1191, %v1116, 0
          %v1391 = vsel %vm1191, %v1117, 0
          %v1394 = vsel %vm1191, %v1118, 0
          %v1397 = vsel %vm1191, %v1119, 0
          %v1400 = vsel %vm1191, %v1120, 0
          %v1403 = vsel %vm1191, %v1121, 0
          %v1406 = vsel %vm1191, %v1122, 0
          %v1409 = vsel %vm1191, %v1123, 0
          %v1412 = vsel %vm1191, %v1124, 0
          %v1415 = vsel %vm1191, %v1125, 0
          %v1418 = vsel %vm1191, %v1126, 0
          %v1421 = vsel %vm1191, %v1127, 0
          %v1424 = vsel %vm1191, %v1128, 0
          %v1427 = vsel %vm1191, %v1129, 0
          %v1430 = vsel %vm1191, %v1130, 0
          %v1433 = vsel %vm1191, %v1131, 0
          %v1436 = vsel %vm1191, %v1132, 0
          %v1439 = vsel %vm1191, %v1133, 0
          %v1442 = vsel %vm1191, %v1134, 0
          %v1445 = vsel %vm1191, %v1135, 0
          %v1448 = vsel %vm1191, %v1136, 0
          %v1451 = vsel %vm1191, %v1137, 0
          %v1454 = vsel %vm1191, %v1138, 0
          %v1457 = vsel %vm1191, %v1139, 0
          %v1460 = vsel %vm1191, %v1140, 0
          %v1463 = vsel %vm1191, %v1141, 0
          %v1466 = vsel %vm1191, %v1142, 0
          %v1469 = vsel %vm1191, %v1143, 0
          %v1472 = vsel %vm1191, %v1144, 0
          %v1475 = vsel %vm1191, %v1145, 0
          %v1478 = vsel %vm1191, %v1146, 0
          %v1481 = vsel %vm1191, %v1147, 0
          %v1484 = vsel %vm1191, %v1148, 0
          %v1487 = vsel %vm1191, %v1149, 0
          %v1490 = vsel %vm1191, %v1150, 0
          %v1493 = vsel %vm1191, %v1151, 0
          %v1496 = vsel %vm1191, %v1152, 0
          %v1499 = vsel %vm1191, %v1153, 0
          %v1502 = vsel %vm1191, %v1154, 0
          %v1505 = vsel %vm1191, %v1155, 0
          %v1508 = vsel %vm1191, %v1156, 0
          %v1511 = vsel %vm1191, %v1157, 0
          %v1514 = vsel %vm1191, %v1158, 0
          %v1517 = vsel %vm1191, %v1159, 0
          %v1520 = vsel %vm1191, %v1160, 0
          %v1523 = vsel %vm1191, %v1161, 0
          %v1526 = vsel %vm1191, %v1162, 0
          %v1529 = vsel %vm1191, %v1163, 0
          %v1532 = vsel %vm1191, %v1164, 0
          %v1535 = vsel %vm1191, %v1165, 0
          %v1538 = vsel %vm1191, %v1166, 0
          %v1541 = vsel %vm1191, %v1167, 0
          %v1544 = vsel %vm1191, %v1168, 0
          %v1547 = vsel %vm1191, %v1169, 0
          %v1550 = vsel %vm1191, %v1170, 0
          %v1553 = vsel %vm1191, %v1171, 0
          %v1556 = vsel %vm1191, %v1172, 0
          %v1559 = vsel %vm1191, %v1173, 0
          %v1562 = vsel %vm1191, %v1174, 0
          %v1565 = vsel %vm1191, %v1175, 0
          %v1568 = vsel %vm1191, %v1176, 0
          %v1571 = vsel %vm1191, %v1177, 0
          %v1574 = vsel %vm1191, %v1178, 0
          %1576 = vmatprep.subr.bf16.mxu0 0
          %1577 = vmatpush1.bf16.msra.mxu0 0
          %1578 = vmatprep.subr.bf16.mxu0 0
          %1579 = vmatpush1.bf16.msra.mxu0 0
          %1580 = vmatprep.subr.bf16.mxu0 0
          %1581 = vmatpush1.bf16.msra.mxu0 0
          %1582 = vmatprep.subr.bf16.mxu0 0
          %1583 = vmatpush1.bf16.msra.mxu0 0
          %1584 = vmatprep.subr.bf16.mxu0 0
          %1585 = vmatpush1.bf16.msra.mxu0 0
          %1586 = vmatprep.subr.bf16.mxu0 0
          %1587 = vmatpush1.bf16.msra.mxu0 0
          %1588 = vmatprep.subr.bf16.mxu0 0
          %1589 = vmatpush1.bf16.msra.mxu0 %v1188
          %1590 = vmatprep.subr.bf16.mxu0 0
          %1591 = vmatpush1.bf16.msra.mxu0 %v1187
          %1592 = vmatprep.subr.bf16.mxu0 0
          %1593 = vmatpush2.bf16.msra.mxu0 0
          %1594 = vmatprep.subr.bf16.mxu0 0
          %1595 = vmatpush2.bf16.msra.mxu0 0
          %1596 = vmatprep.subr.bf16.mxu0 0
          %1597 = vmatpush2.bf16.msra.mxu0 0
          %1598 = vmatprep.subr.bf16.mxu0 0
          %1599 = vmatpush2.bf16.msra.mxu0 0
          %1600 = vmatprep.subr.bf16.mxu0 0
          %1601 = vmatpush2.bf16.msra.mxu0 0
          %1602 = vmatprep.subr.bf16.mxu0 0
          %1603 = vmatpush2.bf16.msra.mxu0 0
          %1604 = vmatprep.subr.bf16.mxu0 0
          %1605 = vmatpush2.bf16.msra.mxu0 0
          %1606 = vmatprep.subr.bf16.mxu0 0
          %1607 = vmatpush2.bf16.msra.mxu0 0
          %1608 = vmatprep.mubr.bf16.mxu0 0
          %1609 = vmatmul.mubr.bf16.gmra.mxu0 %v1193
          %v1610 = vpop.f32.mrf.mxu0
          %v1611 = vadd.f32 0.0, %v1610
          %v1612 = vpop.f32.mrf.mxu0
          %v1613 = vpop.f32.mrf.mxu0
          %v1614 = vadd.f32 0.0, %v1613
          %v1615 = vpop.f32.mrf.mxu0
          %1616 = vmatprep.mubr.bf16.mxu0 0
          %1617 = vmatmul.mubr.bf16.gmra.mxu0 %v1196
          %v1618 = vpop.f32.mrf.mxu0
          %v1619 = vadd.f32 0.0, %v1618
          %v1620 = vpop.f32.mrf.mxu0
          %v1621 = vpop.f32.mrf.mxu0
          %v1622 = vadd.f32 0.0, %v1621
          %v1623 = vpop.f32.mrf.mxu0
          %1624 = vmatprep.mubr.bf16.mxu0 0
          %1625 = vmatmul.mubr.bf16.gmra.mxu0 %v1199
          %v1626 = vpop.f32.mrf.mxu0
          %v1627 = vadd.f32 0.0, %v1626
          %v1628 = vpop.f32.mrf.mxu0
          %v1629 = vpop.f32.mrf.mxu0
          %v1630 = vadd.f32 0.0, %v1629
          %v1631 = vpop.f32.mrf.mxu0
          %1632 = vmatprep.mubr.bf16.mxu0 0
          %1633 = vmatmul.mubr.bf16.gmra.mxu0 %v1202
          %v1634 = vpop.f32.mrf.mxu0
          %v1635 = vadd.f32 0.0, %v1634
          %v1636 = vpop.f32.mrf.mxu0
          %v1637 = vpop.f32.mrf.mxu0
          %v1638 = vadd.f32 0.0, %v1637
          %v1639 = vpop.f32.mrf.mxu0
          %1640 = vmatprep.mubr.bf16.mxu0 0
          %1641 = vmatmul.mubr.bf16.gmra.mxu0 %v1205
          %v1642 = vpop.f32.mrf.mxu0
          %v1643 = vadd.f32 0.0, %v1642
          %v1644 = vpop.f32.mrf.mxu0
          %v1645 = vpop.f32.mrf.mxu0
          %v1646 = vadd.f32 0.0, %v1645
          %v1647 = vpop.f32.mrf.mxu0
          %1648 = vmatprep.mubr.bf16.mxu0 0
          %1649 = vmatmul.mubr.bf16.gmra.mxu0 %v1208
          %v1650 = vpop.f32.mrf.mxu0
          %v1651 = vadd.f32 0.0, %v1650
          %v1652 = vpop.f32.mrf.mxu0
          %v1653 = vpop.f32.mrf.mxu0
          %v1654 = vadd.f32 0.0, %v1653
          %v1655 = vpop.f32.mrf.mxu0
          %1656 = vmatprep.mubr.bf16.mxu0 0
          %1657 = vmatmul.mubr.bf16.gmra.mxu0 %v1211
          %v1658 = vpop.f32.mrf.mxu0
          %v1659 = vadd.f32 0.0, %v1658
          %v1660 = vpop.f32.mrf.mxu0
          %v1661 = vpop.f32.mrf.mxu0
          %v1662 = vadd.f32 0.0, %v1661
          %v1663 = vpop.f32.mrf.mxu0
          %1664 = vmatprep.mubr.bf16.mxu0 0
          %1665 = vmatmul.mubr.bf16.gmra.mxu0 %v1214
          %v1666 = vpop.f32.mrf.mxu0
          %v1667 = vadd.f32 0.0, %v1666
          %v1668 = vpop.f32.mrf.mxu0
          %v1669 = vpop.f32.mrf.mxu0
          %v1670 = vadd.f32 0.0, %v1669
          %v1671 = vpop.f32.mrf.mxu0
          %1672 = vmatprep.mubr.bf16.mxu0 0
          %1673 = vmatmul.mubr.bf16.gmra.mxu0 %v1217
          %v1674 = vpop.f32.mrf.mxu0
          %v1675 = vadd.f32 0.0, %v1674
          %v1676 = vpop.f32.mrf.mxu0
          %v1677 = vpop.f32.mrf.mxu0
          %v1678 = vadd.f32 0.0, %v1677
          %v1679 = vpop.f32.mrf.mxu0
          %1680 = vmatprep.mubr.bf16.mxu0 0
          %1681 = vmatmul.mubr.bf16.gmra.mxu0 %v1220
          %v1682 = vpop.f32.mrf.mxu0
          %v1683 = vadd.f32 0.0, %v1682
          %v1684 = vpop.f32.mrf.mxu0
          %v1685 = vpop.f32.mrf.mxu0
          %v1686 = vadd.f32 0.0, %v1685
          %v1687 = vpop.f32.mrf.mxu0
          %1688 = vmatprep.mubr.bf16.mxu0 0
          %1689 = vmatmul.mubr.bf16.gmra.mxu0 %v1223
          %v1690 = vpop.f32.mrf.mxu0
          %v1691 = vadd.f32 0.0, %v1690
          %v1692 = vpop.f32.mrf.mxu0
          %v1693 = vpop.f32.mrf.mxu0
          %v1694 = vadd.f32 0.0, %v1693
          %v1695 = vpop.f32.mrf.mxu0
          %1696 = vmatprep.mubr.bf16.mxu0 0
          %1697 = vmatmul.mubr.bf16.gmra.mxu0 %v1226
          %v1698 = vpop.f32.mrf.mxu0
          %v1699 = vadd.f32 0.0, %v1698
          %v1700 = vpop.f32.mrf.mxu0
          %v1701 = vpop.f32.mrf.mxu0
          %v1702 = vadd.f32 0.0, %v1701
          %v1703 = vpop.f32.mrf.mxu0
          %1704 = vmatprep.mubr.bf16.mxu0 0
          %1705 = vmatmul.mubr.bf16.gmra.mxu0 %v1229
          %v1706 = vpop.f32.mrf.mxu0
          %v1707 = vadd.f32 0.0, %v1706
          %v1708 = vpop.f32.mrf.mxu0
          %v1709 = vpop.f32.mrf.mxu0
          %v1710 = vadd.f32 0.0, %v1709
          %v1711 = vpop.f32.mrf.mxu0
          %1712 = vmatprep.mubr.bf16.mxu0 0
          %1713 = vmatmul.mubr.bf16.gmra.mxu0 %v1232
          %v1714 = vpop.f32.mrf.mxu0
          %v1715 = vadd.f32 0.0, %v1714
          %v1716 = vpop.f32.mrf.mxu0
          %v1717 = vpop.f32.mrf.mxu0
          %v1718 = vadd.f32 0.0, %v1717
          %v1719 = vpop.f32.mrf.mxu0
          %1720 = vmatprep.mubr.bf16.mxu0 0
          %1721 = vmatmul.mubr.bf16.gmra.mxu0 %v1235
          %v1722 = vpop.f32.mrf.mxu0
          %v1723 = vadd.f32 0.0, %v1722
          %v1724 = vpop.f32.mrf.mxu0
          %v1725 = vpop.f32.mrf.mxu0
          %v1726 = vadd.f32 0.0, %v1725
          %v1727 = vpop.f32.mrf.mxu0
          %1728 = vmatprep.mubr.bf16.mxu0 0
          %1729 = vmatmul.mubr.bf16.gmra.mxu0 %v1238
          %v1730 = vpop.f32.mrf.mxu0
          %v1731 = vadd.f32 0.0, %v1730
          %v1732 = vpop.f32.mrf.mxu0
          %v1733 = vpop.f32.mrf.mxu0
          %v1734 = vadd.f32 0.0, %v1733
          %v1735 = vpop.f32.mrf.mxu0
          %1736 = vmatprep.mubr.bf16.mxu0 0
          %1737 = vmatmul.mubr.bf16.gmra.mxu0 %v1241
          %v1738 = vpop.f32.mrf.mxu0
          %v1739 = vadd.f32 0.0, %v1738
          %v1740 = vpop.f32.mrf.mxu0
          %v1741 = vpop.f32.mrf.mxu0
          %v1742 = vadd.f32 0.0, %v1741
          %v1743 = vpop.f32.mrf.mxu0
          %1744 = vmatprep.mubr.bf16.mxu0 0
          %1745 = vmatmul.mubr.bf16.gmra.mxu0 %v1244
          %v1746 = vpop.f32.mrf.mxu0
          %v1747 = vadd.f32 0.0, %v1746
          %v1748 = vpop.f32.mrf.mxu0
          %v1749 = vpop.f32.mrf.mxu0
          %v1750 = vadd.f32 0.0, %v1749
          %v1751 = vpop.f32.mrf.mxu0
          %1752 = vmatprep.mubr.bf16.mxu0 0
          %1753 = vmatmul.mubr.bf16.gmra.mxu0 %v1247
          %v1754 = vpop.f32.mrf.mxu0
          %v1755 = vadd.f32 0.0, %v1754
          %v1756 = vpop.f32.mrf.mxu0
          %v1757 = vpop.f32.mrf.mxu0
          %v1758 = vadd.f32 0.0, %v1757
          %v1759 = vpop.f32.mrf.mxu0
          %1760 = vmatprep.mubr.bf16.mxu0 0
          %1761 = vmatmul.mubr.bf16.gmra.mxu0 %v1250
          %v1762 = vpop.f32.mrf.mxu0
          %v1763 = vadd.f32 0.0, %v1762
          %v1764 = vpop.f32.mrf.mxu0
          %v1765 = vpop.f32.mrf.mxu0
          %v1766 = vadd.f32 0.0, %v1765
          %v1767 = vpop.f32.mrf.mxu0
          %1768 = vmatprep.mubr.bf16.mxu0 0
          %1769 = vmatmul.mubr.bf16.gmra.mxu0 %v1253
          %v1770 = vpop.f32.mrf.mxu0
          %v1771 = vadd.f32 0.0, %v1770
          %v1772 = vpop.f32.mrf.mxu0
          %v1773 = vpop.f32.mrf.mxu0
          %v1774 = vadd.f32 0.0, %v1773
          %v1775 = vpop.f32.mrf.mxu0
          %1776 = vmatprep.mubr.bf16.mxu0 0
          %1777 = vmatmul.mubr.bf16.gmra.mxu0 %v1256
          %v1778 = vpop.f32.mrf.mxu0
          %v1779 = vadd.f32 0.0, %v1778
          %v1780 = vpop.f32.mrf.mxu0
          %v1781 = vpop.f32.mrf.mxu0
          %v1782 = vadd.f32 0.0, %v1781
          %v1783 = vpop.f32.mrf.mxu0
          %1784 = vmatprep.mubr.bf16.mxu0 0
          %1785 = vmatmul.mubr.bf16.gmra.mxu0 %v1259
          %v1786 = vpop.f32.mrf.mxu0
          %v1787 = vadd.f32 0.0, %v1786
          %v1788 = vpop.f32.mrf.mxu0
          %v1789 = vpop.f32.mrf.mxu0
          %v1790 = vadd.f32 0.0, %v1789
          %v1791 = vpop.f32.mrf.mxu0
          %1792 = vmatprep.mubr.bf16.mxu0 0
          %1793 = vmatmul.mubr.bf16.gmra.mxu0 %v1262
          %v1794 = vpop.f32.mrf.mxu0
          %v1795 = vadd.f32 0.0, %v1794
          %v1796 = vpop.f32.mrf.mxu0
          %v1797 = vpop.f32.mrf.mxu0
          %v1798 = vadd.f32 0.0, %v1797
          %v1799 = vpop.f32.mrf.mxu0
          %1800 = vmatprep.mubr.bf16.mxu0 0
          %1801 = vmatmul.mubr.bf16.gmra.mxu0 %v1265
          %v1802 = vpop.f32.mrf.mxu0
          %v1803 = vadd.f32 0.0, %v1802
          %v1804 = vpop.f32.mrf.mxu0
          %v1805 = vpop.f32.mrf.mxu0
          %v1806 = vadd.f32 0.0, %v1805
          %v1807 = vpop.f32.mrf.mxu0
          %1808 = vmatprep.mubr.bf16.mxu0 0
          %1809 = vmatmul.mubr.bf16.gmra.mxu0 %v1268
          %v1810 = vpop.f32.mrf.mxu0
          %v1811 = vadd.f32 0.0, %v1810
          %v1812 = vpop.f32.mrf.mxu0
          %v1813 = vpop.f32.mrf.mxu0
          %v1814 = vadd.f32 0.0, %v1813
          %v1815 = vpop.f32.mrf.mxu0
          %1816 = vmatprep.mubr.bf16.mxu0 0
          %1817 = vmatmul.mubr.bf16.gmra.mxu0 %v1271
          %v1818 = vpop.f32.mrf.mxu0
          %v1819 = vadd.f32 0.0, %v1818
          %v1820 = vpop.f32.mrf.mxu0
          %v1821 = vpop.f32.mrf.mxu0
          %v1822 = vadd.f32 0.0, %v1821
          %v1823 = vpop.f32.mrf.mxu0
          %1824 = vmatprep.mubr.bf16.mxu0 0
          %1825 = vmatmul.mubr.bf16.gmra.mxu0 %v1274
          %v1826 = vpop.f32.mrf.mxu0
          %v1827 = vadd.f32 0.0, %v1826
          %v1828 = vpop.f32.mrf.mxu0
          %v1829 = vpop.f32.mrf.mxu0
          %v1830 = vadd.f32 0.0, %v1829
          %v1831 = vpop.f32.mrf.mxu0
          %1832 = vmatprep.mubr.bf16.mxu0 0
          %1833 = vmatmul.mubr.bf16.gmra.mxu0 %v1277
          %v1834 = vpop.f32.mrf.mxu0
          %v1835 = vadd.f32 0.0, %v1834
          %v1836 = vpop.f32.mrf.mxu0
          %v1837 = vpop.f32.mrf.mxu0
          %v1838 = vadd.f32 0.0, %v1837
          %v1839 = vpop.f32.mrf.mxu0
          %1840 = vmatprep.mubr.bf16.mxu0 0
          %1841 = vmatmul.mubr.bf16.gmra.mxu0 %v1280
          %v1842 = vpop.f32.mrf.mxu0
          %v1843 = vadd.f32 0.0, %v1842
          %v1844 = vpop.f32.mrf.mxu0
          %v1845 = vpop.f32.mrf.mxu0
          %v1846 = vadd.f32 0.0, %v1845
          %v1847 = vpop.f32.mrf.mxu0
          %1848 = vmatprep.mubr.bf16.mxu0 0
          %1849 = vmatmul.mubr.bf16.gmra.mxu0 %v1283
          %v1850 = vpop.f32.mrf.mxu0
          %v1851 = vadd.f32 0.0, %v1850
          %v1852 = vpop.f32.mrf.mxu0
          %v1853 = vpop.f32.mrf.mxu0
          %v1854 = vadd.f32 0.0, %v1853
          %v1855 = vpop.f32.mrf.mxu0
          %1856 = vmatprep.mubr.bf16.mxu0 0
          %1857 = vmatmul.mubr.bf16.gmra.mxu0 %v1286
          %v1858 = vpop.f32.mrf.mxu0
          %v1859 = vadd.f32 0.0, %v1858
          %v1860 = vpop.f32.mrf.mxu0
          %v1861 = vpop.f32.mrf.mxu0
          %v1862 = vadd.f32 0.0, %v1861
          %v1863 = vpop.f32.mrf.mxu0
          %1864 = vmatprep.mubr.bf16.mxu0 0
          %1865 = vmatmul.mubr.bf16.gmra.mxu0 %v1289
          %v1866 = vpop.f32.mrf.mxu0
          %v1867 = vadd.f32 0.0, %v1866
          %v1868 = vpop.f32.mrf.mxu0
          %v1869 = vpop.f32.mrf.mxu0
          %v1870 = vadd.f32 0.0, %v1869
          %v1871 = vpop.f32.mrf.mxu0
          %1872 = vmatprep.mubr.bf16.mxu0 0
          %1873 = vmatmul.mubr.bf16.gmra.mxu0 %v1292
          %v1874 = vpop.f32.mrf.mxu0
          %v1875 = vadd.f32 0.0, %v1874
          %v1876 = vpop.f32.mrf.mxu0
          %v1877 = vpop.f32.mrf.mxu0
          %v1878 = vadd.f32 0.0, %v1877
          %v1879 = vpop.f32.mrf.mxu0
          %1880 = vmatprep.mubr.bf16.mxu0 0
          %1881 = vmatmul.mubr.bf16.gmra.mxu0 %v1295
          %v1882 = vpop.f32.mrf.mxu0
          %v1883 = vadd.f32 0.0, %v1882
          %v1884 = vpop.f32.mrf.mxu0
          %v1885 = vpop.f32.mrf.mxu0
          %v1886 = vadd.f32 0.0, %v1885
          %v1887 = vpop.f32.mrf.mxu0
          %1888 = vmatprep.mubr.bf16.mxu0 0
          %1889 = vmatmul.mubr.bf16.gmra.mxu0 %v1298
          %v1890 = vpop.f32.mrf.mxu0
          %v1891 = vadd.f32 0.0, %v1890
          %v1892 = vpop.f32.mrf.mxu0
          %v1893 = vpop.f32.mrf.mxu0
          %v1894 = vadd.f32 0.0, %v1893
          %v1895 = vpop.f32.mrf.mxu0
          %1896 = vmatprep.mubr.bf16.mxu0 0
          %1897 = vmatmul.mubr.bf16.gmra.mxu0 %v1301
          %v1898 = vpop.f32.mrf.mxu0
          %v1899 = vadd.f32 0.0, %v1898
          %v1900 = vpop.f32.mrf.mxu0
          %v1901 = vpop.f32.mrf.mxu0
          %v1902 = vadd.f32 0.0, %v1901
          %v1903 = vpop.f32.mrf.mxu0
          %1904 = vmatprep.mubr.bf16.mxu0 0
          %1905 = vmatmul.mubr.bf16.gmra.mxu0 %v1304
          %v1906 = vpop.f32.mrf.mxu0
          %v1907 = vadd.f32 0.0, %v1906
          %v1908 = vpop.f32.mrf.mxu0
          %v1909 = vpop.f32.mrf.mxu0
          %v1910 = vadd.f32 0.0, %v1909
          %v1911 = vpop.f32.mrf.mxu0
          %1912 = vmatprep.mubr.bf16.mxu0 0
          %1913 = vmatmul.mubr.bf16.gmra.mxu0 %v1307
          %v1914 = vpop.f32.mrf.mxu0
          %v1915 = vadd.f32 0.0, %v1914
          %v1916 = vpop.f32.mrf.mxu0
          %v1917 = vpop.f32.mrf.mxu0
          %v1918 = vadd.f32 0.0, %v1917
          %v1919 = vpop.f32.mrf.mxu0
          %1920 = vmatprep.mubr.bf16.mxu0 0
          %1921 = vmatmul.mubr.bf16.gmra.mxu0 %v1310
          %v1922 = vpop.f32.mrf.mxu0
          %v1923 = vadd.f32 0.0, %v1922
          %v1924 = vpop.f32.mrf.mxu0
          %v1925 = vpop.f32.mrf.mxu0
          %v1926 = vadd.f32 0.0, %v1925
          %v1927 = vpop.f32.mrf.mxu0
          %1928 = vmatprep.mubr.bf16.mxu0 0
          %1929 = vmatmul.mubr.bf16.gmra.mxu0 %v1313
          %v1930 = vpop.f32.mrf.mxu0
          %v1931 = vadd.f32 0.0, %v1930
          %v1932 = vpop.f32.mrf.mxu0
          %v1933 = vpop.f32.mrf.mxu0
          %v1934 = vadd.f32 0.0, %v1933
          %v1935 = vpop.f32.mrf.mxu0
          %1936 = vmatprep.mubr.bf16.mxu0 0
          %1937 = vmatmul.mubr.bf16.gmra.mxu0 %v1316
          %v1938 = vpop.f32.mrf.mxu0
          %v1939 = vadd.f32 0.0, %v1938
          %v1940 = vpop.f32.mrf.mxu0
          %v1941 = vpop.f32.mrf.mxu0
          %v1942 = vadd.f32 0.0, %v1941
          %v1943 = vpop.f32.mrf.mxu0
          %1944 = vmatprep.mubr.bf16.mxu0 0
          %1945 = vmatmul.mubr.bf16.gmra.mxu0 %v1319
          %v1946 = vpop.f32.mrf.mxu0
          %v1947 = vadd.f32 0.0, %v1946
          %v1948 = vpop.f32.mrf.mxu0
          %v1949 = vpop.f32.mrf.mxu0
          %v1950 = vadd.f32 0.0, %v1949
          %v1951 = vpop.f32.mrf.mxu0
          %1952 = vmatprep.mubr.bf16.mxu0 0
          %1953 = vmatmul.mubr.bf16.gmra.mxu0 %v1322
          %v1954 = vpop.f32.mrf.mxu0
          %v1955 = vadd.f32 0.0, %v1954
          %v1956 = vpop.f32.mrf.mxu0
          %v1957 = vpop.f32.mrf.mxu0
          %v1958 = vadd.f32 0.0, %v1957
          %v1959 = vpop.f32.mrf.mxu0
          %1960 = vmatprep.mubr.bf16.mxu0 0
          %1961 = vmatmul.mubr.bf16.gmra.mxu0 %v1325
          %v1962 = vpop.f32.mrf.mxu0
          %v1963 = vadd.f32 0.0, %v1962
          %v1964 = vpop.f32.mrf.mxu0
          %v1965 = vpop.f32.mrf.mxu0
          %v1966 = vadd.f32 0.0, %v1965
          %v1967 = vpop.f32.mrf.mxu0
          %1968 = vmatprep.mubr.bf16.mxu0 0
          %1969 = vmatmul.mubr.bf16.gmra.mxu0 %v1328
          %v1970 = vpop.f32.mrf.mxu0
          %v1971 = vadd.f32 0.0, %v1970
          %v1972 = vpop.f32.mrf.mxu0
          %v1973 = vpop.f32.mrf.mxu0
          %v1974 = vadd.f32 0.0, %v1973
          %v1975 = vpop.f32.mrf.mxu0
          %1976 = vmatprep.mubr.bf16.mxu0 0
          %1977 = vmatmul.mubr.bf16.gmra.mxu0 %v1331
          %v1978 = vpop.f32.mrf.mxu0
          %v1979 = vadd.f32 0.0, %v1978
          %v1980 = vpop.f32.mrf.mxu0
          %v1981 = vpop.f32.mrf.mxu0
          %v1982 = vadd.f32 0.0, %v1981
          %v1983 = vpop.f32.mrf.mxu0
          %1984 = vmatprep.mubr.bf16.mxu0 0
          %1985 = vmatmul.mubr.bf16.gmra.mxu0 %v1334
          %v1986 = vpop.f32.mrf.mxu0
          %v1987 = vadd.f32 0.0, %v1986
          %v1988 = vpop.f32.mrf.mxu0
          %v1989 = vpop.f32.mrf.mxu0
          %v1990 = vadd.f32 0.0, %v1989
          %v1991 = vpop.f32.mrf.mxu0
          %1992 = vmatprep.mubr.bf16.mxu0 0
          %1993 = vmatmul.mubr.bf16.gmra.mxu0 %v1337
          %v1994 = vpop.f32.mrf.mxu0
          %v1995 = vadd.f32 0.0, %v1994
          %v1996 = vpop.f32.mrf.mxu0
          %v1997 = vpop.f32.mrf.mxu0
          %v1998 = vadd.f32 0.0, %v1997
          %v1999 = vpop.f32.mrf.mxu0
          %2000 = vmatprep.mubr.bf16.mxu0 0
          %2001 = vmatmul.mubr.bf16.gmra.mxu0 %v1340
          %v2002 = vpop.f32.mrf.mxu0
          %v2003 = vadd.f32 0.0, %v2002
          %v2004 = vpop.f32.mrf.mxu0
          %v2005 = vpop.f32.mrf.mxu0
          %v2006 = vadd.f32 0.0, %v2005
          %v2007 = vpop.f32.mrf.mxu0
          %2008 = vmatprep.mubr.bf16.mxu0 0
          %2009 = vmatmul.mubr.bf16.gmra.mxu0 %v1343
          %v2010 = vpop.f32.mrf.mxu0
          %v2011 = vadd.f32 0.0, %v2010
          %v2012 = vpop.f32.mrf.mxu0
          %v2013 = vpop.f32.mrf.mxu0
          %v2014 = vadd.f32 0.0, %v2013
          %v2015 = vpop.f32.mrf.mxu0
          %2016 = vmatprep.mubr.bf16.mxu0 0
          %2017 = vmatmul.mubr.bf16.gmra.mxu0 %v1346
          %v2018 = vpop.f32.mrf.mxu0
          %v2019 = vadd.f32 0.0, %v2018
          %v2020 = vpop.f32.mrf.mxu0
          %v2021 = vpop.f32.mrf.mxu0
          %v2022 = vadd.f32 0.0, %v2021
          %v2023 = vpop.f32.mrf.mxu0
          %2024 = vmatprep.mubr.bf16.mxu0 0
          %2025 = vmatmul.mubr.bf16.gmra.mxu0 %v1349
          %v2026 = vpop.f32.mrf.mxu0
          %v2027 = vadd.f32 0.0, %v2026
          %v2028 = vpop.f32.mrf.mxu0
          %v2029 = vpop.f32.mrf.mxu0
          %v2030 = vadd.f32 0.0, %v2029
          %v2031 = vpop.f32.mrf.mxu0
          %2032 = vmatprep.mubr.bf16.mxu0 0
          %2033 = vmatmul.mubr.bf16.gmra.mxu0 %v1352
          %v2034 = vpop.f32.mrf.mxu0
          %v2035 = vadd.f32 0.0, %v2034
          %v2036 = vpop.f32.mrf.mxu0
          %v2037 = vpop.f32.mrf.mxu0
          %v2038 = vadd.f32 0.0, %v2037
          %v2039 = vpop.f32.mrf.mxu0
          %2040 = vmatprep.mubr.bf16.mxu0 0
          %2041 = vmatmul.mubr.bf16.gmra.mxu0 %v1355
          %v2042 = vpop.f32.mrf.mxu0
          %v2043 = vadd.f32 0.0, %v2042
          %v2044 = vpop.f32.mrf.mxu0
          %v2045 = vpop.f32.mrf.mxu0
          %v2046 = vadd.f32 0.0, %v2045
          %v2047 = vpop.f32.mrf.mxu0
          %2048 = vmatprep.mubr.bf16.mxu0 0
          %2049 = vmatmul.mubr.bf16.gmra.mxu0 %v1358
          %v2050 = vpop.f32.mrf.mxu0
          %v2051 = vadd.f32 0.0, %v2050
          %v2052 = vpop.f32.mrf.mxu0
          %v2053 = vpop.f32.mrf.mxu0
          %v2054 = vadd.f32 0.0, %v2053
          %v2055 = vpop.f32.mrf.mxu0
          %2056 = vmatprep.mubr.bf16.mxu0 0
          %2057 = vmatmul.mubr.bf16.gmra.mxu0 %v1361
          %v2058 = vpop.f32.mrf.mxu0
          %v2059 = vadd.f32 0.0, %v2058
          %v2060 = vpop.f32.mrf.mxu0
          %v2061 = vpop.f32.mrf.mxu0
          %v2062 = vadd.f32 0.0, %v2061
          %v2063 = vpop.f32.mrf.mxu0
          %2064 = vmatprep.mubr.bf16.mxu0 0
          %2065 = vmatmul.mubr.bf16.gmra.mxu0 %v1364
          %v2066 = vpop.f32.mrf.mxu0
          %v2067 = vadd.f32 0.0, %v2066
          %v2068 = vpop.f32.mrf.mxu0
          %v2069 = vpop.f32.mrf.mxu0
          %v2070 = vadd.f32 0.0, %v2069
          %v2071 = vpop.f32.mrf.mxu0
          %2072 = vmatprep.mubr.bf16.mxu0 0
          %2073 = vmatmul.mubr.bf16.gmra.mxu0 %v1367
          %v2074 = vpop.f32.mrf.mxu0
          %v2075 = vadd.f32 0.0, %v2074
          %v2076 = vpop.f32.mrf.mxu0
          %v2077 = vpop.f32.mrf.mxu0
          %v2078 = vadd.f32 0.0, %v2077
          %v2079 = vpop.f32.mrf.mxu0
          %2080 = vmatprep.mubr.bf16.mxu0 0
          %2081 = vmatmul.mubr.bf16.gmra.mxu0 %v1370
          %v2082 = vpop.f32.mrf.mxu0
          %v2083 = vadd.f32 0.0, %v2082
          %v2084 = vpop.f32.mrf.mxu0
          %v2085 = vpop.f32.mrf.mxu0
          %v2086 = vadd.f32 0.0, %v2085
          %v2087 = vpop.f32.mrf.mxu0
          %2088 = vmatprep.mubr.bf16.mxu0 0
          %2089 = vmatmul.mubr.bf16.gmra.mxu0 %v1373
          %v2090 = vpop.f32.mrf.mxu0
          %v2091 = vadd.f32 0.0, %v2090
          %v2092 = vpop.f32.mrf.mxu0
          %v2093 = vpop.f32.mrf.mxu0
          %v2094 = vadd.f32 0.0, %v2093
          %v2095 = vpop.f32.mrf.mxu0
          %2096 = vmatprep.mubr.bf16.mxu0 0
          %2097 = vmatmul.mubr.bf16.gmra.mxu0 %v1376
          %v2098 = vpop.f32.mrf.mxu0
          %v2099 = vadd.f32 0.0, %v2098
          %v2100 = vpop.f32.mrf.mxu0
          %v2101 = vpop.f32.mrf.mxu0
          %v2102 = vadd.f32 0.0, %v2101
          %v2103 = vpop.f32.mrf.mxu0
          %2104 = vmatprep.mubr.bf16.mxu0 0
          %2105 = vmatmul.mubr.bf16.gmra.mxu0 %v1379
          %v2106 = vpop.f32.mrf.mxu0
          %v2107 = vadd.f32 0.0, %v2106
          %v2108 = vpop.f32.mrf.mxu0
          %v2109 = vpop.f32.mrf.mxu0
          %v2110 = vadd.f32 0.0, %v2109
          %v2111 = vpop.f32.mrf.mxu0
          %2112 = vmatprep.mubr.bf16.mxu0 0
          %2113 = vmatmul.mubr.bf16.gmra.mxu0 %v1382
          %v2114 = vpop.f32.mrf.mxu0
          %v2115 = vadd.f32 0.0, %v2114
          %v2116 = vpop.f32.mrf.mxu0
          %v2117 = vpop.f32.mrf.mxu0
          %v2118 = vadd.f32 0.0, %v2117
          %v2119 = vpop.f32.mrf.mxu0
          %2120 = vmatprep.mubr.bf16.mxu0 0
          %2121 = vmatmul.mubr.bf16.gmra.mxu0 %v1385
          %v2122 = vpop.f32.mrf.mxu0
          %v2123 = vadd.f32 0.0, %v2122
          %v2124 = vpop.f32.mrf.mxu0
          %v2125 = vpop.f32.mrf.mxu0
          %v2126 = vadd.f32 0.0, %v2125
          %v2127 = vpop.f32.mrf.mxu0
          %2128 = vmatprep.mubr.bf16.mxu0 0
          %2129 = vmatmul.mubr.bf16.gmra.mxu0 %v1388
          %v2130 = vpop.f32.mrf.mxu0
          %v2131 = vadd.f32 0.0, %v2130
          %v2132 = vpop.f32.mrf.mxu0
          %v2133 = vpop.f32.mrf.mxu0
          %v2134 = vadd.f32 0.0, %v2133
          %v2135 = vpop.f32.mrf.mxu0
          %2136 = vmatprep.mubr.bf16.mxu0 0
          %2137 = vmatmul.mubr.bf16.gmra.mxu0 %v1391
          %v2138 = vpop.f32.mrf.mxu0
          %v2139 = vadd.f32 0.0, %v2138
          %v2140 = vpop.f32.mrf.mxu0
          %v2141 = vpop.f32.mrf.mxu0
          %v2142 = vadd.f32 0.0, %v2141
          %v2143 = vpop.f32.mrf.mxu0
          %2144 = vmatprep.mubr.bf16.mxu0 0
          %2145 = vmatmul.mubr.bf16.gmra.mxu0 %v1394
          %v2146 = vpop.f32.mrf.mxu0
          %v2147 = vadd.f32 0.0, %v2146
          %v2148 = vpop.f32.mrf.mxu0
          %v2149 = vpop.f32.mrf.mxu0
          %v2150 = vadd.f32 0.0, %v2149
          %v2151 = vpop.f32.mrf.mxu0
          %2152 = vmatprep.mubr.bf16.mxu0 0
          %2153 = vmatmul.mubr.bf16.gmra.mxu0 %v1397
          %v2154 = vpop.f32.mrf.mxu0
          %v2155 = vadd.f32 0.0, %v2154
          %v2156 = vpop.f32.mrf.mxu0
          %v2157 = vpop.f32.mrf.mxu0
          %v2158 = vadd.f32 0.0, %v2157
          %v2159 = vpop.f32.mrf.mxu0
          %2160 = vmatprep.mubr.bf16.mxu0 0
          %2161 = vmatmul.mubr.bf16.gmra.mxu0 %v1400
          %v2162 = vpop.f32.mrf.mxu0
          %v2163 = vadd.f32 0.0, %v2162
          %v2164 = vpop.f32.mrf.mxu0
          %v2165 = vpop.f32.mrf.mxu0
          %v2166 = vadd.f32 0.0, %v2165
          %v2167 = vpop.f32.mrf.mxu0
          %2168 = vmatprep.mubr.bf16.mxu0 0
          %2169 = vmatmul.mubr.bf16.gmra.mxu0 %v1403
          %v2170 = vpop.f32.mrf.mxu0
          %v2171 = vadd.f32 0.0, %v2170
          %v2172 = vpop.f32.mrf.mxu0
          %v2173 = vpop.f32.mrf.mxu0
          %v2174 = vadd.f32 0.0, %v2173
          %v2175 = vpop.f32.mrf.mxu0
          %2176 = vmatprep.mubr.bf16.mxu0 0
          %2177 = vmatmul.mubr.bf16.gmra.mxu0 %v1406
          %v2178 = vpop.f32.mrf.mxu0
          %v2179 = vadd.f32 0.0, %v2178
          %v2180 = vpop.f32.mrf.mxu0
          %v2181 = vpop.f32.mrf.mxu0
          %v2182 = vadd.f32 0.0, %v2181
          %v2183 = vpop.f32.mrf.mxu0
          %2184 = vmatprep.mubr.bf16.mxu0 0
          %2185 = vmatmul.mubr.bf16.gmra.mxu0 %v1409
          %v2186 = vpop.f32.mrf.mxu0
          %v2187 = vadd.f32 0.0, %v2186
          %v2188 = vpop.f32.mrf.mxu0
          %v2189 = vpop.f32.mrf.mxu0
          %v2190 = vadd.f32 0.0, %v2189
          %v2191 = vpop.f32.mrf.mxu0
          %2192 = vmatprep.mubr.bf16.mxu0 0
          %2193 = vmatmul.mubr.bf16.gmra.mxu0 %v1412
          %v2194 = vpop.f32.mrf.mxu0
          %v2195 = vadd.f32 0.0, %v2194
          %v2196 = vpop.f32.mrf.mxu0
          %v2197 = vpop.f32.mrf.mxu0
          %v2198 = vadd.f32 0.0, %v2197
          %v2199 = vpop.f32.mrf.mxu0
          %2200 = vmatprep.mubr.bf16.mxu0 0
          %2201 = vmatmul.mubr.bf16.gmra.mxu0 %v1415
          %v2202 = vpop.f32.mrf.mxu0
          %v2203 = vadd.f32 0.0, %v2202
          %v2204 = vpop.f32.mrf.mxu0
          %v2205 = vpop.f32.mrf.mxu0
          %v2206 = vadd.f32 0.0, %v2205
          %v2207 = vpop.f32.mrf.mxu0
          %2208 = vmatprep.mubr.bf16.mxu0 0
          %2209 = vmatmul.mubr.bf16.gmra.mxu0 %v1418
          %v2210 = vpop.f32.mrf.mxu0
          %v2211 = vadd.f32 0.0, %v2210
          %v2212 = vpop.f32.mrf.mxu0
          %v2213 = vpop.f32.mrf.mxu0
          %v2214 = vadd.f32 0.0, %v2213
          %v2215 = vpop.f32.mrf.mxu0
          %2216 = vmatprep.mubr.bf16.mxu0 0
          %2217 = vmatmul.mubr.bf16.gmra.mxu0 %v1421
          %v2218 = vpop.f32.mrf.mxu0
          %v2219 = vadd.f32 0.0, %v2218
          %v2220 = vpop.f32.mrf.mxu0
          %v2221 = vpop.f32.mrf.mxu0
          %v2222 = vadd.f32 0.0, %v2221
          %v2223 = vpop.f32.mrf.mxu0
          %2224 = vmatprep.mubr.bf16.mxu0 0
          %2225 = vmatmul.mubr.bf16.gmra.mxu0 %v1424
          %v2226 = vpop.f32.mrf.mxu0
          %v2227 = vadd.f32 0.0, %v2226
          %v2228 = vpop.f32.mrf.mxu0
          %v2229 = vpop.f32.mrf.mxu0
          %v2230 = vadd.f32 0.0, %v2229
          %v2231 = vpop.f32.mrf.mxu0
          %2232 = vmatprep.mubr.bf16.mxu0 0
          %2233 = vmatmul.mubr.bf16.gmra.mxu0 %v1427
          %v2234 = vpop.f32.mrf.mxu0
          %v2235 = vadd.f32 0.0, %v2234
          %v2236 = vpop.f32.mrf.mxu0
          %v2237 = vpop.f32.mrf.mxu0
          %v2238 = vadd.f32 0.0, %v2237
          %v2239 = vpop.f32.mrf.mxu0
          %2240 = vmatprep.mubr.bf16.mxu0 0
          %2241 = vmatmul.mubr.bf16.gmra.mxu0 %v1430
          %v2242 = vpop.f32.mrf.mxu0
          %v2243 = vadd.f32 0.0, %v2242
          %v2244 = vpop.f32.mrf.mxu0
          %v2245 = vpop.f32.mrf.mxu0
          %v2246 = vadd.f32 0.0, %v2245
          %v2247 = vpop.f32.mrf.mxu0
          %2248 = vmatprep.mubr.bf16.mxu0 0
          %2249 = vmatmul.mubr.bf16.gmra.mxu0 %v1433
          %v2250 = vpop.f32.mrf.mxu0
          %v2251 = vadd.f32 0.0, %v2250
          %v2252 = vpop.f32.mrf.mxu0
          %v2253 = vpop.f32.mrf.mxu0
          %v2254 = vadd.f32 0.0, %v2253
          %v2255 = vpop.f32.mrf.mxu0
          %2256 = vmatprep.mubr.bf16.mxu0 0
          %2257 = vmatmul.mubr.bf16.gmra.mxu0 %v1436
          %v2258 = vpop.f32.mrf.mxu0
          %v2259 = vadd.f32 0.0, %v2258
          %v2260 = vpop.f32.mrf.mxu0
          %v2261 = vpop.f32.mrf.mxu0
          %v2262 = vadd.f32 0.0, %v2261
          %v2263 = vpop.f32.mrf.mxu0
          %2264 = vmatprep.mubr.bf16.mxu0 0
          %2265 = vmatmul.mubr.bf16.gmra.mxu0 %v1439
          %v2266 = vpop.f32.mrf.mxu0
          %v2267 = vadd.f32 0.0, %v2266
          %v2268 = vpop.f32.mrf.mxu0
          %v2269 = vpop.f32.mrf.mxu0
          %v2270 = vadd.f32 0.0, %v2269
          %v2271 = vpop.f32.mrf.mxu0
          %2272 = vmatprep.mubr.bf16.mxu0 0
          %2273 = vmatmul.mubr.bf16.gmra.mxu0 %v1442
          %v2274 = vpop.f32.mrf.mxu0
          %v2275 = vadd.f32 0.0, %v2274
          %v2276 = vpop.f32.mrf.mxu0
          %v2277 = vpop.f32.mrf.mxu0
          %v2278 = vadd.f32 0.0, %v2277
          %v2279 = vpop.f32.mrf.mxu0
          %2280 = vmatprep.mubr.bf16.mxu0 0
          %2281 = vmatmul.mubr.bf16.gmra.mxu0 %v1445
          %v2282 = vpop.f32.mrf.mxu0
          %v2283 = vadd.f32 0.0, %v2282
          %v2284 = vpop.f32.mrf.mxu0
          %v2285 = vpop.f32.mrf.mxu0
          %v2286 = vadd.f32 0.0, %v2285
          %v2287 = vpop.f32.mrf.mxu0
          %2288 = vmatprep.mubr.bf16.mxu0 0
          %2289 = vmatmul.mubr.bf16.gmra.mxu0 %v1448
          %v2290 = vpop.f32.mrf.mxu0
          %v2291 = vadd.f32 0.0, %v2290
          %v2292 = vpop.f32.mrf.mxu0
          %v2293 = vpop.f32.mrf.mxu0
          %v2294 = vadd.f32 0.0, %v2293
          %v2295 = vpop.f32.mrf.mxu0
          %2296 = vmatprep.mubr.bf16.mxu0 0
          %2297 = vmatmul.mubr.bf16.gmra.mxu0 %v1451
          %v2298 = vpop.f32.mrf.mxu0
          %v2299 = vadd.f32 0.0, %v2298
          %v2300 = vpop.f32.mrf.mxu0
          %v2301 = vpop.f32.mrf.mxu0
          %v2302 = vadd.f32 0.0, %v2301
          %v2303 = vpop.f32.mrf.mxu0
          %2304 = vmatprep.mubr.bf16.mxu0 0
          %2305 = vmatmul.mubr.bf16.gmra.mxu0 %v1454
          %v2306 = vpop.f32.mrf.mxu0
          %v2307 = vadd.f32 0.0, %v2306
          %v2308 = vpop.f32.mrf.mxu0
          %v2309 = vpop.f32.mrf.mxu0
          %v2310 = vadd.f32 0.0, %v2309
          %v2311 = vpop.f32.mrf.mxu0
          %2312 = vmatprep.mubr.bf16.mxu0 0
          %2313 = vmatmul.mubr.bf16.gmra.mxu0 %v1457
          %v2314 = vpop.f32.mrf.mxu0
          %v2315 = vadd.f32 0.0, %v2314
          %v2316 = vpop.f32.mrf.mxu0
          %v2317 = vpop.f32.mrf.mxu0
          %v2318 = vadd.f32 0.0, %v2317
          %v2319 = vpop.f32.mrf.mxu0
          %2320 = vmatprep.mubr.bf16.mxu0 0
          %2321 = vmatmul.mubr.bf16.gmra.mxu0 %v1460
          %v2322 = vpop.f32.mrf.mxu0
          %v2323 = vadd.f32 0.0, %v2322
          %v2324 = vpop.f32.mrf.mxu0
          %v2325 = vpop.f32.mrf.mxu0
          %v2326 = vadd.f32 0.0, %v2325
          %v2327 = vpop.f32.mrf.mxu0
          %2328 = vmatprep.mubr.bf16.mxu0 0
          %2329 = vmatmul.mubr.bf16.gmra.mxu0 %v1463
          %v2330 = vpop.f32.mrf.mxu0
          %v2331 = vadd.f32 0.0, %v2330
          %v2332 = vpop.f32.mrf.mxu0
          %v2333 = vpop.f32.mrf.mxu0
          %v2334 = vadd.f32 0.0, %v2333
          %v2335 = vpop.f32.mrf.mxu0
          %2336 = vmatprep.mubr.bf16.mxu0 0
          %2337 = vmatmul.mubr.bf16.gmra.mxu0 %v1466
          %v2338 = vpop.f32.mrf.mxu0
          %v2339 = vadd.f32 0.0, %v2338
          %v2340 = vpop.f32.mrf.mxu0
          %v2341 = vpop.f32.mrf.mxu0
          %v2342 = vadd.f32 0.0, %v2341
          %v2343 = vpop.f32.mrf.mxu0
          %2344 = vmatprep.mubr.bf16.mxu0 0
          %2345 = vmatmul.mubr.bf16.gmra.mxu0 %v1469
          %v2346 = vpop.f32.mrf.mxu0
          %v2347 = vadd.f32 0.0, %v2346
          %v2348 = vpop.f32.mrf.mxu0
          %v2349 = vpop.f32.mrf.mxu0
          %v2350 = vadd.f32 0.0, %v2349
          %v2351 = vpop.f32.mrf.mxu0
          %2352 = vmatprep.mubr.bf16.mxu0 0
          %2353 = vmatmul.mubr.bf16.gmra.mxu0 %v1472
          %v2354 = vpop.f32.mrf.mxu0
          %v2355 = vadd.f32 0.0, %v2354
          %v2356 = vpop.f32.mrf.mxu0
          %v2357 = vpop.f32.mrf.mxu0
          %v2358 = vadd.f32 0.0, %v2357
          %v2359 = vpop.f32.mrf.mxu0
          %2360 = vmatprep.mubr.bf16.mxu0 0
          %2361 = vmatmul.mubr.bf16.gmra.mxu0 %v1475
          %v2362 = vpop.f32.mrf.mxu0
          %v2363 = vadd.f32 0.0, %v2362
          %v2364 = vpop.f32.mrf.mxu0
          %v2365 = vpop.f32.mrf.mxu0
          %v2366 = vadd.f32 0.0, %v2365
          %v2367 = vpop.f32.mrf.mxu0
          %2368 = vmatprep.mubr.bf16.mxu0 0
          %2369 = vmatmul.mubr.bf16.gmra.mxu0 %v1478
          %v2370 = vpop.f32.mrf.mxu0
          %v2371 = vadd.f32 0.0, %v2370
          %v2372 = vpop.f32.mrf.mxu0
          %v2373 = vpop.f32.mrf.mxu0
          %v2374 = vadd.f32 0.0, %v2373
          %v2375 = vpop.f32.mrf.mxu0
          %2376 = vmatprep.mubr.bf16.mxu0 0
          %2377 = vmatmul.mubr.bf16.gmra.mxu0 %v1481
          %v2378 = vpop.f32.mrf.mxu0
          %v2379 = vadd.f32 0.0, %v2378
          %v2380 = vpop.f32.mrf.mxu0
          %v2381 = vpop.f32.mrf.mxu0
          %v2382 = vadd.f32 0.0, %v2381
          %v2383 = vpop.f32.mrf.mxu0
          %2384 = vmatprep.mubr.bf16.mxu0 0
          %2385 = vmatmul.mubr.bf16.gmra.mxu0 %v1484
          %v2386 = vpop.f32.mrf.mxu0
          %v2387 = vadd.f32 0.0, %v2386
          %v2388 = vpop.f32.mrf.mxu0
          %v2389 = vpop.f32.mrf.mxu0
          %v2390 = vadd.f32 0.0, %v2389
          %v2391 = vpop.f32.mrf.mxu0
          %2392 = vmatprep.mubr.bf16.mxu0 0
          %2393 = vmatmul.mubr.bf16.gmra.mxu0 %v1487
          %v2394 = vpop.f32.mrf.mxu0
          %v2395 = vadd.f32 0.0, %v2394
          %v2396 = vpop.f32.mrf.mxu0
          %v2397 = vpop.f32.mrf.mxu0
          %v2398 = vadd.f32 0.0, %v2397
          %v2399 = vpop.f32.mrf.mxu0
          %2400 = vmatprep.mubr.bf16.mxu0 0
          %2401 = vmatmul.mubr.bf16.gmra.mxu0 %v1490
          %v2402 = vpop.f32.mrf.mxu0
          %v2403 = vadd.f32 0.0, %v2402
          %v2404 = vpop.f32.mrf.mxu0
          %v2405 = vpop.f32.mrf.mxu0
          %v2406 = vadd.f32 0.0, %v2405
          %v2407 = vpop.f32.mrf.mxu0
          %2408 = vmatprep.mubr.bf16.mxu0 0
          %2409 = vmatmul.mubr.bf16.gmra.mxu0 %v1493
          %v2410 = vpop.f32.mrf.mxu0
          %v2411 = vadd.f32 0.0, %v2410
          %v2412 = vpop.f32.mrf.mxu0
          %v2413 = vpop.f32.mrf.mxu0
          %v2414 = vadd.f32 0.0, %v2413
          %v2415 = vpop.f32.mrf.mxu0
          %2416 = vmatprep.mubr.bf16.mxu0 0
          %2417 = vmatmul.mubr.bf16.gmra.mxu0 %v1496
          %v2418 = vpop.f32.mrf.mxu0
          %v2419 = vadd.f32 0.0, %v2418
          %v2420 = vpop.f32.mrf.mxu0
          %v2421 = vpop.f32.mrf.mxu0
          %v2422 = vadd.f32 0.0, %v2421
          %v2423 = vpop.f32.mrf.mxu0
          %2424 = vmatprep.mubr.bf16.mxu0 0
          %2425 = vmatmul.mubr.bf16.gmra.mxu0 %v1499
          %v2426 = vpop.f32.mrf.mxu0
          %v2427 = vadd.f32 0.0, %v2426
          %v2428 = vpop.f32.mrf.mxu0
          %v2429 = vpop.f32.mrf.mxu0
          %v2430 = vadd.f32 0.0, %v2429
          %v2431 = vpop.f32.mrf.mxu0
          %2432 = vmatprep.mubr.bf16.mxu0 0
          %2433 = vmatmul.mubr.bf16.gmra.mxu0 %v1502
          %v2434 = vpop.f32.mrf.mxu0
          %v2435 = vadd.f32 0.0, %v2434
          %v2436 = vpop.f32.mrf.mxu0
          %v2437 = vpop.f32.mrf.mxu0
          %v2438 = vadd.f32 0.0, %v2437
          %v2439 = vpop.f32.mrf.mxu0
          %2440 = vmatprep.mubr.bf16.mxu0 0
          %2441 = vmatmul.mubr.bf16.gmra.mxu0 %v1505
          %v2442 = vpop.f32.mrf.mxu0
          %v2443 = vadd.f32 0.0, %v2442
          %v2444 = vpop.f32.mrf.mxu0
          %v2445 = vpop.f32.mrf.mxu0
          %v2446 = vadd.f32 0.0, %v2445
          %v2447 = vpop.f32.mrf.mxu0
          %2448 = vmatprep.mubr.bf16.mxu0 0
          %2449 = vmatmul.mubr.bf16.gmra.mxu0 %v1508
          %v2450 = vpop.f32.mrf.mxu0
          %v2451 = vadd.f32 0.0, %v2450
          %v2452 = vpop.f32.mrf.mxu0
          %v2453 = vpop.f32.mrf.mxu0
          %v2454 = vadd.f32 0.0, %v2453
          %v2455 = vpop.f32.mrf.mxu0
          %2456 = vmatprep.mubr.bf16.mxu0 0
          %2457 = vmatmul.mubr.bf16.gmra.mxu0 %v1511
          %v2458 = vpop.f32.mrf.mxu0
          %v2459 = vadd.f32 0.0, %v2458
          %v2460 = vpop.f32.mrf.mxu0
          %v2461 = vpop.f32.mrf.mxu0
          %v2462 = vadd.f32 0.0, %v2461
          %v2463 = vpop.f32.mrf.mxu0
          %2464 = vmatprep.mubr.bf16.mxu0 0
          %2465 = vmatmul.mubr.bf16.gmra.mxu0 %v1514
          %v2466 = vpop.f32.mrf.mxu0
          %v2467 = vadd.f32 0.0, %v2466
          %v2468 = vpop.f32.mrf.mxu0
          %v2469 = vpop.f32.mrf.mxu0
          %v2470 = vadd.f32 0.0, %v2469
          %v2471 = vpop.f32.mrf.mxu0
          %2472 = vmatprep.mubr.bf16.mxu0 0
          %2473 = vmatmul.mubr.bf16.gmra.mxu0 %v1517
          %v2474 = vpop.f32.mrf.mxu0
          %v2475 = vadd.f32 0.0, %v2474
          %v2476 = vpop.f32.mrf.mxu0
          %v2477 = vpop.f32.mrf.mxu0
          %v2478 = vadd.f32 0.0, %v2477
          %v2479 = vpop.f32.mrf.mxu0
          %2480 = vmatprep.mubr.bf16.mxu0 0
          %2481 = vmatmul.mubr.bf16.gmra.mxu0 %v1520
          %v2482 = vpop.f32.mrf.mxu0
          %v2483 = vadd.f32 0.0, %v2482
          %v2484 = vpop.f32.mrf.mxu0
          %v2485 = vpop.f32.mrf.mxu0
          %v2486 = vadd.f32 0.0, %v2485
          %v2487 = vpop.f32.mrf.mxu0
          %2488 = vmatprep.mubr.bf16.mxu0 0
          %2489 = vmatmul.mubr.bf16.gmra.mxu0 %v1523
          %v2490 = vpop.f32.mrf.mxu0
          %v2491 = vadd.f32 0.0, %v2490
          %v2492 = vpop.f32.mrf.mxu0
          %v2493 = vpop.f32.mrf.mxu0
          %v2494 = vadd.f32 0.0, %v2493
          %v2495 = vpop.f32.mrf.mxu0
          %2496 = vmatprep.mubr.bf16.mxu0 0
          %2497 = vmatmul.mubr.bf16.gmra.mxu0 %v1526
          %v2498 = vpop.f32.mrf.mxu0
          %v2499 = vadd.f32 0.0, %v2498
          %v2500 = vpop.f32.mrf.mxu0
          %v2501 = vpop.f32.mrf.mxu0
          %v2502 = vadd.f32 0.0, %v2501
          %v2503 = vpop.f32.mrf.mxu0
          %2504 = vmatprep.mubr.bf16.mxu0 0
          %2505 = vmatmul.mubr.bf16.gmra.mxu0 %v1529
          %v2506 = vpop.f32.mrf.mxu0
          %v2507 = vadd.f32 0.0, %v2506
          %v2508 = vpop.f32.mrf.mxu0
          %v2509 = vpop.f32.mrf.mxu0
          %v2510 = vadd.f32 0.0, %v2509
          %v2511 = vpop.f32.mrf.mxu0
          %2512 = vmatprep.mubr.bf16.mxu0 0
          %2513 = vmatmul.mubr.bf16.gmra.mxu0 %v1532
          %v2514 = vpop.f32.mrf.mxu0
          %v2515 = vadd.f32 0.0, %v2514
          %v2516 = vpop.f32.mrf.mxu0
          %v2517 = vpop.f32.mrf.mxu0
          %v2518 = vadd.f32 0.0, %v2517
          %v2519 = vpop.f32.mrf.mxu0
          %2520 = vmatprep.mubr.bf16.mxu0 0
          %2521 = vmatmul.mubr.bf16.gmra.mxu0 %v1535
          %v2522 = vpop.f32.mrf.mxu0
          %v2523 = vadd.f32 0.0, %v2522
          %v2524 = vpop.f32.mrf.mxu0
          %v2525 = vpop.f32.mrf.mxu0
          %v2526 = vadd.f32 0.0, %v2525
          %v2527 = vpop.f32.mrf.mxu0
          %2528 = vmatprep.mubr.bf16.mxu0 0
          %2529 = vmatmul.mubr.bf16.gmra.mxu0 %v1538
          %v2530 = vpop.f32.mrf.mxu0
          %v2531 = vadd.f32 0.0, %v2530
          %v2532 = vpop.f32.mrf.mxu0
          %v2533 = vpop.f32.mrf.mxu0
          %v2534 = vadd.f32 0.0, %v2533
          %v2535 = vpop.f32.mrf.mxu0
          %2536 = vmatprep.mubr.bf16.mxu0 0
          %2537 = vmatmul.mubr.bf16.gmra.mxu0 %v1541
          %v2538 = vpop.f32.mrf.mxu0
          %v2539 = vadd.f32 0.0, %v2538
          %v2540 = vpop.f32.mrf.mxu0
          %v2541 = vpop.f32.mrf.mxu0
          %v2542 = vadd.f32 0.0, %v2541
          %v2543 = vpop.f32.mrf.mxu0
          %2544 = vmatprep.mubr.bf16.mxu0 0
          %2545 = vmatmul.mubr.bf16.gmra.mxu0 %v1544
          %v2546 = vpop.f32.mrf.mxu0
          %v2547 = vadd.f32 0.0, %v2546
          %v2548 = vpop.f32.mrf.mxu0
          %v2549 = vpop.f32.mrf.mxu0
          %v2550 = vadd.f32 0.0, %v2549
          %v2551 = vpop.f32.mrf.mxu0
          %2552 = vmatprep.mubr.bf16.mxu0 0
          %2553 = vmatmul.mubr.bf16.gmra.mxu0 %v1547
          %v2554 = vpop.f32.mrf.mxu0
          %v2555 = vadd.f32 0.0, %v2554
          %v2556 = vpop.f32.mrf.mxu0
          %v2557 = vpop.f32.mrf.mxu0
          %v2558 = vadd.f32 0.0, %v2557
          %v2559 = vpop.f32.mrf.mxu0
          %2560 = vmatprep.mubr.bf16.mxu0 0
          %2561 = vmatmul.mubr.bf16.gmra.mxu0 %v1550
          %v2562 = vpop.f32.mrf.mxu0
          %v2563 = vadd.f32 0.0, %v2562
          %v2564 = vpop.f32.mrf.mxu0
          %v2565 = vpop.f32.mrf.mxu0
          %v2566 = vadd.f32 0.0, %v2565
          %v2567 = vpop.f32.mrf.mxu0
          %2568 = vmatprep.mubr.bf16.mxu0 0
          %2569 = vmatmul.mubr.bf16.gmra.mxu0 %v1553
          %v2570 = vpop.f32.mrf.mxu0
          %v2571 = vadd.f32 0.0, %v2570
          %v2572 = vpop.f32.mrf.mxu0
          %v2573 = vpop.f32.mrf.mxu0
          %v2574 = vadd.f32 0.0, %v2573
          %v2575 = vpop.f32.mrf.mxu0
          %2576 = vmatprep.mubr.bf16.mxu0 0
          %2577 = vmatmul.mubr.bf16.gmra.mxu0 %v1556
          %v2578 = vpop.f32.mrf.mxu0
          %v2579 = vadd.f32 0.0, %v2578
          %v2580 = vpop.f32.mrf.mxu0
          %v2581 = vpop.f32.mrf.mxu0
          %v2582 = vadd.f32 0.0, %v2581
          %v2583 = vpop.f32.mrf.mxu0
          %2584 = vmatprep.mubr.bf16.mxu0 0
          %2585 = vmatmul.mubr.bf16.gmra.mxu0 %v1559
          %v2586 = vpop.f32.mrf.mxu0
          %v2587 = vadd.f32 0.0, %v2586
          %v2588 = vpop.f32.mrf.mxu0
          %v2589 = vpop.f32.mrf.mxu0
          %v2590 = vadd.f32 0.0, %v2589
          %v2591 = vpop.f32.mrf.mxu0
          %2592 = vmatprep.mubr.bf16.mxu0 0
          %2593 = vmatmul.mubr.bf16.gmra.mxu0 %v1562
          %v2594 = vpop.f32.mrf.mxu0
          %v2595 = vadd.f32 0.0, %v2594
          %v2596 = vpop.f32.mrf.mxu0
          %v2597 = vpop.f32.mrf.mxu0
          %v2598 = vadd.f32 0.0, %v2597
          %v2599 = vpop.f32.mrf.mxu0
          %2600 = vmatprep.mubr.bf16.mxu0 0
          %2601 = vmatmul.mubr.bf16.gmra.mxu0 %v1565
          %v2602 = vpop.f32.mrf.mxu0
          %v2603 = vadd.f32 0.0, %v2602
          %v2604 = vpop.f32.mrf.mxu0
          %v2605 = vpop.f32.mrf.mxu0
          %v2606 = vadd.f32 0.0, %v2605
          %v2607 = vpop.f32.mrf.mxu0
          %2608 = vmatprep.mubr.bf16.mxu0 0
          %2609 = vmatmul.mubr.bf16.gmra.mxu0 %v1568
          %v2610 = vpop.f32.mrf.mxu0
          %v2611 = vadd.f32 0.0, %v2610
          %v2612 = vpop.f32.mrf.mxu0
          %v2613 = vpop.f32.mrf.mxu0
          %v2614 = vadd.f32 0.0, %v2613
          %v2615 = vpop.f32.mrf.mxu0
          %2616 = vmatprep.mubr.bf16.mxu0 0
          %2617 = vmatmul.mubr.bf16.gmra.mxu0 %v1571
          %v2618 = vpop.f32.mrf.mxu0
          %v2619 = vadd.f32 0.0, %v2618
          %v2620 = vpop.f32.mrf.mxu0
          %v2621 = vpop.f32.mrf.mxu0
          %v2622 = vadd.f32 0.0, %v2621
          %v2623 = vpop.f32.mrf.mxu0
          %2624 = vmatprep.mubr.bf16.mxu0 0
          %2625 = vmatmul.mubr.bf16.gmra.mxu0 %v1574
          %v2626 = vpop.f32.mrf.mxu0
          %v2627 = vadd.f32 0.0, %v2626
          %v2628 = vpop.f32.mrf.mxu0
          %v2629 = vpop.f32.mrf.mxu0
          %v2630 = vadd.f32 0.0, %v2629
          %v2631 = vpop.f32.mrf.mxu0
          %2632 = vdwg.mxu0
          %v2633 = vmax.f32 %v1611, 0.0
          %v2634 = vmax.f32 %v1614, 0.0
          %v2635 = vmax.f32 %v1619, 0.0
          %v2636 = vmax.f32 %v1622, 0.0
          %v2637 = vmax.f32 %v1627, 0.0
          %v2638 = vmax.f32 %v1630, 0.0
          %v2639 = vmax.f32 %v1635, 0.0
          %v2640 = vmax.f32 %v1638, 0.0
          %v2641 = vmax.f32 %v1643, 0.0
          %v2642 = vmax.f32 %v1646, 0.0
          %v2643 = vmax.f32 %v1651, 0.0
          %v2644 = vmax.f32 %v1654, 0.0
          %v2645 = vmax.f32 %v1659, 0.0
          %v2646 = vmax.f32 %v1662, 0.0
          %v2647 = vmax.f32 %v1667, 0.0
          %v2648 = vmax.f32 %v1670, 0.0
          %v2649 = vmax.f32 %v1675, 0.0
          %v2650 = vmax.f32 %v1678, 0.0
          %v2651 = vmax.f32 %v1683, 0.0
          %v2652 = vmax.f32 %v1686, 0.0
          %v2653 = vmax.f32 %v1691, 0.0
          %v2654 = vmax.f32 %v1694, 0.0
          %v2655 = vmax.f32 %v1699, 0.0
          %v2656 = vmax.f32 %v1702, 0.0
          %v2657 = vmax.f32 %v1707, 0.0
          %v2658 = vmax.f32 %v1710, 0.0
          %v2659 = vmax.f32 %v1715, 0.0
          %v2660 = vmax.f32 %v1718, 0.0
          %v2661 = vmax.f32 %v1723, 0.0
          %v2662 = vmax.f32 %v1726, 0.0
          %v2663 = vmax.f32 %v1731, 0.0
          %v2664 = vmax.f32 %v1734, 0.0
          %v2665 = vmax.f32 %v1739, 0.0
          %v2666 = vmax.f32 %v1742, 0.0
          %v2667 = vmax.f32 %v1747, 0.0
          %v2668 = vmax.f32 %v1750, 0.0
          %v2669 = vmax.f32 %v1755, 0.0
          %v2670 = vmax.f32 %v1758, 0.0
          %v2671 = vmax.f32 %v1763, 0.0
          %v2672 = vmax.f32 %v1766, 0.0
          %v2673 = vmax.f32 %v1771, 0.0
          %v2674 = vmax.f32 %v1774, 0.0
          %v2675 = vmax.f32 %v1779, 0.0
          %v2676 = vmax.f32 %v1782, 0.0
          %v2677 = vmax.f32 %v1787, 0.0
          %v2678 = vmax.f32 %v1790, 0.0
          %v2679 = vmax.f32 %v1795, 0.0
          %v2680 = vmax.f32 %v1798, 0.0
          %v2681 = vmax.f32 %v1803, 0.0
          %v2682 = vmax.f32 %v1806, 0.0
          %v2683 = vmax.f32 %v1811, 0.0
          %v2684 = vmax.f32 %v1814, 0.0
          %v2685 = vmax.f32 %v1819, 0.0
          %v2686 = vmax.f32 %v1822, 0.0
          %v2687 = vmax.f32 %v1827, 0.0
          %v2688 = vmax.f32 %v1830, 0.0
          %v2689 = vmax.f32 %v1835, 0.0
          %v2690 = vmax.f32 %v1838, 0.0
          %v2691 = vmax.f32 %v1843, 0.0
          %v2692 = vmax.f32 %v1846, 0.0
          %v2693 = vmax.f32 %v1851, 0.0
          %v2694 = vmax.f32 %v1854, 0.0
          %v2695 = vmax.f32 %v1859, 0.0
          %v2696 = vmax.f32 %v1862, 0.0
          %v2697 = vmax.f32 %v1867, 0.0
          %v2698 = vmax.f32 %v1870, 0.0
          %v2699 = vmax.f32 %v1875, 0.0
          %v2700 = vmax.f32 %v1878, 0.0
          %v2701 = vmax.f32 %v1883, 0.0
          %v2702 = vmax.f32 %v1886, 0.0
          %v2703 = vmax.f32 %v1891, 0.0
          %v2704 = vmax.f32 %v1894, 0.0
          %v2705 = vmax.f32 %v1899, 0.0
          %v2706 = vmax.f32 %v1902, 0.0
          %v2707 = vmax.f32 %v1907, 0.0
          %v2708 = vmax.f32 %v1910, 0.0
          %v2709 = vmax.f32 %v1915, 0.0
          %v2710 = vmax.f32 %v1918, 0.0
          %v2711 = vmax.f32 %v1923, 0.0
          %v2712 = vmax.f32 %v1926, 0.0
          %v2713 = vmax.f32 %v1931, 0.0
          %v2714 = vmax.f32 %v1934, 0.0
          %v2715 = vmax.f32 %v1939, 0.0
          %v2716 = vmax.f32 %v1942, 0.0
          %v2717 = vmax.f32 %v1947, 0.0
          %v2718 = vmax.f32 %v1950, 0.0
          %v2719 = vmax.f32 %v1955, 0.0
          %v2720 = vmax.f32 %v1958, 0.0
          %v2721 = vmax.f32 %v1963, 0.0
          %v2722 = vmax.f32 %v1966, 0.0
          %v2723 = vmax.f32 %v1971, 0.0
          %v2724 = vmax.f32 %v1974, 0.0
          %v2725 = vmax.f32 %v1979, 0.0
          %v2726 = vmax.f32 %v1982, 0.0
          %v2727 = vmax.f32 %v1987, 0.0
          %v2728 = vmax.f32 %v1990, 0.0
          %v2729 = vmax.f32 %v1995, 0.0
          %v2730 = vmax.f32 %v1998, 0.0
          %v2731 = vmax.f32 %v2003, 0.0
          %v2732 = vmax.f32 %v2006, 0.0
          %v2733 = vmax.f32 %v2011, 0.0
          %v2734 = vmax.f32 %v2014, 0.0
          %v2735 = vmax.f32 %v2019, 0.0
          %v2736 = vmax.f32 %v2022, 0.0
          %v2737 = vmax.f32 %v2027, 0.0
          %v2738 = vmax.f32 %v2030, 0.0
          %v2739 = vmax.f32 %v2035, 0.0
          %v2740 = vmax.f32 %v2038, 0.0
          %v2741 = vmax.f32 %v2043, 0.0
          %v2742 = vmax.f32 %v2046, 0.0
          %v2743 = vmax.f32 %v2051, 0.0
          %v2744 = vmax.f32 %v2054, 0.0
          %v2745 = vmax.f32 %v2059, 0.0
          %v2746 = vmax.f32 %v2062, 0.0
          %v2747 = vmax.f32 %v2067, 0.0
          %v2748 = vmax.f32 %v2070, 0.0
          %v2749 = vmax.f32 %v2075, 0.0
          %v2750 = vmax.f32 %v2078, 0.0
          %v2751 = vmax.f32 %v2083, 0.0
          %v2752 = vmax.f32 %v2086, 0.0
          %v2753 = vmax.f32 %v2091, 0.0
          %v2754 = vmax.f32 %v2094, 0.0
          %v2755 = vmax.f32 %v2099, 0.0
          %v2756 = vmax.f32 %v2102, 0.0
          %v2757 = vmax.f32 %v2107, 0.0
          %v2758 = vmax.f32 %v2110, 0.0
          %v2759 = vmax.f32 %v2115, 0.0
          %v2760 = vmax.f32 %v2118, 0.0
          %v2761 = vmax.f32 %v2123, 0.0
          %v2762 = vmax.f32 %v2126, 0.0
          %v2763 = vmax.f32 %v2131, 0.0
          %v2764 = vmax.f32 %v2134, 0.0
          %v2765 = vmax.f32 %v2139, 0.0
          %v2766 = vmax.f32 %v2142, 0.0
          %v2767 = vmax.f32 %v2147, 0.0
          %v2768 = vmax.f32 %v2150, 0.0
          %v2769 = vmax.f32 %v2155, 0.0
          %v2770 = vmax.f32 %v2158, 0.0
          %v2771 = vmax.f32 %v2163, 0.0
          %v2772 = vmax.f32 %v2166, 0.0
          %v2773 = vmax.f32 %v2171, 0.0
          %v2774 = vmax.f32 %v2174, 0.0
          %v2775 = vmax.f32 %v2179, 0.0
          %v2776 = vmax.f32 %v2182, 0.0
          %v2777 = vmax.f32 %v2187, 0.0
          %v2778 = vmax.f32 %v2190, 0.0
          %v2779 = vmax.f32 %v2195, 0.0
          %v2780 = vmax.f32 %v2198, 0.0
          %v2781 = vmax.f32 %v2203, 0.0
          %v2782 = vmax.f32 %v2206, 0.0
          %v2783 = vmax.f32 %v2211, 0.0
          %v2784 = vmax.f32 %v2214, 0.0
          %v2785 = vmax.f32 %v2219, 0.0
          %v2786 = vmax.f32 %v2222, 0.0
          %v2787 = vmax.f32 %v2227, 0.0
          %v2788 = vmax.f32 %v2230, 0.0
          %v2789 = vmax.f32 %v2235, 0.0
          %v2790 = vmax.f32 %v2238, 0.0
          %v2791 = vmax.f32 %v2243, 0.0
          %v2792 = vmax.f32 %v2246, 0.0
          %v2793 = vmax.f32 %v2251, 0.0
          %v2794 = vmax.f32 %v2254, 0.0
          %v2795 = vmax.f32 %v2259, 0.0
          %v2796 = vmax.f32 %v2262, 0.0
          %v2797 = vmax.f32 %v2267, 0.0
          %v2798 = vmax.f32 %v2270, 0.0
          %v2799 = vmax.f32 %v2275, 0.0
          %v2800 = vmax.f32 %v2278, 0.0
          %v2801 = vmax.f32 %v2283, 0.0
          %v2802 = vmax.f32 %v2286, 0.0
          %v2803 = vmax.f32 %v2291, 0.0
          %v2804 = vmax.f32 %v2294, 0.0
          %v2805 = vmax.f32 %v2299, 0.0
          %v2806 = vmax.f32 %v2302, 0.0
          %v2807 = vmax.f32 %v2307, 0.0
          %v2808 = vmax.f32 %v2310, 0.0
          %v2809 = vmax.f32 %v2315, 0.0
          %v2810 = vmax.f32 %v2318, 0.0
          %v2811 = vmax.f32 %v2323, 0.0
          %v2812 = vmax.f32 %v2326, 0.0
          %v2813 = vmax.f32 %v2331, 0.0
          %v2814 = vmax.f32 %v2334, 0.0
          %v2815 = vmax.f32 %v2339, 0.0
          %v2816 = vmax.f32 %v2342, 0.0
          %v2817 = vmax.f32 %v2347, 0.0
          %v2818 = vmax.f32 %v2350, 0.0
          %v2819 = vmax.f32 %v2355, 0.0
          %v2820 = vmax.f32 %v2358, 0.0
          %v2821 = vmax.f32 %v2363, 0.0
          %v2822 = vmax.f32 %v2366, 0.0
          %v2823 = vmax.f32 %v2371, 0.0
          %v2824 = vmax.f32 %v2374, 0.0
          %v2825 = vmax.f32 %v2379, 0.0
          %v2826 = vmax.f32 %v2382, 0.0
          %v2827 = vmax.f32 %v2387, 0.0
          %v2828 = vmax.f32 %v2390, 0.0
          %v2829 = vmax.f32 %v2395, 0.0
          %v2830 = vmax.f32 %v2398, 0.0
          %v2831 = vmax.f32 %v2403, 0.0
          %v2832 = vmax.f32 %v2406, 0.0
          %v2833 = vmax.f32 %v2411, 0.0
          %v2834 = vmax.f32 %v2414, 0.0
          %v2835 = vmax.f32 %v2419, 0.0
          %v2836 = vmax.f32 %v2422, 0.0
          %v2837 = vmax.f32 %v2427, 0.0
          %v2838 = vmax.f32 %v2430, 0.0
          %v2839 = vmax.f32 %v2435, 0.0
          %v2840 = vmax.f32 %v2438, 0.0
          %v2841 = vmax.f32 %v2443, 0.0
          %v2842 = vmax.f32 %v2446, 0.0
          %v2843 = vmax.f32 %v2451, 0.0
          %v2844 = vmax.f32 %v2454, 0.0
          %v2845 = vmax.f32 %v2459, 0.0
          %v2846 = vmax.f32 %v2462, 0.0
          %v2847 = vmax.f32 %v2467, 0.0
          %v2848 = vmax.f32 %v2470, 0.0
          %v2849 = vmax.f32 %v2475, 0.0
          %v2850 = vmax.f32 %v2478, 0.0
          %v2851 = vmax.f32 %v2483, 0.0
          %v2852 = vmax.f32 %v2486, 0.0
          %v2853 = vmax.f32 %v2491, 0.0
          %v2854 = vmax.f32 %v2494, 0.0
          %v2855 = vmax.f32 %v2499, 0.0
          %v2856 = vmax.f32 %v2502, 0.0
          %v2857 = vmax.f32 %v2507, 0.0
          %v2858 = vmax.f32 %v2510, 0.0
          %v2859 = vmax.f32 %v2515, 0.0
          %v2860 = vmax.f32 %v2518, 0.0
          %v2861 = vmax.f32 %v2523, 0.0
          %v2862 = vmax.f32 %v2526, 0.0
          %v2863 = vmax.f32 %v2531, 0.0
          %v2864 = vmax.f32 %v2534, 0.0
          %v2865 = vmax.f32 %v2539, 0.0
          %v2866 = vmax.f32 %v2542, 0.0
          %v2867 = vmax.f32 %v2547, 0.0
          %v2868 = vmax.f32 %v2550, 0.0
          %v2869 = vmax.f32 %v2555, 0.0
          %v2870 = vmax.f32 %v2558, 0.0
          %v2871 = vmax.f32 %v2563, 0.0
          %v2872 = vmax.f32 %v2566, 0.0
          %v2873 = vmax.f32 %v2571, 0.0
          %v2874 = vmax.f32 %v2574, 0.0
          %v2875 = vmax.f32 %v2579, 0.0
          %v2876 = vmax.f32 %v2582, 0.0
          %v2877 = vmax.f32 %v2587, 0.0
          %v2878 = vmax.f32 %v2590, 0.0
          %v2879 = vmax.f32 %v2595, 0.0
          %v2880 = vmax.f32 %v2598, 0.0
          %v2881 = vmax.f32 %v2603, 0.0
          %v2882 = vmax.f32 %v2606, 0.0
          %v2883 = vmax.f32 %v2611, 0.0
          %v2884 = vmax.f32 %v2614, 0.0
          %v2885 = vmax.f32 %v2619, 0.0
          %v2886 = vmax.f32 %v2622, 0.0
          %v2887 = vmax.f32 %v2627, 0.0
          %v2888 = vmax.f32 %v2630, 0.0
          %v2889 = vadd.f32 %v2633, %v2634
          %v2890 = vadd.f32 %v2889, %v2635
          %v2891 = vadd.f32 %v2890, %v2636
          %v2892 = vadd.f32 %v2891, %v2637
          %v2893 = vadd.f32 %v2892, %v2638
          %v2894 = vadd.f32 %v2893, %v2639
          %v2895 = vadd.f32 %v2894, %v2640
          %v2896 = vadd.f32 %v2895, %v2641
          %v2897 = vadd.f32 %v2896, %v2642
          %v2898 = vadd.f32 %v2897, %v2643
          %v2899 = vadd.f32 %v2898, %v2644
          %v2900 = vadd.f32 %v2899, %v2645
          %v2901 = vadd.f32 %v2900, %v2646
          %v2902 = vadd.f32 %v2901, %v2647
          %v2903 = vadd.f32 %v2902, %v2648
          %v2904 = vadd.f32 %v2903, %v2649
          %v2905 = vadd.f32 %v2904, %v2650
          %v2906 = vadd.f32 %v2905, %v2651
          %v2907 = vadd.f32 %v2906, %v2652
          %v2908 = vadd.f32 %v2907, %v2653
          %v2909 = vadd.f32 %v2908, %v2654
          %v2910 = vadd.f32 %v2909, %v2655
          %v2911 = vadd.f32 %v2910, %v2656
          %v2912 = vadd.f32 %v2911, %v2657
          %v2913 = vadd.f32 %v2912, %v2658
          %v2914 = vadd.f32 %v2913, %v2659
          %v2915 = vadd.f32 %v2914, %v2660
          %v2916 = vadd.f32 %v2915, %v2661
          %v2917 = vadd.f32 %v2916, %v2662
          %v2918 = vadd.f32 %v2917, %v2663
          %v2919 = vadd.f32 %v2918, %v2664
          %v2920 = vrot.slane %v2919, 4
          %v2921 = vadd.f32 %v2919, %v2920
          %v2922 = vrot.slane %v2921, 2
          %v2923 = vadd.f32 %v2921, %v2922
          %v2924 = vrot.slane %v2923, 1
          %v2925 = vadd.f32 %v2923, %v2924
          %v2926 = vadd.f32 %v2665, %v2666
          %v2927 = vadd.f32 %v2926, %v2667
          %v2928 = vadd.f32 %v2927, %v2668
          %v2929 = vadd.f32 %v2928, %v2669
          %v2930 = vadd.f32 %v2929, %v2670
          %v2931 = vadd.f32 %v2930, %v2671
          %v2932 = vadd.f32 %v2931, %v2672
          %v2933 = vadd.f32 %v2932, %v2673
          %v2934 = vadd.f32 %v2933, %v2674
          %v2935 = vadd.f32 %v2934, %v2675
          %v2936 = vadd.f32 %v2935, %v2676
          %v2937 = vadd.f32 %v2936, %v2677
          %v2938 = vadd.f32 %v2937, %v2678
          %v2939 = vadd.f32 %v2938, %v2679
          %v2940 = vadd.f32 %v2939, %v2680
          %v2941 = vadd.f32 %v2940, %v2681
          %v2942 = vadd.f32 %v2941, %v2682
          %v2943 = vadd.f32 %v2942, %v2683
          %v2944 = vadd.f32 %v2943, %v2684
          %v2945 = vadd.f32 %v2944, %v2685
          %v2946 = vadd.f32 %v2945, %v2686
          %v2947 = vadd.f32 %v2946, %v2687
          %v2948 = vadd.f32 %v2947, %v2688
          %v2949 = vadd.f32 %v2948, %v2689
          %v2950 = vadd.f32 %v2949, %v2690
          %v2951 = vadd.f32 %v2950, %v2691
          %v2952 = vadd.f32 %v2951, %v2692
          %v2953 = vadd.f32 %v2952, %v2693
          %v2954 = vadd.f32 %v2953, %v2694
          %v2955 = vadd.f32 %v2954, %v2695
          %v2956 = vadd.f32 %v2955, %v2696
          %v2957 = vrot.slane %v2956, 4
          %v2958 = vadd.f32 %v2956, %v2957
          %v2959 = vrot.slane %v2958, 2
          %v2960 = vadd.f32 %v2958, %v2959
          %v2961 = vrot.slane %v2960, 1
          %v2962 = vadd.f32 %v2960, %v2961
          %v2963 = vadd.f32 %v2697, %v2698
          %v2964 = vadd.f32 %v2963, %v2699
          %v2965 = vadd.f32 %v2964, %v2700
          %v2966 = vadd.f32 %v2965, %v2701
          %v2967 = vadd.f32 %v2966, %v2702
          %v2968 = vadd.f32 %v2967, %v2703
          %v2969 = vadd.f32 %v2968, %v2704
          %v2970 = vadd.f32 %v2969, %v2705
          %v2971 = vadd.f32 %v2970, %v2706
          %v2972 = vadd.f32 %v2971, %v2707
          %v2973 = vadd.f32 %v2972, %v2708
          %v2974 = vadd.f32 %v2973, %v2709
          %v2975 = vadd.f32 %v2974, %v2710
          %v2976 = vadd.f32 %v2975, %v2711
          %v2977 = vadd.f32 %v2976, %v2712
          %v2978 = vadd.f32 %v2977, %v2713
          %v2979 = vadd.f32 %v2978, %v2714
          %v2980 = vadd.f32 %v2979, %v2715
          %v2981 = vadd.f32 %v2980, %v2716
          %v2982 = vadd.f32 %v2981, %v2717
          %v2983 = vadd.f32 %v2982, %v2718
          %v2984 = vadd.f32 %v2983, %v2719
          %v2985 = vadd.f32 %v2984, %v2720
          %v2986 = vadd.f32 %v2985, %v2721
          %v2987 = vadd.f32 %v2986, %v2722
          %v2988 = vadd.f32 %v2987, %v2723
          %v2989 = vadd.f32 %v2988, %v2724
          %v2990 = vadd.f32 %v2989, %v2725
          %v2991 = vadd.f32 %v2990, %v2726
          %v2992 = vadd.f32 %v2991, %v2727
          %v2993 = vadd.f32 %v2992, %v2728
          %v2994 = vrot.slane %v2993, 4
          %v2995 = vadd.f32 %v2993, %v2994
          %v2996 = vrot.slane %v2995, 2
          %v2997 = vadd.f32 %v2995, %v2996
          %v2998 = vrot.slane %v2997, 1
          %v2999 = vadd.f32 %v2997, %v2998
          %v3000 = vadd.f32 %v2729, %v2730
          %v3001 = vadd.f32 %v3000, %v2731
          %v3002 = vadd.f32 %v3001, %v2732
          %v3003 = vadd.f32 %v3002, %v2733
          %v3004 = vadd.f32 %v3003, %v2734
          %v3005 = vadd.f32 %v3004, %v2735
          %v3006 = vadd.f32 %v3005, %v2736
          %v3007 = vadd.f32 %v3006, %v2737
          %v3008 = vadd.f32 %v3007, %v2738
          %v3009 = vadd.f32 %v3008, %v2739
          %v3010 = vadd.f32 %v3009, %v2740
          %v3011 = vadd.f32 %v3010, %v2741
          %v3012 = vadd.f32 %v3011, %v2742
          %v3013 = vadd.f32 %v3012, %v2743
          %v3014 = vadd.f32 %v3013, %v2744
          %v3015 = vadd.f32 %v3014, %v2745
          %v3016 = vadd.f32 %v3015, %v2746
          %v3017 = vadd.f32 %v3016, %v2747
          %v3018 = vadd.f32 %v3017, %v2748
          %v3019 = vadd.f32 %v3018, %v2749
          %v3020 = vadd.f32 %v3019, %v2750
          %v3021 = vadd.f32 %v3020, %v2751
          %v3022 = vadd.f32 %v3021, %v2752
          %v3023 = vadd.f32 %v3022, %v2753
          %v3024 = vadd.f32 %v3023, %v2754
          %v3025 = vadd.f32 %v3024, %v2755
          %v3026 = vadd.f32 %v3025, %v2756
          %v3027 = vadd.f32 %v3026, %v2757
          %v3028 = vadd.f32 %v3027, %v2758
          %v3029 = vadd.f32 %v3028, %v2759
          %v3030 = vadd.f32 %v3029, %v2760
          %v3031 = vrot.slane %v3030, 4
          %v3032 = vadd.f32 %v3030, %v3031
          %v3033 = vrot.slane %v3032, 2
          %v3034 = vadd.f32 %v3032, %v3033
          %v3035 = vrot.slane %v3034, 1
          %v3036 = vadd.f32 %v3034, %v3035
          %v3037 = vadd.f32 %v2761, %v2762
          %v3038 = vadd.f32 %v3037, %v2763
          %v3039 = vadd.f32 %v3038, %v2764
          %v3040 = vadd.f32 %v3039, %v2765
          %v3041 = vadd.f32 %v3040, %v2766
          %v3042 = vadd.f32 %v3041, %v2767
          %v3043 = vadd.f32 %v3042, %v2768
          %v3044 = vadd.f32 %v3043, %v2769
          %v3045 = vadd.f32 %v3044, %v2770
          %v3046 = vadd.f32 %v3045, %v2771
          %v3047 = vadd.f32 %v3046, %v2772
          %v3048 = vadd.f32 %v3047, %v2773
          %v3049 = vadd.f32 %v3048, %v2774
          %v3050 = vadd.f32 %v3049, %v2775
          %v3051 = vadd.f32 %v3050, %v2776
          %v3052 = vadd.f32 %v3051, %v2777
          %v3053 = vadd.f32 %v3052, %v2778
          %v3054 = vadd.f32 %v3053, %v2779
          %v3055 = vadd.f32 %v3054, %v2780
          %v3056 = vadd.f32 %v3055, %v2781
          %v3057 = vadd.f32 %v3056, %v2782
          %v3058 = vadd.f32 %v3057, %v2783
          %v3059 = vadd.f32 %v3058, %v2784
          %v3060 = vadd.f32 %v3059, %v2785
          %v3061 = vadd.f32 %v3060, %v2786
          %v3062 = vadd.f32 %v3061, %v2787
          %v3063 = vadd.f32 %v3062, %v2788
          %v3064 = vadd.f32 %v3063, %v2789
          %v3065 = vadd.f32 %v3064, %v2790
          %v3066 = vadd.f32 %v3065, %v2791
          %v3067 = vadd.f32 %v3066, %v2792
          %v3068 = vrot.slane %v3067, 4
          %v3069 = vadd.f32 %v3067, %v3068
          %v3070 = vrot.slane %v3069, 2
          %v3071 = vadd.f32 %v3069, %v3070
          %v3072 = vrot.slane %v3071, 1
          %v3073 = vadd.f32 %v3071, %v3072
          %v3074 = vadd.f32 %v2793, %v2794
          %v3075 = vadd.f32 %v3074, %v2795
          %v3076 = vadd.f32 %v3075, %v2796
          %v3077 = vadd.f32 %v3076, %v2797
          %v3078 = vadd.f32 %v3077, %v2798
          %v3079 = vadd.f32 %v3078, %v2799
          %v3080 = vadd.f32 %v3079, %v2800
          %v3081 = vadd.f32 %v3080, %v2801
          %v3082 = vadd.f32 %v3081, %v2802
          %v3083 = vadd.f32 %v3082, %v2803
          %v3084 = vadd.f32 %v3083, %v2804
          %v3085 = vadd.f32 %v3084, %v2805
          %v3086 = vadd.f32 %v3085, %v2806
          %v3087 = vadd.f32 %v3086, %v2807
          %v3088 = vadd.f32 %v3087, %v2808
          %v3089 = vadd.f32 %v3088, %v2809
          %v3090 = vadd.f32 %v3089, %v2810
          %v3091 = vadd.f32 %v3090, %v2811
          %v3092 = vadd.f32 %v3091, %v2812
          %v3093 = vadd.f32 %v3092, %v2813
          %v3094 = vadd.f32 %v3093, %v2814
          %v3095 = vadd.f32 %v3094, %v2815
          %v3096 = vadd.f32 %v3095, %v2816
          %v3097 = vadd.f32 %v3096, %v2817
          %v3098 = vadd.f32 %v3097, %v2818
          %v3099 = vadd.f32 %v3098, %v2819
          %v3100 = vadd.f32 %v3099, %v2820
          %v3101 = vadd.f32 %v3100, %v2821
          %v3102 = vadd.f32 %v3101, %v2822
          %v3103 = vadd.f32 %v3102, %v2823
          %v3104 = vadd.f32 %v3103, %v2824
          %v3105 = vrot.slane %v3104, 4
          %v3106 = vadd.f32 %v3104, %v3105
          %v3107 = vrot.slane %v3106, 2
          %v3108 = vadd.f32 %v3106, %v3107
          %v3109 = vrot.slane %v3108, 1
          %v3110 = vadd.f32 %v3108, %v3109
          %v3111 = vadd.f32 %v2825, %v2826
          %v3112 = vadd.f32 %v3111, %v2827
          %v3113 = vadd.f32 %v3112, %v2828
          %v3114 = vadd.f32 %v3113, %v2829
          %v3115 = vadd.f32 %v3114, %v2830
          %v3116 = vadd.f32 %v3115, %v2831
          %v3117 = vadd.f32 %v3116, %v2832
          %v3118 = vadd.f32 %v3117, %v2833
          %v3119 = vadd.f32 %v3118, %v2834
          %v3120 = vadd.f32 %v3119, %v2835
          %v3121 = vadd.f32 %v3120, %v2836
          %v3122 = vadd.f32 %v3121, %v2837
          %v3123 = vadd.f32 %v3122, %v2838
          %v3124 = vadd.f32 %v3123, %v2839
          %v3125 = vadd.f32 %v3124, %v2840
          %v3126 = vadd.f32 %v3125, %v2841
          %v3127 = vadd.f32 %v3126, %v2842
          %v3128 = vadd.f32 %v3127, %v2843
          %v3129 = vadd.f32 %v3128, %v2844
          %v3130 = vadd.f32 %v3129, %v2845
          %v3131 = vadd.f32 %v3130, %v2846
          %v3132 = vadd.f32 %v3131, %v2847
          %v3133 = vadd.f32 %v3132, %v2848
          %v3134 = vadd.f32 %v3133, %v2849
          %v3135 = vadd.f32 %v3134, %v2850
          %v3136 = vadd.f32 %v3135, %v2851
          %v3137 = vadd.f32 %v3136, %v2852
          %v3138 = vadd.f32 %v3137, %v2853
          %v3139 = vadd.f32 %v3138, %v2854
          %v3140 = vadd.f32 %v3139, %v2855
          %v3141 = vadd.f32 %v3140, %v2856
          %v3142 = vrot.slane %v3141, 4
          %v3143 = vadd.f32 %v3141, %v3142
          %v3144 = vrot.slane %v3143, 2
          %v3145 = vadd.f32 %v3143, %v3144
          %v3146 = vrot.slane %v3145, 1
          %v3147 = vadd.f32 %v3145, %v3146
          %v3148 = vadd.f32 %v2857, %v2858
          %v3149 = vadd.f32 %v3148, %v2859
          %v3150 = vadd.f32 %v3149, %v2860
          %v3151 = vadd.f32 %v3150, %v2861
          %v3152 = vadd.f32 %v3151, %v2862
          %v3153 = vadd.f32 %v3152, %v2863
          %v3154 = vadd.f32 %v3153, %v2864
          %v3155 = vadd.f32 %v3154, %v2865
          %v3156 = vadd.f32 %v3155, %v2866
          %v3157 = vadd.f32 %v3156, %v2867
          %v3158 = vadd.f32 %v3157, %v2868
          %v3159 = vadd.f32 %v3158, %v2869
          %v3160 = vadd.f32 %v3159, %v2870
          %v3161 = vadd.f32 %v3160, %v2871
          %v3162 = vadd.f32 %v3161, %v2872
          %v3163 = vadd.f32 %v3162, %v2873
          %v3164 = vadd.f32 %v3163, %v2874
          %v3165 = vadd.f32 %v3164, %v2875
          %v3166 = vadd.f32 %v3165, %v2876
          %v3167 = vadd.f32 %v3166, %v2877
          %v3168 = vadd.f32 %v3167, %v2878
          %v3169 = vadd.f32 %v3168, %v2879
          %v3170 = vadd.f32 %v3169, %v2880
          %v3171 = vadd.f32 %v3170, %v2881
          %v3172 = vadd.f32 %v3171, %v2882
          %v3173 = vadd.f32 %v3172, %v2883
          %v3174 = vadd.f32 %v3173, %v2884
          %v3175 = vadd.f32 %v3174, %v2885
          %v3176 = vadd.f32 %v3175, %v2886
          %v3177 = vadd.f32 %v3176, %v2887
          %v3178 = vadd.f32 %v3177, %v2888
          %v3179 = vrot.slane %v3178, 4
          %v3180 = vadd.f32 %v3178, %v3179
          %v3181 = vrot.slane %v3180, 2
          %v3182 = vadd.f32 %v3180, %v3181
          %v3183 = vrot.slane %v3182, 1
          %v3184 = vadd.f32 %v3182, %v3183
          %v3185 = vmul.f32 %v2925, 0.00390625
          %v3186 = vmul.f32 %v2962, 0.00390625
          %v3187 = vmul.f32 %v2999, 0.00390625
          %v3188 = vmul.f32 %v3036, 0.00390625
          %v3189 = vmul.f32 %v3073, 0.00390625
          %v3190 = vmul.f32 %v3110, 0.00390625
          %v3191 = vmul.f32 %v3147, 0.00390625
          %v3192 = vmul.f32 %v3184, 0.00390625
          %vm3201 = vcmask 1041409
          %v3202 = vsel %vm3201, %v3186, %v3185
          %vm3203 = vcmask 1042434
          %v3204 = vsel %vm3203, %v3187, %v3202
          %vm3205 = vcmask 1043459
          %v3206 = vsel %vm3205, %v3188, %v3204
          %vm3207 = vcmask 1044484
          %v3208 = vsel %vm3207, %v3189, %v3206
          %vm3209 = vcmask 1045509
          %v3210 = vsel %vm3209, %v3190, %v3208
          %vm3211 = vcmask 1046534
          %v3212 = vsel %vm3211, %v3191, %v3210
          %vm3213 = vcmask 1047559
          %v3214 = vsel %vm3213, %v3192, %v3212
          %3216 = vst [vmem:[#allocation2] sm:$0xff] %v3214
          %3217 = vst [vmem:[#allocation2 + $0x8] sm:$0xff] 0.0
        $region44: #{byol_forward.1} parent=39 // pred_fallthru
          _
        %v3218 = vld [vmem:[%s273] sm:$0xff]
        %v3219 = vld [vmem:[%s273 + $0x8] sm:$0xff]
        %v3220 = vld [vmem:[%s273 + $0x10] sm:$0xff]
        %v3221 = vld [vmem:[%s273 + $0x18] sm:$0x3]
        %v3222 = vld [vmem:[#allocation2] sm:$0xff]
        %v3223 = vld [vmem:[#allocation2 + $0x8] sm:$0xff]
        %v3224 = vpack.c.bf16 %v3222, %v3222
        %v3225 = vpack.c.bf16 %v3223, %v3223
        %v3226 = vld [vmem:[%s264] sm:$0xff]
        %v3227 = vld [vmem:[%s264 + $0x8] sm:$0xff]
        %v3228 = vld [vmem:[%s264 + $0x10] sm:$0xff]
        %v3229 = vld [vmem:[%s264 + $0x18] sm:$0xff]
        %v3230 = vld [vmem:[%s264 + $0x20] sm:$0xff]
        %v3231 = vld [vmem:[%s264 + $0x28] sm:$0xff]
        %v3232 = vld [vmem:[%s264 + $0x30] sm:$0xff]
        %v3233 = vld [vmem:[%s264 + $0x38] sm:$0xff]
        %v3234 = vld [vmem:[%s264 + $0x40] sm:$0xff]
        %v3235 = vld [vmem:[%s264 + $0x48] sm:$0xff]
        %v3236 = vld [vmem:[%s264 + $0x50] sm:$0xff]
        %v3237 = vld [vmem:[%s264 + $0x58] sm:$0xff]
        %v3238 = vld [vmem:[%s264 + $0x60] sm:$0xff]
        %v3239 = vld [vmem:[%s264 + $0x68] sm:$0xff]
        %v3240 = vld [vmem:[%s264 + $0x70] sm:$0xff]
        %v3241 = vld [vmem:[%s264 + $0x78] sm:$0xff]
        %v3242 = vld [vmem:[%s264 + $0x80] sm:$0xff]
        %v3243 = vld [vmem:[%s264 + $0x88] sm:$0xff]
        %v3244 = vld [vmem:[%s264 + $0x90] sm:$0xff]
        %v3245 = vld [vmem:[%s264 + $0x98] sm:$0xff]
        %v3246 = vld [vmem:[%s264 + $0xa0] sm:$0xff]
        %v3247 = vld [vmem:[%s264 + $0xa8] sm:$0xff]
        %v3248 = vld [vmem:[%s264 + $0xb0] sm:$0xff]
        %v3249 = vld [vmem:[%s264 + $0xb8] sm:$0xff]
        %v3250 = vld [vmem:[%s264 + $0xc0] sm:$0xff]
        %v3251 = vld [vmem:[%s264 + $0xc8] sm:$0xff]
        %v3252 = vld [vmem:[%s264 + $0xd0] sm:$0xff]
        %v3253 = vld [vmem:[%s264 + $0xd8] sm:$0xff]
        %v3254 = vld [vmem:[%s264 + $0xe0] sm:$0xff]
        %v3255 = vld [vmem:[%s264 + $0xe8] sm:$0xff]
        %v3256 = vld [vmem:[%s264 + $0xf0] sm:$0xff]
        %v3257 = vld [vmem:[%s264 + $0xf8] sm:$0xff]
        %v3258 = vld [vmem:[%s264 + $0x100] sm:$0xff]
        %v3259 = vld [vmem:[%s264 + $0x108] sm:$0xff]
        %v3260 = vld [vmem:[%s264 + $0x110] sm:$0xff]
        %v3261 = vld [vmem:[%s264 + $0x118] sm:$0xff]
        %v3262 = vld [vmem:[%s264 + $0x120] sm:$0xff]
        %v3263 = vld [vmem:[%s264 + $0x128] sm:$0xff]
        %v3264 = vld [vmem:[%s264 + $0x130] sm:$0xff]
        %v3265 = vld [vmem:[%s264 + $0x138] sm:$0xff]
        %v3266 = vld [vmem:[%s264 + $0x140] sm:$0xff]
        %v3267 = vld [vmem:[%s264 + $0x148] sm:$0xff]
        %v3268 = vld [vmem:[%s264 + $0x150] sm:$0xff]
        %v3269 = vld [vmem:[%s264 + $0x158] sm:$0xff]
        %v3270 = vld [vmem:[%s264 + $0x160] sm:$0xff]
        %v3271 = vld [vmem:[%s264 + $0x168] sm:$0xff]
        %v3272 = vld [vmem:[%s264 + $0x170] sm:$0xff]
        %v3273 = vld [vmem:[%s264 + $0x178] sm:$0xff]
        %v3274 = vld [vmem:[%s264 + $0x180] sm:$0xff]
        %v3275 = vld [vmem:[%s264 + $0x188] sm:$0xff]
        %v3276 = vld [vmem:[%s264 + $0x190] sm:$0xff]
        %v3277 = vld [vmem:[%s264 + $0x198] sm:$0xff]
        %v3278 = vld [vmem:[%s264 + $0x1a0] sm:$0xff]
        %v3279 = vld [vmem:[%s264 + $0x1a8] sm:$0xff]
        %v3280 = vld [vmem:[%s264 + $0x1b0] sm:$0xff]
        %v3281 = vld [vmem:[%s264 + $0x1b8] sm:$0xff]
        %v3282 = vld [vmem:[%s264 + $0x1c0] sm:$0xff]
        %v3283 = vld [vmem:[%s264 + $0x1c8] sm:$0xff]
        %v3284 = vld [vmem:[%s264 + $0x1d0] sm:$0xff]
        %v3285 = vld [vmem:[%s264 + $0x1d8] sm:$0xff]
        %v3286 = vld [vmem:[%s264 + $0x1e0] sm:$0xff]
        %v3287 = vld [vmem:[%s264 + $0x1e8] sm:$0xff]
        %v3288 = vld [vmem:[%s264 + $0x1f0] sm:$0xff]
        %v3289 = vld [vmem:[%s264 + $0x1f8] sm:$0xff]
        %v3290 = vld [vmem:[%s264 + $0x200] sm:$0xff]
        %v3291 = vld [vmem:[%s264 + $0x208] sm:$0xff]
        %v3292 = vld [vmem:[%s264 + $0x210] sm:$0xff]
        %v3293 = vld [vmem:[%s264 + $0x218] sm:$0xff]
        %v3294 = vld [vmem:[%s264 + $0x220] sm:$0xff]
        %v3295 = vld [vmem:[%s264 + $0x228] sm:$0xff]
        %v3296 = vld [vmem:[%s264 + $0x230] sm:$0xff]
        %v3297 = vld [vmem:[%s264 + $0x238] sm:$0xff]
        %v3298 = vld [vmem:[%s264 + $0x240] sm:$0xff]
        %v3299 = vld [vmem:[%s264 + $0x248] sm:$0xff]
        %v3300 = vld [vmem:[%s264 + $0x250] sm:$0xff]
        %v3301 = vld [vmem:[%s264 + $0x258] sm:$0xff]
        %v3302 = vld [vmem:[%s264 + $0x260] sm:$0xff]
        %v3303 = vld [vmem:[%s264 + $0x268] sm:$0xff]
        %v3304 = vld [vmem:[%s264 + $0x270] sm:$0xff]
        %v3305 = vld [vmem:[%s264 + $0x278] sm:$0xff]
        %v3306 = vld [vmem:[%s264 + $0x280] sm:$0xff]
        %v3307 = vld [vmem:[%s264 + $0x288] sm:$0xff]
        %v3308 = vld [vmem:[%s264 + $0x290] sm:$0xff]
        %v3309 = vld [vmem:[%s264 + $0x298] sm:$0xff]
        %v3310 = vld [vmem:[%s264 + $0x2a0] sm:$0xff]
        %v3311 = vld [vmem:[%s264 + $0x2a8] sm:$0xff]
        %v3312 = vld [vmem:[%s264 + $0x2b0] sm:$0xff]
        %v3313 = vld [vmem:[%s264 + $0x2b8] sm:$0xff]
        %v3314 = vld [vmem:[%s264 + $0x2c0] sm:$0xff]
        %v3315 = vld [vmem:[%s264 + $0x2c8] sm:$0xff]
        %v3316 = vld [vmem:[%s264 + $0x2d0] sm:$0xff]
        %v3317 = vld [vmem:[%s264 + $0x2d8] sm:$0xff]
        %v3318 = vld [vmem:[%s264 + $0x2e0] sm:$0xff]
        %v3319 = vld [vmem:[%s264 + $0x2e8] sm:$0xff]
        %v3320 = vld [vmem:[%s264 + $0x2f0] sm:$0xff]
        %v3321 = vld [vmem:[%s264 + $0x2f8] sm:$0xff]
        %v3322 = vld [vmem:[%s264 + $0x300] sm:$0xff]
        %v3323 = vld [vmem:[%s264 + $0x308] sm:$0xff]
        %v3324 = vld [vmem:[%s264 + $0x310] sm:$0xff]
        %v3325 = vld [vmem:[%s264 + $0x318] sm:$0xff]
        %v3326 = vld [vmem:[%s264 + $0x320] sm:$0xff]
        %v3327 = vld [vmem:[%s264 + $0x328] sm:$0xff]
        %v3328 = vld [vmem:[%s264 + $0x330] sm:$0xff]
        %v3329 = vld [vmem:[%s264 + $0x338] sm:$0xff]
        %v3330 = vld [vmem:[%s264 + $0x340] sm:$0xff]
        %v3331 = vld [vmem:[%s264 + $0x348] sm:$0xff]
        %v3332 = vld [vmem:[%s264 + $0x350] sm:$0xff]
        %v3333 = vld [vmem:[%s264 + $0x358] sm:$0xff]
        %v3334 = vld [vmem:[%s264 + $0x360] sm:$0xff]
        %v3335 = vld [vmem:[%s264 + $0x368] sm:$0xff]
        %v3336 = vld [vmem:[%s264 + $0x370] sm:$0xff]
        %v3337 = vld [vmem:[%s264 + $0x378] sm:$0xff]
        %v3338 = vld [vmem:[%s264 + $0x380] sm:$0xff]
        %v3339 = vld [vmem:[%s264 + $0x388] sm:$0xff]
        %v3340 = vld [vmem:[%s264 + $0x390] sm:$0xff]
        %v3341 = vld [vmem:[%s264 + $0x398] sm:$0xff]
        %v3342 = vld [vmem:[%s264 + $0x3a0] sm:$0xff]
        %v3343 = vld [vmem:[%s264 + $0x3a8] sm:$0xff]
        %v3344 = vld [vmem:[%s264 + $0x3b0] sm:$0xff]
        %v3345 = vld [vmem:[%s264 + $0x3b8] sm:$0xff]
        %v3346 = vld [vmem:[%s264 + $0x3c0] sm:$0xff]
        %v3347 = vld [vmem:[%s264 + $0x3c8] sm:$0xff]
        %v3348 = vld [vmem:[%s264 + $0x3d0] sm:$0xff]
        %v3349 = vld [vmem:[%s264 + $0x3d8] sm:$0xff]
        %v3350 = vld [vmem:[%s264 + $0x3e0] sm:$0xff]
        %v3351 = vld [vmem:[%s264 + $0x3e8] sm:$0xff]
        %v3352 = vld [vmem:[%s264 + $0x3f0] sm:$0xff]
        %v3353 = vld [vmem:[%s264 + $0x3f8] sm:$0xff]
        %v3355 = vlaneseq
        %v3356 = vshrl.u32 %v3355, 7
        %v3357 = vsub.s32 0, %v3356
        %v3358 = vrot.slane %v3218, %v3357
        %v3359 = vlaneseq
        %v3360 = vshrl.u32 %v3359, 7
        %v3361 = vsub.s32 1, %v3360
        %v3362 = vrot.slane %v3218, %v3361
        %v3363 = vlaneseq
        %v3364 = vshrl.u32 %v3363, 7
        %v3365 = vsub.s32 2, %v3364
        %v3366 = vrot.slane %v3218, %v3365
        %v3367 = vlaneseq
        %v3368 = vshrl.u32 %v3367, 7
        %v3369 = vsub.s32 3, %v3368
        %v3370 = vrot.slane %v3218, %v3369
        %v3371 = vlaneseq
        %v3372 = vshrl.u32 %v3371, 7
        %v3373 = vsub.s32 4, %v3372
        %v3374 = vrot.slane %v3218, %v3373
        %v3375 = vlaneseq
        %v3376 = vshrl.u32 %v3375, 7
        %v3377 = vsub.s32 5, %v3376
        %v3378 = vrot.slane %v3218, %v3377
        %v3379 = vlaneseq
        %v3380 = vshrl.u32 %v3379, 7
        %v3381 = vsub.s32 6, %v3380
        %v3382 = vrot.slane %v3218, %v3381
        %v3383 = vlaneseq
        %v3384 = vshrl.u32 %v3383, 7
        %v3385 = vsub.s32 7, %v3384
        %v3386 = vrot.slane %v3218, %v3385
        %v3523 = vunpack.c.l.b16 %v3226
        %v3524 = vunpack.c.h.b16 %v3226
        %v3525 = vunpack.c.l.b16 %v3227
        %v3526 = vunpack.c.h.b16 %v3227
        %v3527 = vunpack.c.l.b16 %v3228
        %v3528 = vunpack.c.h.b16 %v3228
        %v3529 = vunpack.c.l.b16 %v3229
        %v3530 = vunpack.c.h.b16 %v3229
        %v3531 = vunpack.c.l.b16 %v3230
        %v3532 = vunpack.c.h.b16 %v3230
        %v3533 = vunpack.c.l.b16 %v3231
        %v3534 = vunpack.c.h.b16 %v3231
        %v3535 = vunpack.c.l.b16 %v3232
        %v3536 = vunpack.c.h.b16 %v3232
        %v3537 = vunpack.c.l.b16 %v3233
        %v3538 = vunpack.c.h.b16 %v3233
        %v3539 = vunpack.c.l.b16 %v3234
        %v3540 = vunpack.c.h.b16 %v3234
        %v3541 = vunpack.c.l.b16 %v3235
        %v3542 = vunpack.c.h.b16 %v3235
        %v3543 = vunpack.c.l.b16 %v3236
        %v3544 = vunpack.c.h.b16 %v3236
        %v3545 = vunpack.c.l.b16 %v3237
        %v3546 = vunpack.c.h.b16 %v3237
        %v3547 = vunpack.c.l.b16 %v3238
        %v3548 = vunpack.c.h.b16 %v3238
        %v3549 = vunpack.c.l.b16 %v3239
        %v3550 = vunpack.c.h.b16 %v3239
        %v3551 = vunpack.c.l.b16 %v3240
        %v3552 = vunpack.c.h.b16 %v3240
        %v3553 = vunpack.c.l.b16 %v3241
        %v3554 = vunpack.c.h.b16 %v3241
        %v3555 = vunpack.c.l.b16 %v3242
        %v3556 = vunpack.c.h.b16 %v3242
        %v3557 = vunpack.c.l.b16 %v3243
        %v3558 = vunpack.c.h.b16 %v3243
        %v3559 = vunpack.c.l.b16 %v3244
        %v3560 = vunpack.c.h.b16 %v3244
        %v3561 = vunpack.c.l.b16 %v3245
        %v3562 = vunpack.c.h.b16 %v3245
        %v3563 = vunpack.c.l.b16 %v3246
        %v3564 = vunpack.c.h.b16 %v3246
        %v3565 = vunpack.c.l.b16 %v3247
        %v3566 = vunpack.c.h.b16 %v3247
        %v3567 = vunpack.c.l.b16 %v3248
        %v3568 = vunpack.c.h.b16 %v3248
        %v3569 = vunpack.c.l.b16 %v3249
        %v3570 = vunpack.c.h.b16 %v3249
        %v3571 = vunpack.c.l.b16 %v3250
        %v3572 = vunpack.c.h.b16 %v3250
        %v3573 = vunpack.c.l.b16 %v3251
        %v3574 = vunpack.c.h.b16 %v3251
        %v3575 = vunpack.c.l.b16 %v3252
        %v3576 = vunpack.c.h.b16 %v3252
        %v3577 = vunpack.c.l.b16 %v3253
        %v3578 = vunpack.c.h.b16 %v3253
        %v3579 = vunpack.c.l.b16 %v3254
        %v3580 = vunpack.c.h.b16 %v3254
        %v3581 = vunpack.c.l.b16 %v3255
        %v3582 = vunpack.c.h.b16 %v3255
        %v3583 = vunpack.c.l.b16 %v3256
        %v3584 = vunpack.c.h.b16 %v3256
        %v3585 = vunpack.c.l.b16 %v3257
        %v3586 = vunpack.c.h.b16 %v3257
        %v3587 = vunpack.c.l.b16 %v3258
        %v3588 = vunpack.c.h.b16 %v3258
        %v3589 = vunpack.c.l.b16 %v3259
        %v3590 = vunpack.c.h.b16 %v3259
        %v3591 = vunpack.c.l.b16 %v3260
        %v3592 = vunpack.c.h.b16 %v3260
        %v3593 = vunpack.c.l.b16 %v3261
        %v3594 = vunpack.c.h.b16 %v3261
        %v3595 = vunpack.c.l.b16 %v3262
        %v3596 = vunpack.c.h.b16 %v3262
        %v3597 = vunpack.c.l.b16 %v3263
        %v3598 = vunpack.c.h.b16 %v3263
        %v3599 = vunpack.c.l.b16 %v3264
        %v3600 = vunpack.c.h.b16 %v3264
        %v3601 = vunpack.c.l.b16 %v3265
        %v3602 = vunpack.c.h.b16 %v3265
        %v3603 = vunpack.c.l.b16 %v3266
        %v3604 = vunpack.c.h.b16 %v3266
        %v3605 = vunpack.c.l.b16 %v3267
        %v3606 = vunpack.c.h.b16 %v3267
        %v3607 = vunpack.c.l.b16 %v3268
        %v3608 = vunpack.c.h.b16 %v3268
        %v3609 = vunpack.c.l.b16 %v3269
        %v3610 = vunpack.c.h.b16 %v3269
        %v3611 = vunpack.c.l.b16 %v3270
        %v3612 = vunpack.c.h.b16 %v3270
        %v3613 = vunpack.c.l.b16 %v3271
        %v3614 = vunpack.c.h.b16 %v3271
        %v3615 = vunpack.c.l.b16 %v3272
        %v3616 = vunpack.c.h.b16 %v3272
        %v3617 = vunpack.c.l.b16 %v3273
        %v3618 = vunpack.c.h.b16 %v3273
        %v3619 = vunpack.c.l.b16 %v3274
        %v3620 = vunpack.c.h.b16 %v3274
        %v3621 = vunpack.c.l.b16 %v3275
        %v3622 = vunpack.c.h.b16 %v3275
        %v3623 = vunpack.c.l.b16 %v3276
        %v3624 = vunpack.c.h.b16 %v3276
        %v3625 = vunpack.c.l.b16 %v3277
        %v3626 = vunpack.c.h.b16 %v3277
        %v3627 = vunpack.c.l.b16 %v3278
        %v3628 = vunpack.c.h.b16 %v3278
        %v3629 = vunpack.c.l.b16 %v3279
        %v3630 = vunpack.c.h.b16 %v3279
        %v3631 = vunpack.c.l.b16 %v3280
        %v3632 = vunpack.c.h.b16 %v3280
        %v3633 = vunpack.c.l.b16 %v3281
        %v3634 = vunpack.c.h.b16 %v3281
        %v3635 = vunpack.c.l.b16 %v3282
        %v3636 = vunpack.c.h.b16 %v3282
        %v3637 = vunpack.c.l.b16 %v3283
        %v3638 = vunpack.c.h.b16 %v3283
        %v3639 = vunpack.c.l.b16 %v3284
        %v3640 = vunpack.c.h.b16 %v3284
        %v3641 = vunpack.c.l.b16 %v3285
        %v3642 = vunpack.c.h.b16 %v3285
        %v3643 = vunpack.c.l.b16 %v3286
        %v3644 = vunpack.c.h.b16 %v3286
        %v3645 = vunpack.c.l.b16 %v3287
        %v3646 = vunpack.c.h.b16 %v3287
        %v3647 = vunpack.c.l.b16 %v3288
        %v3648 = vunpack.c.h.b16 %v3288
        %v3649 = vunpack.c.l.b16 %v3289
        %v3650 = vunpack.c.h.b16 %v3289
        %v3651 = vunpack.c.l.b16 %v3290
        %v3652 = vunpack.c.h.b16 %v3290
        %v3653 = vunpack.c.l.b16 %v3291
        %v3654 = vunpack.c.h.b16 %v3291
        %v3655 = vunpack.c.l.b16 %v3292
        %v3656 = vunpack.c.h.b16 %v3292
        %v3657 = vunpack.c.l.b16 %v3293
        %v3658 = vunpack.c.h.b16 %v3293
        %v3659 = vunpack.c.l.b16 %v3294
        %v3660 = vunpack.c.h.b16 %v3294
        %v3661 = vunpack.c.l.b16 %v3295
        %v3662 = vunpack.c.h.b16 %v3295
        %v3663 = vunpack.c.l.b16 %v3296
        %v3664 = vunpack.c.h.b16 %v3296
        %v3665 = vunpack.c.l.b16 %v3297
        %v3666 = vunpack.c.h.b16 %v3297
        %v3667 = vunpack.c.l.b16 %v3298
        %v3668 = vunpack.c.h.b16 %v3298
        %v3669 = vunpack.c.l.b16 %v3299
        %v3670 = vunpack.c.h.b16 %v3299
        %v3671 = vunpack.c.l.b16 %v3300
        %v3672 = vunpack.c.h.b16 %v3300
        %v3673 = vunpack.c.l.b16 %v3301
        %v3674 = vunpack.c.h.b16 %v3301
        %v3675 = vunpack.c.l.b16 %v3302
        %v3676 = vunpack.c.h.b16 %v3302
        %v3677 = vunpack.c.l.b16 %v3303
        %v3678 = vunpack.c.h.b16 %v3303
        %v3679 = vunpack.c.l.b16 %v3304
        %v3680 = vunpack.c.h.b16 %v3304
        %v3681 = vunpack.c.l.b16 %v3305
        %v3682 = vunpack.c.h.b16 %v3305
        %v3683 = vunpack.c.l.b16 %v3306
        %v3684 = vunpack.c.h.b16 %v3306
        %v3685 = vunpack.c.l.b16 %v3307
        %v3686 = vunpack.c.h.b16 %v3307
        %v3687 = vunpack.c.l.b16 %v3308
        %v3688 = vunpack.c.h.b16 %v3308
        %v3689 = vunpack.c.l.b16 %v3309
        %v3690 = vunpack.c.h.b16 %v3309
        %v3691 = vunpack.c.l.b16 %v3310
        %v3692 = vunpack.c.h.b16 %v3310
        %v3693 = vunpack.c.l.b16 %v3311
        %v3694 = vunpack.c.h.b16 %v3311
        %v3695 = vunpack.c.l.b16 %v3312
        %v3696 = vunpack.c.h.b16 %v3312
        %v3697 = vunpack.c.l.b16 %v3313
        %v3698 = vunpack.c.h.b16 %v3313
        %v3699 = vunpack.c.l.b16 %v3314
        %v3700 = vunpack.c.h.b16 %v3314
        %v3701 = vunpack.c.l.b16 %v3315
        %v3702 = vunpack.c.h.b16 %v3315
        %v3703 = vunpack.c.l.b16 %v3316
        %v3704 = vunpack.c.h.b16 %v3316
        %v3705 = vunpack.c.l.b16 %v3317
        %v3706 = vunpack.c.h.b16 %v3317
        %v3707 = vunpack.c.l.b16 %v3318
        %v3708 = vunpack.c.h.b16 %v3318
        %v3709 = vunpack.c.l.b16 %v3319
        %v3710 = vunpack.c.h.b16 %v3319
        %v3711 = vunpack.c.l.b16 %v3320
        %v3712 = vunpack.c.h.b16 %v3320
        %v3713 = vunpack.c.l.b16 %v3321
        %v3714 = vunpack.c.h.b16 %v3321
        %v3715 = vunpack.c.l.b16 %v3322
        %v3716 = vunpack.c.h.b16 %v3322
        %v3717 = vunpack.c.l.b16 %v3323
        %v3718 = vunpack.c.h.b16 %v3323
        %v3719 = vunpack.c.l.b16 %v3324
        %v3720 = vunpack.c.h.b16 %v3324
        %v3721 = vunpack.c.l.b16 %v3325
        %v3722 = vunpack.c.h.b16 %v3325
        %v3723 = vunpack.c.l.b16 %v3326
        %v3724 = vunpack.c.h.b16 %v3326
        %v3725 = vunpack.c.l.b16 %v3327
        %v3726 = vunpack.c.h.b16 %v3327
        %v3727 = vunpack.c.l.b16 %v3328
        %v3728 = vunpack.c.h.b16 %v3328
        %v3729 = vunpack.c.l.b16 %v3329
        %v3730 = vunpack.c.h.b16 %v3329
        %v3731 = vunpack.c.l.b16 %v3330
        %v3732 = vunpack.c.h.b16 %v3330
        %v3733 = vunpack.c.l.b16 %v3331
        %v3734 = vunpack.c.h.b16 %v3331
        %v3735 = vunpack.c.l.b16 %v3332
        %v3736 = vunpack.c.h.b16 %v3332
        %v3737 = vunpack.c.l.b16 %v3333
        %v3738 = vunpack.c.h.b16 %v3333
        %v3739 = vunpack.c.l.b16 %v3334
        %v3740 = vunpack.c.h.b16 %v3334
        %v3741 = vunpack.c.l.b16 %v3335
        %v3742 = vunpack.c.h.b16 %v3335
        %v3743 = vunpack.c.l.b16 %v3336
        %v3744 = vunpack.c.h.b16 %v3336
        %v3745 = vunpack.c.l.b16 %v3337
        %v3746 = vunpack.c.h.b16 %v3337
        %v3747 = vunpack.c.l.b16 %v3338
        %v3748 = vunpack.c.h.b16 %v3338
        %v3749 = vunpack.c.l.b16 %v3339
        %v3750 = vunpack.c.h.b16 %v3339
        %v3751 = vunpack.c.l.b16 %v3340
        %v3752 = vunpack.c.h.b16 %v3340
        %v3753 = vunpack.c.l.b16 %v3341
        %v3754 = vunpack.c.h.b16 %v3341
        %v3755 = vunpack.c.l.b16 %v3342
        %v3756 = vunpack.c.h.b16 %v3342
        %v3757 = vunpack.c.l.b16 %v3343
        %v3758 = vunpack.c.h.b16 %v3343
        %v3759 = vunpack.c.l.b16 %v3344
        %v3760 = vunpack.c.h.b16 %v3344
        %v3761 = vunpack.c.l.b16 %v3345
        %v3762 = vunpack.c.h.b16 %v3345
        %v3763 = vunpack.c.l.b16 %v3346
        %v3764 = vunpack.c.h.b16 %v3346
        %v3765 = vunpack.c.l.b16 %v3347
        %v3766 = vunpack.c.h.b16 %v3347
        %v3767 = vunpack.c.l.b16 %v3348
        %v3768 = vunpack.c.h.b16 %v3348
        %v3769 = vunpack.c.l.b16 %v3349
        %v3770 = vunpack.c.h.b16 %v3349
        %v3771 = vunpack.c.l.b16 %v3350
        %v3772 = vunpack.c.h.b16 %v3350
        %v3773 = vunpack.c.l.b16 %v3351
        %v3774 = vunpack.c.h.b16 %v3351
        %v3775 = vunpack.c.l.b16 %v3352
        %v3776 = vunpack.c.h.b16 %v3352
        %v3777 = vunpack.c.l.b16 %v3353
        %v3778 = vunpack.c.h.b16 %v3353
        %v3779 = vpack.c.b16 %v3531, %v3523
        %v3780 = vpack.c.b16 %v3532, %v3524
        %v3781 = vpack.c.b16 %v3533, %v3525
        %v3782 = vpack.c.b16 %v3534, %v3526
        %v3783 = vpack.c.b16 %v3535, %v3527
        %v3784 = vpack.c.b16 %v3536, %v3528
        %v3785 = vpack.c.b16 %v3537, %v3529
        %v3786 = vpack.c.b16 %v3538, %v3530
        %v3787 = vpack.c.b16 %v3547, %v3539
        %v3788 = vpack.c.b16 %v3548, %v3540
        %v3789 = vpack.c.b16 %v3549, %v3541
        %v3790 = vpack.c.b16 %v3550, %v3542
        %v3791 = vpack.c.b16 %v3551, %v3543
        %v3792 = vpack.c.b16 %v3552, %v3544
        %v3793 = vpack.c.b16 %v3553, %v3545
        %v3794 = vpack.c.b16 %v3554, %v3546
        %v3795 = vpack.c.b16 %v3563, %v3555
        %v3796 = vpack.c.b16 %v3564, %v3556
        %v3797 = vpack.c.b16 %v3565, %v3557
        %v3798 = vpack.c.b16 %v3566, %v3558
        %v3799 = vpack.c.b16 %v3567, %v3559
        %v3800 = vpack.c.b16 %v3568, %v3560
        %v3801 = vpack.c.b16 %v3569, %v3561
        %v3802 = vpack.c.b16 %v3570, %v3562
        %v3803 = vpack.c.b16 %v3579, %v3571
        %v3804 = vpack.c.b16 %v3580, %v3572
        %v3805 = vpack.c.b16 %v3581, %v3573
        %v3806 = vpack.c.b16 %v3582, %v3574
        %v3807 = vpack.c.b16 %v3583, %v3575
        %v3808 = vpack.c.b16 %v3584, %v3576
        %v3809 = vpack.c.b16 %v3585, %v3577
        %v3810 = vpack.c.b16 %v3586, %v3578
        %v3811 = vpack.c.b16 %v3595, %v3587
        %v3812 = vpack.c.b16 %v3596, %v3588
        %v3813 = vpack.c.b16 %v3597, %v3589
        %v3814 = vpack.c.b16 %v3598, %v3590
        %v3815 = vpack.c.b16 %v3599, %v3591
        %v3816 = vpack.c.b16 %v3600, %v3592
        %v3817 = vpack.c.b16 %v3601, %v3593
        %v3818 = vpack.c.b16 %v3602, %v3594
        %v3819 = vpack.c.b16 %v3611, %v3603
        %v3820 = vpack.c.b16 %v3612, %v3604
        %v3821 = vpack.c.b16 %v3613, %v3605
        %v3822 = vpack.c.b16 %v3614, %v3606
        %v3823 = vpack.c.b16 %v3615, %v3607
        %v3824 = vpack.c.b16 %v3616, %v3608
        %v3825 = vpack.c.b16 %v3617, %v3609
        %v3826 = vpack.c.b16 %v3618, %v3610
        %v3827 = vpack.c.b16 %v3627, %v3619
        %v3828 = vpack.c.b16 %v3628, %v3620
        %v3829 = vpack.c.b16 %v3629, %v3621
        %v3830 = vpack.c.b16 %v3630, %v3622
        %v3831 = vpack.c.b16 %v3631, %v3623
        %v3832 = vpack.c.b16 %v3632, %v3624
        %v3833 = vpack.c.b16 %v3633, %v3625
        %v3834 = vpack.c.b16 %v3634, %v3626
        %v3835 = vpack.c.b16 %v3643, %v3635
        %v3836 = vpack.c.b16 %v3644, %v3636
        %v3837 = vpack.c.b16 %v3645, %v3637
        %v3838 = vpack.c.b16 %v3646, %v3638
        %v3839 = vpack.c.b16 %v3647, %v3639
        %v3840 = vpack.c.b16 %v3648, %v3640
        %v3841 = vpack.c.b16 %v3649, %v3641
        %v3842 = vpack.c.b16 %v3650, %v3642
        %v3843 = vpack.c.b16 %v3659, %v3651
        %v3844 = vpack.c.b16 %v3660, %v3652
        %v3845 = vpack.c.b16 %v3661, %v3653
        %v3846 = vpack.c.b16 %v3662, %v3654
        %v3847 = vpack.c.b16 %v3663, %v3655
        %v3848 = vpack.c.b16 %v3664, %v3656
        %v3849 = vpack.c.b16 %v3665, %v3657
        %v3850 = vpack.c.b16 %v3666, %v3658
        %v3851 = vpack.c.b16 %v3675, %v3667
        %v3852 = vpack.c.b16 %v3676, %v3668
        %v3853 = vpack.c.b16 %v3677, %v3669
        %v3854 = vpack.c.b16 %v3678, %v3670
        %v3855 = vpack.c.b16 %v3679, %v3671
        %v3856 = vpack.c.b16 %v3680, %v3672
        %v3857 = vpack.c.b16 %v3681, %v3673
        %v3858 = vpack.c.b16 %v3682, %v3674
        %v3859 = vpack.c.b16 %v3691, %v3683
        %v3860 = vpack.c.b16 %v3692, %v3684
        %v3861 = vpack.c.b16 %v3693, %v3685
        %v3862 = vpack.c.b16 %v3694, %v3686
        %v3863 = vpack.c.b16 %v3695, %v3687
        %v3864 = vpack.c.b16 %v3696, %v3688
        %v3865 = vpack.c.b16 %v3697, %v3689
        %v3866 = vpack.c.b16 %v3698, %v3690
        %v3867 = vpack.c.b16 %v3707, %v3699
        %v3868 = vpack.c.b16 %v3708, %v3700
        %v3869 = vpack.c.b16 %v3709, %v3701
        %v3870 = vpack.c.b16 %v3710, %v3702
        %v3871 = vpack.c.b16 %v3711, %v3703
        %v3872 = vpack.c.b16 %v3712, %v3704
        %v3873 = vpack.c.b16 %v3713, %v3705
        %v3874 = vpack.c.b16 %v3714, %v3706
        %v3875 = vpack.c.b16 %v3723, %v3715
        %v3876 = vpack.c.b16 %v3724, %v3716
        %v3877 = vpack.c.b16 %v3725, %v3717
        %v3878 = vpack.c.b16 %v3726, %v3718
        %v3879 = vpack.c.b16 %v3727, %v3719
        %v3880 = vpack.c.b16 %v3728, %v3720
        %v3881 = vpack.c.b16 %v3729, %v3721
        %v3882 = vpack.c.b16 %v3730, %v3722
        %v3883 = vpack.c.b16 %v3739, %v3731
        %v3884 = vpack.c.b16 %v3740, %v3732
        %v3885 = vpack.c.b16 %v3741, %v3733
        %v3886 = vpack.c.b16 %v3742, %v3734
        %v3887 = vpack.c.b16 %v3743, %v3735
        %v3888 = vpack.c.b16 %v3744, %v3736
        %v3889 = vpack.c.b16 %v3745, %v3737
        %v3890 = vpack.c.b16 %v3746, %v3738
        %v3891 = vpack.c.b16 %v3755, %v3747
        %v3892 = vpack.c.b16 %v3756, %v3748
        %v3893 = vpack.c.b16 %v3757, %v3749
        %v3894 = vpack.c.b16 %v3758, %v3750
        %v3895 = vpack.c.b16 %v3759, %v3751
        %v3896 = vpack.c.b16 %v3760, %v3752
        %v3897 = vpack.c.b16 %v3761, %v3753
        %v3898 = vpack.c.b16 %v3762, %v3754
        %v3899 = vpack.c.b16 %v3771, %v3763
        %v3900 = vpack.c.b16 %v3772, %v3764
        %v3901 = vpack.c.b16 %v3773, %v3765
        %v3902 = vpack.c.b16 %v3774, %v3766
        %v3903 = vpack.c.b16 %v3775, %v3767
        %v3904 = vpack.c.b16 %v3776, %v3768
        %v3905 = vpack.c.b16 %v3777, %v3769
        %v3906 = vpack.c.b16 %v3778, %v3770
        %4035 = vmatprep.subr.bf16.mxu0 %v3836
        %4036 = vmatpush1.bf16.msra.mxu0 %v3835
        %4037 = vmatprep.subr.bf16.mxu0 %v3828
        %4038 = vmatpush1.bf16.msra.mxu0 %v3827
        %4039 = vmatprep.subr.bf16.mxu0 %v3820
        %4040 = vmatpush1.bf16.msra.mxu0 %v3819
        %4041 = vmatprep.subr.bf16.mxu0 %v3812
        %4042 = vmatpush1.bf16.msra.mxu0 %v3811
        %4043 = vmatprep.subr.bf16.mxu0 %v3804
        %4044 = vmatpush1.bf16.msra.mxu0 %v3803
        %4045 = vmatprep.subr.bf16.mxu0 %v3796
        %4046 = vmatpush1.bf16.msra.mxu0 %v3795
        %4047 = vmatprep.subr.bf16.mxu0 %v3788
        %4048 = vmatpush1.bf16.msra.mxu0 %v3787
        %4049 = vmatprep.subr.bf16.mxu0 %v3780
        %4050 = vmatpush1.bf16.msra.mxu0 %v3779
        %4051 = vmatprep.subr.bf16.mxu0 %v3900
        %4052 = vmatpush2.bf16.msra.mxu0 %v3899
        %4053 = vmatprep.subr.bf16.mxu0 %v3892
        %4054 = vmatpush2.bf16.msra.mxu0 %v3891
        %4055 = vmatprep.subr.bf16.mxu0 %v3884
        %4056 = vmatpush2.bf16.msra.mxu0 %v3883
        %4057 = vmatprep.subr.bf16.mxu0 %v3876
        %4058 = vmatpush2.bf16.msra.mxu0 %v3875
        %4059 = vmatprep.subr.bf16.mxu0 %v3868
        %4060 = vmatpush2.bf16.msra.mxu0 %v3867
        %4061 = vmatprep.subr.bf16.mxu0 %v3860
        %4062 = vmatpush2.bf16.msra.mxu0 %v3859
        %4063 = vmatprep.subr.bf16.mxu0 %v3852
        %4064 = vmatpush2.bf16.msra.mxu0 %v3851
        %4065 = vmatprep.subr.bf16.mxu0 %v3844
        %4066 = vmatpush2.bf16.msra.mxu0 %v3843
        %4067 = vmatprep.mubr.bf16.mxu0 %v3225
        %4068 = vmatmul.mubr.bf16.gmra.mxu0 %v3224
        %v4069 = vpop.f32.mrf.mxu0
        %v4070 = vadd.f32 %v3358, %v4069
        %v4071 = vpop.f32.mrf.mxu0
        %v4072 = vadd.f32 %v3362, %v4071
        %v4073 = vpop.f32.mrf.mxu0
        %v4074 = vpop.f32.mrf.mxu0
        %4075 = vdwg.mxu0
        %4076 = vmatprep.subr.bf16.mxu0 %v3838
        %4077 = vmatpush1.bf16.msra.mxu0 %v3837
        %4078 = vmatprep.subr.bf16.mxu0 %v3830
        %4079 = vmatpush1.bf16.msra.mxu0 %v3829
        %4080 = vmatprep.subr.bf16.mxu0 %v3822
        %4081 = vmatpush1.bf16.msra.mxu0 %v3821
        %4082 = vmatprep.subr.bf16.mxu0 %v3814
        %4083 = vmatpush1.bf16.msra.mxu0 %v3813
        %4084 = vmatprep.subr.bf16.mxu0 %v3806
        %4085 = vmatpush1.bf16.msra.mxu0 %v3805
        %4086 = vmatprep.subr.bf16.mxu0 %v3798
        %4087 = vmatpush1.bf16.msra.mxu0 %v3797
        %4088 = vmatprep.subr.bf16.mxu0 %v3790
        %4089 = vmatpush1.bf16.msra.mxu0 %v3789
        %4090 = vmatprep.subr.bf16.mxu0 %v3782
        %4091 = vmatpush1.bf16.msra.mxu0 %v3781
        %4092 = vmatprep.subr.bf16.mxu0 %v3902
        %4093 = vmatpush2.bf16.msra.mxu0 %v3901
        %4094 = vmatprep.subr.bf16.mxu0 %v3894
        %4095 = vmatpush2.bf16.msra.mxu0 %v3893
        %4096 = vmatprep.subr.bf16.mxu0 %v3886
        %4097 = vmatpush2.bf16.msra.mxu0 %v3885
        %4098 = vmatprep.subr.bf16.mxu0 %v3878
        %4099 = vmatpush2.bf16.msra.mxu0 %v3877
        %4100 = vmatprep.subr.bf16.mxu0 %v3870
        %4101 = vmatpush2.bf16.msra.mxu0 %v3869
        %4102 = vmatprep.subr.bf16.mxu0 %v3862
        %4103 = vmatpush2.bf16.msra.mxu0 %v3861
        %4104 = vmatprep.subr.bf16.mxu0 %v3854
        %4105 = vmatpush2.bf16.msra.mxu0 %v3853
        %4106 = vmatprep.subr.bf16.mxu0 %v3846
        %4107 = vmatpush2.bf16.msra.mxu0 %v3845
        %4108 = vmatprep.mubr.bf16.mxu0 %v3225
        %4109 = vmatmul.mubr.bf16.gmra.mxu0 %v3224
        %v4110 = vpop.f32.mrf.mxu0
        %v4111 = vadd.f32 %v3366, %v4110
        %v4112 = vpop.f32.mrf.mxu0
        %v4113 = vadd.f32 %v3370, %v4112
        %v4114 = vpop.f32.mrf.mxu0
        %v4115 = vpop.f32.mrf.mxu0
        %4116 = vdwg.mxu0
        %4117 = vmatprep.subr.bf16.mxu0 %v3840
        %4118 = vmatpush1.bf16.msra.mxu0 %v3839
        %4119 = vmatprep.subr.bf16.mxu0 %v3832
        %4120 = vmatpush1.bf16.msra.mxu0 %v3831
        %4121 = vmatprep.subr.bf16.mxu0 %v3824
        %4122 = vmatpush1.bf16.msra.mxu0 %v3823
        %4123 = vmatprep.subr.bf16.mxu0 %v3816
        %4124 = vmatpush1.bf16.msra.mxu0 %v3815
        %4125 = vmatprep.subr.bf16.mxu0 %v3808
        %4126 = vmatpush1.bf16.msra.mxu0 %v3807
        %4127 = vmatprep.subr.bf16.mxu0 %v3800
        %4128 = vmatpush1.bf16.msra.mxu0 %v3799
        %4129 = vmatprep.subr.bf16.mxu0 %v3792
        %4130 = vmatpush1.bf16.msra.mxu0 %v3791
        %4131 = vmatprep.subr.bf16.mxu0 %v3784
        %4132 = vmatpush1.bf16.msra.mxu0 %v3783
        %4133 = vmatprep.subr.bf16.mxu0 %v3904
        %4134 = vmatpush2.bf16.msra.mxu0 %v3903
        %4135 = vmatprep.subr.bf16.mxu0 %v3896
        %4136 = vmatpush2.bf16.msra.mxu0 %v3895
        %4137 = vmatprep.subr.bf16.mxu0 %v3888
        %4138 = vmatpush2.bf16.msra.mxu0 %v3887
        %4139 = vmatprep.subr.bf16.mxu0 %v3880
        %4140 = vmatpush2.bf16.msra.mxu0 %v3879
        %4141 = vmatprep.subr.bf16.mxu0 %v3872
        %4142 = vmatpush2.bf16.msra.mxu0 %v3871
        %4143 = vmatprep.subr.bf16.mxu0 %v3864
        %4144 = vmatpush2.bf16.msra.mxu0 %v3863
        %4145 = vmatprep.subr.bf16.mxu0 %v3856
        %4146 = vmatpush2.bf16.msra.mxu0 %v3855
        %4147 = vmatprep.subr.bf16.mxu0 %v3848
        %4148 = vmatpush2.bf16.msra.mxu0 %v3847
        %4149 = vmatprep.mubr.bf16.mxu0 %v3225
        %4150 = vmatmul.mubr.bf16.gmra.mxu0 %v3224
        %v4151 = vpop.f32.mrf.mxu0
        %v4152 = vadd.f32 %v3374, %v4151
        %v4153 = vpop.f32.mrf.mxu0
        %v4154 = vadd.f32 %v3378, %v4153
        %v4155 = vpop.f32.mrf.mxu0
        %v4156 = vpop.f32.mrf.mxu0
        %4157 = vdwg.mxu0
        %4158 = vmatprep.subr.bf16.mxu0 %v3842
        %4159 = vmatpush1.bf16.msra.mxu0 %v3841
        %4160 = vmatprep.subr.bf16.mxu0 %v3834
        %4161 = vmatpush1.bf16.msra.mxu0 %v3833
        %4162 = vmatprep.subr.bf16.mxu0 %v3826
        %4163 = vmatpush1.bf16.msra.mxu0 %v3825
        %4164 = vmatprep.subr.bf16.mxu0 %v3818
        %4165 = vmatpush1.bf16.msra.mxu0 %v3817
        %4166 = vmatprep.subr.bf16.mxu0 %v3810
        %4167 = vmatpush1.bf16.msra.mxu0 %v3809
        %4168 = vmatprep.subr.bf16.mxu0 %v3802
        %4169 = vmatpush1.bf16.msra.mxu0 %v3801
        %4170 = vmatprep.subr.bf16.mxu0 %v3794
        %4171 = vmatpush1.bf16.msra.mxu0 %v3793
        %4172 = vmatprep.subr.bf16.mxu0 %v3786
        %4173 = vmatpush1.bf16.msra.mxu0 %v3785
        %4174 = vmatprep.subr.bf16.mxu0 %v3906
        %4175 = vmatpush2.bf16.msra.mxu0 %v3905
        %4176 = vmatprep.subr.bf16.mxu0 %v3898
        %4177 = vmatpush2.bf16.msra.mxu0 %v3897
        %4178 = vmatprep.subr.bf16.mxu0 %v3890
        %4179 = vmatpush2.bf16.msra.mxu0 %v3889
        %4180 = vmatprep.subr.bf16.mxu0 %v3882
        %4181 = vmatpush2.bf16.msra.mxu0 %v3881
        %4182 = vmatprep.subr.bf16.mxu0 %v3874
        %4183 = vmatpush2.bf16.msra.mxu0 %v3873
        %4184 = vmatprep.subr.bf16.mxu0 %v3866
        %4185 = vmatpush2.bf16.msra.mxu0 %v3865
        %4186 = vmatprep.subr.bf16.mxu0 %v3858
        %4187 = vmatpush2.bf16.msra.mxu0 %v3857
        %4188 = vmatprep.subr.bf16.mxu0 %v3850
        %4189 = vmatpush2.bf16.msra.mxu0 %v3849
        %4190 = vmatprep.mubr.bf16.mxu0 %v3225
        %4191 = vmatmul.mubr.bf16.gmra.mxu0 %v3224
        %v4192 = vpop.f32.mrf.mxu0
        %v4193 = vadd.f32 %v3382, %v4192
        %v4194 = vpop.f32.mrf.mxu0
        %v4195 = vadd.f32 %v3386, %v4194
        %v4196 = vpop.f32.mrf.mxu0
        %v4197 = vpop.f32.mrf.mxu0
        %4198 = vdwg.mxu0
        %v4199 = vrot.slane %v4070, 4
        %v4200 = vadd.f32 %v4070, %v4199
        %v4201 = vrot.slane %v4200, 2
        %v4202 = vadd.f32 %v4200, %v4201
        %v4203 = vrot.slane %v4202, 1
        %v4204 = vadd.f32 %v4202, %v4203
        %v4205 = vrot.slane %v4072, 4
        %v4206 = vadd.f32 %v4072, %v4205
        %v4207 = vrot.slane %v4206, 2
        %v4208 = vadd.f32 %v4206, %v4207
        %v4209 = vrot.slane %v4208, 1
        %v4210 = vadd.f32 %v4208, %v4209
        %v4211 = vrot.slane %v4111, 4
        %v4212 = vadd.f32 %v4111, %v4211
        %v4213 = vrot.slane %v4212, 2
        %v4214 = vadd.f32 %v4212, %v4213
        %v4215 = vrot.slane %v4214, 1
        %v4216 = vadd.f32 %v4214, %v4215
        %v4217 = vrot.slane %v4113, 4
        %v4218 = vadd.f32 %v4113, %v4217
        %v4219 = vrot.slane %v4218, 2
        %v4220 = vadd.f32 %v4218, %v4219
        %v4221 = vrot.slane %v4220, 1
        %v4222 = vadd.f32 %v4220, %v4221
        %v4223 = vrot.slane %v4152, 4
        %v4224 = vadd.f32 %v4152, %v4223
        %v4225 = vrot.slane %v4224, 2
        %v4226 = vadd.f32 %v4224, %v4225
        %v4227 = vrot.slane %v4226, 1
        %v4228 = vadd.f32 %v4226, %v4227
        %v4229 = vrot.slane %v4154, 4
        %v4230 = vadd.f32 %v4154, %v4229
        %v4231 = vrot.slane %v4230, 2
        %v4232 = vadd.f32 %v4230, %v4231
        %v4233 = vrot.slane %v4232, 1
        %v4234 = vadd.f32 %v4232, %v4233
        %v4235 = vrot.slane %v4193, 4
        %v4236 = vadd.f32 %v4193, %v4235
        %v4237 = vrot.slane %v4236, 2
        %v4238 = vadd.f32 %v4236, %v4237
        %v4239 = vrot.slane %v4238, 1
        %v4240 = vadd.f32 %v4238, %v4239
        %v4241 = vrot.slane %v4195, 4
        %v4242 = vadd.f32 %v4195, %v4241
        %v4243 = vrot.slane %v4242, 2
        %v4244 = vadd.f32 %v4242, %v4243
        %v4245 = vrot.slane %v4244, 1
        %v4246 = vadd.f32 %v4244, %v4245
        %v4247 = vrcp.pop 8.0
        %v4248 = vmul.f32 %v4204, %v4247
        %v4249 = vmul.f32 %v4210, %v4247
        %v4250 = vmul.f32 %v4216, %v4247
        %v4251 = vmul.f32 %v4222, %v4247
        %v4252 = vmul.f32 %v4228, %v4247
        %v4253 = vmul.f32 %v4234, %v4247
        %v4254 = vmul.f32 %v4240, %v4247
        %v4255 = vmul.f32 %v4246, %v4247
        %v4256 = vsub.f32 %v4070, %v4248
        %v4257 = vsub.f32 %v4072, %v4249
        %v4258 = vsub.f32 %v4111, %v4250
        %v4259 = vsub.f32 %v4113, %v4251
        %v4260 = vsub.f32 %v4152, %v4252
        %v4261 = vsub.f32 %v4154, %v4253
        %v4262 = vsub.f32 %v4193, %v4254
        %v4263 = vsub.f32 %v4195, %v4255
        %v4264 = vmul.f32 %v4256, %v4256
        %v4265 = vmul.f32 %v4257, %v4257
        %v4266 = vmul.f32 %v4258, %v4258
        %v4267 = vmul.f32 %v4259, %v4259
        %v4268 = vmul.f32 %v4260, %v4260
        %v4269 = vmul.f32 %v4261, %v4261
        %v4270 = vmul.f32 %v4262, %v4262
        %v4271 = vmul.f32 %v4263, %v4263
        %v4272 = vrot.slane %v4264, 4
        %v4273 = vadd.f32 %v4264, %v4272
        %v4274 = vrot.slane %v4273, 2
        %v4275 = vadd.f32 %v4273, %v4274
        %v4276 = vrot.slane %v4275, 1
        %v4277 = vadd.f32 %v4275, %v4276
        %v4278 = vrot.slane %v4265, 4
        %v4279 = vadd.f32 %v4265, %v4278
        %v4280 = vrot.slane %v4279, 2
        %v4281 = vadd.f32 %v4279, %v4280
        %v4282 = vrot.slane %v4281, 1
        %v4283 = vadd.f32 %v4281, %v4282
        %v4284 = vrot.slane %v4266, 4
        %v4285 = vadd.f32 %v4266, %v4284
        %v4286 = vrot.slane %v4285, 2
        %v4287 = vadd.f32 %v4285, %v4286
        %v4288 = vrot.slane %v4287, 1
        %v4289 = vadd.f32 %v4287, %v4288
        %v4290 = vrot.slane %v4267, 4
        %v4291 = vadd.f32 %v4267, %v4290
        %v4292 = vrot.slane %v4291, 2
        %v4293 = vadd.f32 %v4291, %v4292
        %v4294 = vrot.slane %v4293, 1
        %v4295 = vadd.f32 %v4293, %v4294
        %v4296 = vrot.slane %v4268, 4
        %v4297 = vadd.f32 %v4268, %v4296
        %v4298 = vrot.slane %v4297, 2
        %v4299 = vadd.f32 %v4297, %v4298
        %v4300 = vrot.slane %v4299, 1
        %v4301 = vadd.f32 %v4299, %v4300
        %v4302 = vrot.slane %v4269, 4
        %v4303 = vadd.f32 %v4269, %v4302
        %v4304 = vrot.slane %v4303, 2
        %v4305 = vadd.f32 %v4303, %v4304
        %v4306 = vrot.slane %v4305, 1
        %v4307 = vadd.f32 %v4305, %v4306
        %v4308 = vrot.slane %v4270, 4
        %v4309 = vadd.f32 %v4270, %v4308
        %v4310 = vrot.slane %v4309, 2
        %v4311 = vadd.f32 %v4309, %v4310
        %v4312 = vrot.slane %v4311, 1
        %v4313 = vadd.f32 %v4311, %v4312
        %v4314 = vrot.slane %v4271, 4
        %v4315 = vadd.f32 %v4271, %v4314
        %v4316 = vrot.slane %v4315, 2
        %v4317 = vadd.f32 %v4315, %v4316
        %v4318 = vrot.slane %v4317, 1
        %v4319 = vadd.f32 %v4317, %v4318
        %v4320 = vmul.f32 %v4277, %v4247
        %v4321 = vmul.f32 %v4283, %v4247
        %v4322 = vmul.f32 %v4289, %v4247
        %v4323 = vmul.f32 %v4295, %v4247
        %v4324 = vmul.f32 %v4301, %v4247
        %v4325 = vmul.f32 %v4307, %v4247
        %v4326 = vmul.f32 %v4313, %v4247
        %v4327 = vmul.f32 %v4319, %v4247
        %v4328 = vadd.f32 %v4320, 1e-05
        %v4329 = vadd.f32 %v4321, 1e-05
        %v4330 = vadd.f32 %v4322, 1e-05
        %v4331 = vadd.f32 %v4323, 1e-05
        %v4332 = vadd.f32 %v4324, 1e-05
        %v4333 = vadd.f32 %v4325, 1e-05
        %v4334 = vadd.f32 %v4326, 1e-05
        %v4335 = vadd.f32 %v4327, 1e-05
        %v4336 = vrsqrt.pop %v4328
        %v4337 = vrsqrt.pop %v4329
        %v4338 = vrsqrt.pop %v4330
        %v4339 = vrsqrt.pop %v4331
        %v4340 = vrsqrt.pop %v4332
        %v4341 = vrsqrt.pop %v4333
        %v4342 = vrsqrt.pop %v4334
        %v4343 = vrsqrt.pop %v4335
        %v4344 = vmul.f32 %v4256, %v4336
        %v4345 = vmul.f32 %v4257, %v4337
        %v4346 = vmul.f32 %v4258, %v4338
        %v4347 = vmul.f32 %v4259, %v4339
        %v4348 = vmul.f32 %v4260, %v4340
        %v4349 = vmul.f32 %v4261, %v4341
        %v4350 = vmul.f32 %v4262, %v4342
        %v4351 = vmul.f32 %v4263, %v4343
        %v4353 = vlaneseq
        %v4354 = vshrl.u32 %v4353, 7
        %v4355 = vsub.s32 0, %v4354
        %v4356 = vrot.slane %v3219, %v4355
        %v4357 = vlaneseq
        %v4358 = vshrl.u32 %v4357, 7
        %v4359 = vsub.s32 1, %v4358
        %v4360 = vrot.slane %v3219, %v4359
        %v4361 = vlaneseq
        %v4362 = vshrl.u32 %v4361, 7
        %v4363 = vsub.s32 2, %v4362
        %v4364 = vrot.slane %v3219, %v4363
        %v4365 = vlaneseq
        %v4366 = vshrl.u32 %v4365, 7
        %v4367 = vsub.s32 3, %v4366
        %v4368 = vrot.slane %v3219, %v4367
        %v4369 = vlaneseq
        %v4370 = vshrl.u32 %v4369, 7
        %v4371 = vsub.s32 4, %v4370
        %v4372 = vrot.slane %v3219, %v4371
        %v4373 = vlaneseq
        %v4374 = vshrl.u32 %v4373, 7
        %v4375 = vsub.s32 5, %v4374
        %v4376 = vrot.slane %v3219, %v4375
        %v4377 = vlaneseq
        %v4378 = vshrl.u32 %v4377, 7
        %v4379 = vsub.s32 6, %v4378
        %v4380 = vrot.slane %v3219, %v4379
        %v4381 = vlaneseq
        %v4382 = vshrl.u32 %v4381, 7
        %v4383 = vsub.s32 7, %v4382
        %v4384 = vrot.slane %v3219, %v4383
        %v4393 = vmul.f32 %v4344, %v4356
        %v4394 = vmul.f32 %v4345, %v4360
        %v4395 = vmul.f32 %v4346, %v4364
        %v4396 = vmul.f32 %v4347, %v4368
        %v4397 = vmul.f32 %v4348, %v4372
        %v4398 = vmul.f32 %v4349, %v4376
        %v4399 = vmul.f32 %v4350, %v4380
        %v4400 = vmul.f32 %v4351, %v4384
        %v4402 = vlaneseq
        %v4403 = vshrl.u32 %v4402, 7
        %v4404 = vsub.s32 0, %v4403
        %v4405 = vrot.slane %v3220, %v4404
        %v4406 = vlaneseq
        %v4407 = vshrl.u32 %v4406, 7
        %v4408 = vsub.s32 1, %v4407
        %v4409 = vrot.slane %v3220, %v4408
        %v4410 = vlaneseq
        %v4411 = vshrl.u32 %v4410, 7
        %v4412 = vsub.s32 2, %v4411
        %v4413 = vrot.slane %v3220, %v4412
        %v4414 = vlaneseq
        %v4415 = vshrl.u32 %v4414, 7
        %v4416 = vsub.s32 3, %v4415
        %v4417 = vrot.slane %v3220, %v4416
        %v4418 = vlaneseq
        %v4419 = vshrl.u32 %v4418, 7
        %v4420 = vsub.s32 4, %v4419
        %v4421 = vrot.slane %v3220, %v4420
        %v4422 = vlaneseq
        %v4423 = vshrl.u32 %v4422, 7
        %v4424 = vsub.s32 5, %v4423
        %v4425 = vrot.slane %v3220, %v4424
        %v4426 = vlaneseq
        %v4427 = vshrl.u32 %v4426, 7
        %v4428 = vsub.s32 6, %v4427
        %v4429 = vrot.slane %v3220, %v4428
        %v4430 = vlaneseq
        %v4431 = vshrl.u32 %v4430, 7
        %v4432 = vsub.s32 7, %v4431
        %v4433 = vrot.slane %v3220, %v4432
        %v4442 = vadd.f32 %v4393, %v4405
        %v4443 = vadd.f32 %v4394, %v4409
        %v4444 = vadd.f32 %v4395, %v4413
        %v4445 = vadd.f32 %v4396, %v4417
        %v4446 = vadd.f32 %v4397, %v4421
        %v4447 = vadd.f32 %v4398, %v4425
        %v4448 = vadd.f32 %v4399, %v4429
        %v4449 = vadd.f32 %v4400, %v4433
        %v4450 = vmax.f32 %v4442, 0.0
        %v4451 = vmax.f32 %v4443, 0.0
        %v4452 = vmax.f32 %v4444, 0.0
        %v4453 = vmax.f32 %v4445, 0.0
        %v4454 = vmax.f32 %v4446, 0.0
        %v4455 = vmax.f32 %v4447, 0.0
        %v4456 = vmax.f32 %v4448, 0.0
        %v4457 = vmax.f32 %v4449, 0.0
        %v4458 = vpack.c.bf16 %v4450, %v4450
        %v4459 = vpack.c.bf16 %v4451, %v4451
        %v4460 = vpack.c.bf16 %v4452, %v4452
        %v4461 = vpack.c.bf16 %v4453, %v4453
        %v4462 = vpack.c.bf16 %v4454, %v4454
        %v4463 = vpack.c.bf16 %v4455, %v4455
        %v4464 = vpack.c.bf16 %v4456, %v4456
        %v4465 = vpack.c.bf16 %v4457, %v4457
        %v4466 = vld [vmem:[%s269] sm:$0xff]
        %v4467 = vld [vmem:[%s269 + $0x8] sm:$0xff]
        %v4468 = vld [vmem:[%s269 + $0x10] sm:$0xff]
        %v4469 = vld [vmem:[%s269 + $0x18] sm:$0xff]
        %v4470 = vld [vmem:[%s269 + $0x20] sm:$0xff]
        %v4471 = vld [vmem:[%s269 + $0x28] sm:$0xff]
        %v4472 = vld [vmem:[%s269 + $0x30] sm:$0xff]
        %v4473 = vld [vmem:[%s269 + $0x38] sm:$0xff]
        %v4474 = vld [vmem:[%s269 + $0x40] sm:$0xff]
        %v4475 = vld [vmem:[%s269 + $0x48] sm:$0xff]
        %v4476 = vld [vmem:[%s269 + $0x50] sm:$0xff]
        %v4477 = vld [vmem:[%s269 + $0x58] sm:$0xff]
        %v4478 = vld [vmem:[%s269 + $0x60] sm:$0xff]
        %v4479 = vld [vmem:[%s269 + $0x68] sm:$0xff]
        %v4480 = vld [vmem:[%s269 + $0x70] sm:$0xff]
        %v4481 = vld [vmem:[%s269 + $0x78] sm:$0xff]
        %v4482 = vld [vmem:[%s269 + $0x80] sm:$0xff]
        %v4483 = vld [vmem:[%s269 + $0x88] sm:$0xff]
        %v4484 = vld [vmem:[%s269 + $0x90] sm:$0xff]
        %v4485 = vld [vmem:[%s269 + $0x98] sm:$0xff]
        %v4486 = vld [vmem:[%s269 + $0xa0] sm:$0xff]
        %v4487 = vld [vmem:[%s269 + $0xa8] sm:$0xff]
        %v4488 = vld [vmem:[%s269 + $0xb0] sm:$0xff]
        %v4489 = vld [vmem:[%s269 + $0xb8] sm:$0xff]
        %v4490 = vld [vmem:[%s269 + $0xc0] sm:$0xff]
        %v4491 = vld [vmem:[%s269 + $0xc8] sm:$0xff]
        %v4492 = vld [vmem:[%s269 + $0xd0] sm:$0xff]
        %v4493 = vld [vmem:[%s269 + $0xd8] sm:$0xff]
        %v4494 = vld [vmem:[%s269 + $0xe0] sm:$0xff]
        %v4495 = vld [vmem:[%s269 + $0xe8] sm:$0xff]
        %v4496 = vld [vmem:[%s269 + $0xf0] sm:$0xff]
        %v4497 = vld [vmem:[%s269 + $0xf8] sm:$0xff]
        %v4498 = vld [vmem:[%s269 + $0x100] sm:$0xff]
        %v4499 = vld [vmem:[%s269 + $0x108] sm:$0xff]
        %v4500 = vld [vmem:[%s269 + $0x110] sm:$0xff]
        %v4501 = vld [vmem:[%s269 + $0x118] sm:$0xff]
        %v4502 = vld [vmem:[%s269 + $0x120] sm:$0xff]
        %v4503 = vld [vmem:[%s269 + $0x128] sm:$0xff]
        %v4504 = vld [vmem:[%s269 + $0x130] sm:$0xff]
        %v4505 = vld [vmem:[%s269 + $0x138] sm:$0xff]
        %v4506 = vld [vmem:[%s269 + $0x140] sm:$0xff]
        %v4507 = vld [vmem:[%s269 + $0x148] sm:$0xff]
        %v4508 = vld [vmem:[%s269 + $0x150] sm:$0xff]
        %v4509 = vld [vmem:[%s269 + $0x158] sm:$0xff]
        %v4510 = vld [vmem:[%s269 + $0x160] sm:$0xff]
        %v4511 = vld [vmem:[%s269 + $0x168] sm:$0xff]
        %v4512 = vld [vmem:[%s269 + $0x170] sm:$0xff]
        %v4513 = vld [vmem:[%s269 + $0x178] sm:$0xff]
        %v4514 = vld [vmem:[%s269 + $0x180] sm:$0xff]
        %v4515 = vld [vmem:[%s269 + $0x188] sm:$0xff]
        %v4516 = vld [vmem:[%s269 + $0x190] sm:$0xff]
        %v4517 = vld [vmem:[%s269 + $0x198] sm:$0xff]
        %v4518 = vld [vmem:[%s269 + $0x1a0] sm:$0xff]
        %v4519 = vld [vmem:[%s269 + $0x1a8] sm:$0xff]
        %v4520 = vld [vmem:[%s269 + $0x1b0] sm:$0xff]
        %v4521 = vld [vmem:[%s269 + $0x1b8] sm:$0xff]
        %v4522 = vld [vmem:[%s269 + $0x1c0] sm:$0xff]
        %v4523 = vld [vmem:[%s269 + $0x1c8] sm:$0xff]
        %v4524 = vld [vmem:[%s269 + $0x1d0] sm:$0xff]
        %v4525 = vld [vmem:[%s269 + $0x1d8] sm:$0xff]
        %v4526 = vld [vmem:[%s269 + $0x1e0] sm:$0xff]
        %v4527 = vld [vmem:[%s269 + $0x1e8] sm:$0xff]
        %v4528 = vld [vmem:[%s269 + $0x1f0] sm:$0xff]
        %v4529 = vld [vmem:[%s269 + $0x1f8] sm:$0xff]
        %v4530 = vld [vmem:[%s269 + $0x200] sm:$0xff]
        %v4531 = vld [vmem:[%s269 + $0x208] sm:$0xff]
        %v4532 = vld [vmem:[%s269 + $0x210] sm:$0xff]
        %v4533 = vld [vmem:[%s269 + $0x218] sm:$0xff]
        %v4534 = vld [vmem:[%s269 + $0x220] sm:$0xff]
        %v4535 = vld [vmem:[%s269 + $0x228] sm:$0xff]
        %v4536 = vld [vmem:[%s269 + $0x230] sm:$0xff]
        %v4537 = vld [vmem:[%s269 + $0x238] sm:$0xff]
        %v4538 = vld [vmem:[%s269 + $0x240] sm:$0xff]
        %v4539 = vld [vmem:[%s269 + $0x248] sm:$0xff]
        %v4540 = vld [vmem:[%s269 + $0x250] sm:$0xff]
        %v4541 = vld [vmem:[%s269 + $0x258] sm:$0xff]
        %v4542 = vld [vmem:[%s269 + $0x260] sm:$0xff]
        %v4543 = vld [vmem:[%s269 + $0x268] sm:$0xff]
        %v4544 = vld [vmem:[%s269 + $0x270] sm:$0xff]
        %v4545 = vld [vmem:[%s269 + $0x278] sm:$0xff]
        %v4546 = vld [vmem:[%s269 + $0x280] sm:$0xff]
        %v4547 = vld [vmem:[%s269 + $0x288] sm:$0xff]
        %v4548 = vld [vmem:[%s269 + $0x290] sm:$0xff]
        %v4549 = vld [vmem:[%s269 + $0x298] sm:$0xff]
        %v4550 = vld [vmem:[%s269 + $0x2a0] sm:$0xff]
        %v4551 = vld [vmem:[%s269 + $0x2a8] sm:$0xff]
        %v4552 = vld [vmem:[%s269 + $0x2b0] sm:$0xff]
        %v4553 = vld [vmem:[%s269 + $0x2b8] sm:$0xff]
        %v4554 = vld [vmem:[%s269 + $0x2c0] sm:$0xff]
        %v4555 = vld [vmem:[%s269 + $0x2c8] sm:$0xff]
        %v4556 = vld [vmem:[%s269 + $0x2d0] sm:$0xff]
        %v4557 = vld [vmem:[%s269 + $0x2d8] sm:$0xff]
        %v4558 = vld [vmem:[%s269 + $0x2e0] sm:$0xff]
        %v4559 = vld [vmem:[%s269 + $0x2e8] sm:$0xff]
        %v4560 = vld [vmem:[%s269 + $0x2f0] sm:$0xff]
        %v4561 = vld [vmem:[%s269 + $0x2f8] sm:$0xff]
        %v4562 = vld [vmem:[%s269 + $0x300] sm:$0xff]
        %v4563 = vld [vmem:[%s269 + $0x308] sm:$0xff]
        %v4564 = vld [vmem:[%s269 + $0x310] sm:$0xff]
        %v4565 = vld [vmem:[%s269 + $0x318] sm:$0xff]
        %v4566 = vld [vmem:[%s269 + $0x320] sm:$0xff]
        %v4567 = vld [vmem:[%s269 + $0x328] sm:$0xff]
        %v4568 = vld [vmem:[%s269 + $0x330] sm:$0xff]
        %v4569 = vld [vmem:[%s269 + $0x338] sm:$0xff]
        %v4570 = vld [vmem:[%s269 + $0x340] sm:$0xff]
        %v4571 = vld [vmem:[%s269 + $0x348] sm:$0xff]
        %v4572 = vld [vmem:[%s269 + $0x350] sm:$0xff]
        %v4573 = vld [vmem:[%s269 + $0x358] sm:$0xff]
        %v4574 = vld [vmem:[%s269 + $0x360] sm:$0xff]
        %v4575 = vld [vmem:[%s269 + $0x368] sm:$0xff]
        %v4576 = vld [vmem:[%s269 + $0x370] sm:$0xff]
        %v4577 = vld [vmem:[%s269 + $0x378] sm:$0xff]
        %v4578 = vld [vmem:[%s269 + $0x380] sm:$0xff]
        %v4579 = vld [vmem:[%s269 + $0x388] sm:$0xff]
        %v4580 = vld [vmem:[%s269 + $0x390] sm:$0xff]
        %v4581 = vld [vmem:[%s269 + $0x398] sm:$0xff]
        %v4582 = vld [vmem:[%s269 + $0x3a0] sm:$0xff]
        %v4583 = vld [vmem:[%s269 + $0x3a8] sm:$0xff]
        %v4584 = vld [vmem:[%s269 + $0x3b0] sm:$0xff]
        %v4585 = vld [vmem:[%s269 + $0x3b8] sm:$0xff]
        %v4586 = vld [vmem:[%s269 + $0x3c0] sm:$0xff]
        %v4587 = vld [vmem:[%s269 + $0x3c8] sm:$0xff]
        %v4588 = vld [vmem:[%s269 + $0x3d0] sm:$0xff]
        %v4589 = vld [vmem:[%s269 + $0x3d8] sm:$0xff]
        %v4590 = vld [vmem:[%s269 + $0x3e0] sm:$0xff]
        %v4591 = vld [vmem:[%s269 + $0x3e8] sm:$0xff]
        %v4592 = vld [vmem:[%s269 + $0x3f0] sm:$0xff]
        %v4593 = vld [vmem:[%s269 + $0x3f8] sm:$0xff]
        %v4595 = vlaneseq
        %v4596 = vshrl.u32 %v4595, 7
        %v4597 = vsub.s32 0, %v4596
        %v4598 = vrot.slane %v3221, %v4597
        %v4599 = vlaneseq
        %v4600 = vshrl.u32 %v4599, 7
        %v4601 = vsub.s32 1, %v4600
        %v4602 = vrot.slane %v3221, %v4601
        %v4733 = vunpack.c.l.b16 %v4466
        %v4734 = vunpack.c.h.b16 %v4466
        %v4735 = vunpack.c.l.b16 %v4467
        %v4736 = vunpack.c.h.b16 %v4467
        %v4737 = vunpack.c.l.b16 %v4468
        %v4738 = vunpack.c.h.b16 %v4468
        %v4739 = vunpack.c.l.b16 %v4469
        %v4740 = vunpack.c.h.b16 %v4469
        %v4741 = vunpack.c.l.b16 %v4470
        %v4742 = vunpack.c.h.b16 %v4470
        %v4743 = vunpack.c.l.b16 %v4471
        %v4744 = vunpack.c.h.b16 %v4471
        %v4745 = vunpack.c.l.b16 %v4472
        %v4746 = vunpack.c.h.b16 %v4472
        %v4747 = vunpack.c.l.b16 %v4473
        %v4748 = vunpack.c.h.b16 %v4473
        %v4749 = vunpack.c.l.b16 %v4474
        %v4750 = vunpack.c.h.b16 %v4474
        %v4751 = vunpack.c.l.b16 %v4475
        %v4752 = vunpack.c.h.b16 %v4475
        %v4753 = vunpack.c.l.b16 %v4476
        %v4754 = vunpack.c.h.b16 %v4476
        %v4755 = vunpack.c.l.b16 %v4477
        %v4756 = vunpack.c.h.b16 %v4477
        %v4757 = vunpack.c.l.b16 %v4478
        %v4758 = vunpack.c.h.b16 %v4478
        %v4759 = vunpack.c.l.b16 %v4479
        %v4760 = vunpack.c.h.b16 %v4479
        %v4761 = vunpack.c.l.b16 %v4480
        %v4762 = vunpack.c.h.b16 %v4480
        %v4763 = vunpack.c.l.b16 %v4481
        %v4764 = vunpack.c.h.b16 %v4481
        %v4765 = vunpack.c.l.b16 %v4482
        %v4766 = vunpack.c.h.b16 %v4482
        %v4767 = vunpack.c.l.b16 %v4483
        %v4768 = vunpack.c.h.b16 %v4483
        %v4769 = vunpack.c.l.b16 %v4484
        %v4770 = vunpack.c.h.b16 %v4484
        %v4771 = vunpack.c.l.b16 %v4485
        %v4772 = vunpack.c.h.b16 %v4485
        %v4773 = vunpack.c.l.b16 %v4486
        %v4774 = vunpack.c.h.b16 %v4486
        %v4775 = vunpack.c.l.b16 %v4487
        %v4776 = vunpack.c.h.b16 %v4487
        %v4777 = vunpack.c.l.b16 %v4488
        %v4778 = vunpack.c.h.b16 %v4488
        %v4779 = vunpack.c.l.b16 %v4489
        %v4780 = vunpack.c.h.b16 %v4489
        %v4781 = vunpack.c.l.b16 %v4490
        %v4782 = vunpack.c.h.b16 %v4490
        %v4783 = vunpack.c.l.b16 %v4491
        %v4784 = vunpack.c.h.b16 %v4491
        %v4785 = vunpack.c.l.b16 %v4492
        %v4786 = vunpack.c.h.b16 %v4492
        %v4787 = vunpack.c.l.b16 %v4493
        %v4788 = vunpack.c.h.b16 %v4493
        %v4789 = vunpack.c.l.b16 %v4494
        %v4790 = vunpack.c.h.b16 %v4494
        %v4791 = vunpack.c.l.b16 %v4495
        %v4792 = vunpack.c.h.b16 %v4495
        %v4793 = vunpack.c.l.b16 %v4496
        %v4794 = vunpack.c.h.b16 %v4496
        %v4795 = vunpack.c.l.b16 %v4497
        %v4796 = vunpack.c.h.b16 %v4497
        %v4797 = vunpack.c.l.b16 %v4498
        %v4798 = vunpack.c.h.b16 %v4498
        %v4799 = vunpack.c.l.b16 %v4499
        %v4800 = vunpack.c.h.b16 %v4499
        %v4801 = vunpack.c.l.b16 %v4500
        %v4802 = vunpack.c.h.b16 %v4500
        %v4803 = vunpack.c.l.b16 %v4501
        %v4804 = vunpack.c.h.b16 %v4501
        %v4805 = vunpack.c.l.b16 %v4502
        %v4806 = vunpack.c.h.b16 %v4502
        %v4807 = vunpack.c.l.b16 %v4503
        %v4808 = vunpack.c.h.b16 %v4503
        %v4809 = vunpack.c.l.b16 %v4504
        %v4810 = vunpack.c.h.b16 %v4504
        %v4811 = vunpack.c.l.b16 %v4505
        %v4812 = vunpack.c.h.b16 %v4505
        %v4813 = vunpack.c.l.b16 %v4506
        %v4814 = vunpack.c.h.b16 %v4506
        %v4815 = vunpack.c.l.b16 %v4507
        %v4816 = vunpack.c.h.b16 %v4507
        %v4817 = vunpack.c.l.b16 %v4508
        %v4818 = vunpack.c.h.b16 %v4508
        %v4819 = vunpack.c.l.b16 %v4509
        %v4820 = vunpack.c.h.b16 %v4509
        %v4821 = vunpack.c.l.b16 %v4510
        %v4822 = vunpack.c.h.b16 %v4510
        %v4823 = vunpack.c.l.b16 %v4511
        %v4824 = vunpack.c.h.b16 %v4511
        %v4825 = vunpack.c.l.b16 %v4512
        %v4826 = vunpack.c.h.b16 %v4512
        %v4827 = vunpack.c.l.b16 %v4513
        %v4828 = vunpack.c.h.b16 %v4513
        %v4829 = vunpack.c.l.b16 %v4514
        %v4830 = vunpack.c.h.b16 %v4514
        %v4831 = vunpack.c.l.b16 %v4515
        %v4832 = vunpack.c.h.b16 %v4515
        %v4833 = vunpack.c.l.b16 %v4516
        %v4834 = vunpack.c.h.b16 %v4516
        %v4835 = vunpack.c.l.b16 %v4517
        %v4836 = vunpack.c.h.b16 %v4517
        %v4837 = vunpack.c.l.b16 %v4518
        %v4838 = vunpack.c.h.b16 %v4518
        %v4839 = vunpack.c.l.b16 %v4519
        %v4840 = vunpack.c.h.b16 %v4519
        %v4841 = vunpack.c.l.b16 %v4520
        %v4842 = vunpack.c.h.b16 %v4520
        %v4843 = vunpack.c.l.b16 %v4521
        %v4844 = vunpack.c.h.b16 %v4521
        %v4845 = vunpack.c.l.b16 %v4522
        %v4846 = vunpack.c.h.b16 %v4522
        %v4847 = vunpack.c.l.b16 %v4523
        %v4848 = vunpack.c.h.b16 %v4523
        %v4849 = vunpack.c.l.b16 %v4524
        %v4850 = vunpack.c.h.b16 %v4524
        %v4851 = vunpack.c.l.b16 %v4525
        %v4852 = vunpack.c.h.b16 %v4525
        %v4853 = vunpack.c.l.b16 %v4526
        %v4854 = vunpack.c.h.b16 %v4526
        %v4855 = vunpack.c.l.b16 %v4527
        %v4856 = vunpack.c.h.b16 %v4527
        %v4857 = vunpack.c.l.b16 %v4528
        %v4858 = vunpack.c.h.b16 %v4528
        %v4859 = vunpack.c.l.b16 %v4529
        %v4860 = vunpack.c.h.b16 %v4529
        %v4861 = vunpack.c.l.b16 %v4530
        %v4862 = vunpack.c.h.b16 %v4530
        %v4863 = vunpack.c.l.b16 %v4531
        %v4864 = vunpack.c.h.b16 %v4531
        %v4865 = vunpack.c.l.b16 %v4532
        %v4866 = vunpack.c.h.b16 %v4532
        %v4867 = vunpack.c.l.b16 %v4533
        %v4868 = vunpack.c.h.b16 %v4533
        %v4869 = vunpack.c.l.b16 %v4534
        %v4870 = vunpack.c.h.b16 %v4534
        %v4871 = vunpack.c.l.b16 %v4535
        %v4872 = vunpack.c.h.b16 %v4535
        %v4873 = vunpack.c.l.b16 %v4536
        %v4874 = vunpack.c.h.b16 %v4536
        %v4875 = vunpack.c.l.b16 %v4537
        %v4876 = vunpack.c.h.b16 %v4537
        %v4877 = vunpack.c.l.b16 %v4538
        %v4878 = vunpack.c.h.b16 %v4538
        %v4879 = vunpack.c.l.b16 %v4539
        %v4880 = vunpack.c.h.b16 %v4539
        %v4881 = vunpack.c.l.b16 %v4540
        %v4882 = vunpack.c.h.b16 %v4540
        %v4883 = vunpack.c.l.b16 %v4541
        %v4884 = vunpack.c.h.b16 %v4541
        %v4885 = vunpack.c.l.b16 %v4542
        %v4886 = vunpack.c.h.b16 %v4542
        %v4887 = vunpack.c.l.b16 %v4543
        %v4888 = vunpack.c.h.b16 %v4543
        %v4889 = vunpack.c.l.b16 %v4544
        %v4890 = vunpack.c.h.b16 %v4544
        %v4891 = vunpack.c.l.b16 %v4545
        %v4892 = vunpack.c.h.b16 %v4545
        %v4893 = vunpack.c.l.b16 %v4546
        %v4894 = vunpack.c.h.b16 %v4546
        %v4895 = vunpack.c.l.b16 %v4547
        %v4896 = vunpack.c.h.b16 %v4547
        %v4897 = vunpack.c.l.b16 %v4548
        %v4898 = vunpack.c.h.b16 %v4548
        %v4899 = vunpack.c.l.b16 %v4549
        %v4900 = vunpack.c.h.b16 %v4549
        %v4901 = vunpack.c.l.b16 %v4550
        %v4902 = vunpack.c.h.b16 %v4550
        %v4903 = vunpack.c.l.b16 %v4551
        %v4904 = vunpack.c.h.b16 %v4551
        %v4905 = vunpack.c.l.b16 %v4552
        %v4906 = vunpack.c.h.b16 %v4552
        %v4907 = vunpack.c.l.b16 %v4553
        %v4908 = vunpack.c.h.b16 %v4553
        %v4909 = vunpack.c.l.b16 %v4554
        %v4910 = vunpack.c.h.b16 %v4554
        %v4911 = vunpack.c.l.b16 %v4555
        %v4912 = vunpack.c.h.b16 %v4555
        %v4913 = vunpack.c.l.b16 %v4556
        %v4914 = vunpack.c.h.b16 %v4556
        %v4915 = vunpack.c.l.b16 %v4557
        %v4916 = vunpack.c.h.b16 %v4557
        %v4917 = vunpack.c.l.b16 %v4558
        %v4918 = vunpack.c.h.b16 %v4558
        %v4919 = vunpack.c.l.b16 %v4559
        %v4920 = vunpack.c.h.b16 %v4559
        %v4921 = vunpack.c.l.b16 %v4560
        %v4922 = vunpack.c.h.b16 %v4560
        %v4923 = vunpack.c.l.b16 %v4561
        %v4924 = vunpack.c.h.b16 %v4561
        %v4925 = vunpack.c.l.b16 %v4562
        %v4926 = vunpack.c.h.b16 %v4562
        %v4927 = vunpack.c.l.b16 %v4563
        %v4928 = vunpack.c.h.b16 %v4563
        %v4929 = vunpack.c.l.b16 %v4564
        %v4930 = vunpack.c.h.b16 %v4564
        %v4931 = vunpack.c.l.b16 %v4565
        %v4932 = vunpack.c.h.b16 %v4565
        %v4933 = vunpack.c.l.b16 %v4566
        %v4934 = vunpack.c.h.b16 %v4566
        %v4935 = vunpack.c.l.b16 %v4567
        %v4936 = vunpack.c.h.b16 %v4567
        %v4937 = vunpack.c.l.b16 %v4568
        %v4938 = vunpack.c.h.b16 %v4568
        %v4939 = vunpack.c.l.b16 %v4569
        %v4940 = vunpack.c.h.b16 %v4569
        %v4941 = vunpack.c.l.b16 %v4570
        %v4942 = vunpack.c.h.b16 %v4570
        %v4943 = vunpack.c.l.b16 %v4571
        %v4944 = vunpack.c.h.b16 %v4571
        %v4945 = vunpack.c.l.b16 %v4572
        %v4946 = vunpack.c.h.b16 %v4572
        %v4947 = vunpack.c.l.b16 %v4573
        %v4948 = vunpack.c.h.b16 %v4573
        %v4949 = vunpack.c.l.b16 %v4574
        %v4950 = vunpack.c.h.b16 %v4574
        %v4951 = vunpack.c.l.b16 %v4575
        %v4952 = vunpack.c.h.b16 %v4575
        %v4953 = vunpack.c.l.b16 %v4576
        %v4954 = vunpack.c.h.b16 %v4576
        %v4955 = vunpack.c.l.b16 %v4577
        %v4956 = vunpack.c.h.b16 %v4577
        %v4957 = vunpack.c.l.b16 %v4578
        %v4958 = vunpack.c.h.b16 %v4578
        %v4959 = vunpack.c.l.b16 %v4579
        %v4960 = vunpack.c.h.b16 %v4579
        %v4961 = vunpack.c.l.b16 %v4580
        %v4962 = vunpack.c.h.b16 %v4580
        %v4963 = vunpack.c.l.b16 %v4581
        %v4964 = vunpack.c.h.b16 %v4581
        %v4965 = vunpack.c.l.b16 %v4582
        %v4966 = vunpack.c.h.b16 %v4582
        %v4967 = vunpack.c.l.b16 %v4583
        %v4968 = vunpack.c.h.b16 %v4583
        %v4969 = vunpack.c.l.b16 %v4584
        %v4970 = vunpack.c.h.b16 %v4584
        %v4971 = vunpack.c.l.b16 %v4585
        %v4972 = vunpack.c.h.b16 %v4585
        %v4973 = vunpack.c.l.b16 %v4586
        %v4974 = vunpack.c.h.b16 %v4586
        %v4975 = vunpack.c.l.b16 %v4587
        %v4976 = vunpack.c.h.b16 %v4587
        %v4977 = vunpack.c.l.b16 %v4588
        %v4978 = vunpack.c.h.b16 %v4588
        %v4979 = vunpack.c.l.b16 %v4589
        %v4980 = vunpack.c.h.b16 %v4589
        %v4981 = vunpack.c.l.b16 %v4590
        %v4982 = vunpack.c.h.b16 %v4590
        %v4983 = vunpack.c.l.b16 %v4591
        %v4984 = vunpack.c.h.b16 %v4591
        %v4985 = vunpack.c.l.b16 %v4592
        %v4986 = vunpack.c.h.b16 %v4592
        %v4987 = vunpack.c.l.b16 %v4593
        %v4988 = vunpack.c.h.b16 %v4593
        %v4989 = vpack.c.b16 %v4735, %v4733
        %v4990 = vpack.c.b16 %v4736, %v4734
        %v4991 = vpack.c.b16 %v4739, %v4737
        %v4992 = vpack.c.b16 %v4740, %v4738
        %v4993 = vpack.c.b16 %v4743, %v4741
        %v4994 = vpack.c.b16 %v4744, %v4742
        %v4995 = vpack.c.b16 %v4747, %v4745
        %v4996 = vpack.c.b16 %v4748, %v4746
        %v4997 = vpack.c.b16 %v4751, %v4749
        %v4998 = vpack.c.b16 %v4752, %v4750
        %v4999 = vpack.c.b16 %v4755, %v4753
        %v5000 = vpack.c.b16 %v4756, %v4754
        %v5001 = vpack.c.b16 %v4759, %v4757
        %v5002 = vpack.c.b16 %v4760, %v4758
        %v5003 = vpack.c.b16 %v4763, %v4761
        %v5004 = vpack.c.b16 %v4764, %v4762
        %v5005 = vpack.c.b16 %v4767, %v4765
        %v5006 = vpack.c.b16 %v4768, %v4766
        %v5007 = vpack.c.b16 %v4771, %v4769
        %v5008 = vpack.c.b16 %v4772, %v4770
        %v5009 = vpack.c.b16 %v4775, %v4773
        %v5010 = vpack.c.b16 %v4776, %v4774
        %v5011 = vpack.c.b16 %v4779, %v4777
        %v5012 = vpack.c.b16 %v4780, %v4778
        %v5013 = vpack.c.b16 %v4783, %v4781
        %v5014 = vpack.c.b16 %v4784, %v4782
        %v5015 = vpack.c.b16 %v4787, %v4785
        %v5016 = vpack.c.b16 %v4788, %v4786
        %v5017 = vpack.c.b16 %v4791, %v4789
        %v5018 = vpack.c.b16 %v4792, %v4790
        %v5019 = vpack.c.b16 %v4795, %v4793
        %v5020 = vpack.c.b16 %v4796, %v4794
        %v5021 = vpack.c.b16 %v4799, %v4797
        %v5022 = vpack.c.b16 %v4800, %v4798
        %v5023 = vpack.c.b16 %v4803, %v4801
        %v5024 = vpack.c.b16 %v4804, %v4802
        %v5025 = vpack.c.b16 %v4807, %v4805
        %v5026 = vpack.c.b16 %v4808, %v4806
        %v5027 = vpack.c.b16 %v4811, %v4809
        %v5028 = vpack.c.b16 %v4812, %v4810
        %v5029 = vpack.c.b16 %v4815, %v4813
        %v5030 = vpack.c.b16 %v4816, %v4814
        %v5031 = vpack.c.b16 %v4819, %v4817
        %v5032 = vpack.c.b16 %v4820, %v4818
        %v5033 = vpack.c.b16 %v4823, %v4821
        %v5034 = vpack.c.b16 %v4824, %v4822
        %v5035 = vpack.c.b16 %v4827, %v4825
        %v5036 = vpack.c.b16 %v4828, %v4826
        %v5037 = vpack.c.b16 %v4831, %v4829
        %v5038 = vpack.c.b16 %v4832, %v4830
        %v5039 = vpack.c.b16 %v4835, %v4833
        %v5040 = vpack.c.b16 %v4836, %v4834
        %v5041 = vpack.c.b16 %v4839, %v4837
        %v5042 = vpack.c.b16 %v4840, %v4838
        %v5043 = vpack.c.b16 %v4843, %v4841
        %v5044 = vpack.c.b16 %v4844, %v4842
        %v5045 = vpack.c.b16 %v4847, %v4845
        %v5046 = vpack.c.b16 %v4848, %v4846
        %v5047 = vpack.c.b16 %v4851, %v4849
        %v5048 = vpack.c.b16 %v4852, %v4850
        %v5049 = vpack.c.b16 %v4855, %v4853
        %v5050 = vpack.c.b16 %v4856, %v4854
        %v5051 = vpack.c.b16 %v4859, %v4857
        %v5052 = vpack.c.b16 %v4860, %v4858
        %v5053 = vpack.c.b16 %v4863, %v4861
        %v5054 = vpack.c.b16 %v4864, %v4862
        %v5055 = vpack.c.b16 %v4867, %v4865
        %v5056 = vpack.c.b16 %v4868, %v4866
        %v5057 = vpack.c.b16 %v4871, %v4869
        %v5058 = vpack.c.b16 %v4872, %v4870
        %v5059 = vpack.c.b16 %v4875, %v4873
        %v5060 = vpack.c.b16 %v4876, %v4874
        %v5061 = vpack.c.b16 %v4879, %v4877
        %v5062 = vpack.c.b16 %v4880, %v4878
        %v5063 = vpack.c.b16 %v4883, %v4881
        %v5064 = vpack.c.b16 %v4884, %v4882
        %v5065 = vpack.c.b16 %v4887, %v4885
        %v5066 = vpack.c.b16 %v4888, %v4886
        %v5067 = vpack.c.b16 %v4891, %v4889
        %v5068 = vpack.c.b16 %v4892, %v4890
        %v5069 = vpack.c.b16 %v4895, %v4893
        %v5070 = vpack.c.b16 %v4896, %v4894
        %v5071 = vpack.c.b16 %v4899, %v4897
        %v5072 = vpack.c.b16 %v4900, %v4898
        %v5073 = vpack.c.b16 %v4903, %v4901
        %v5074 = vpack.c.b16 %v4904, %v4902
        %v5075 = vpack.c.b16 %v4907, %v4905
        %v5076 = vpack.c.b16 %v4908, %v4906
        %v5077 = vpack.c.b16 %v4911, %v4909
        %v5078 = vpack.c.b16 %v4912, %v4910
        %v5079 = vpack.c.b16 %v4915, %v4913
        %v5080 = vpack.c.b16 %v4916, %v4914
        %v5081 = vpack.c.b16 %v4919, %v4917
        %v5082 = vpack.c.b16 %v4920, %v4918
        %v5083 = vpack.c.b16 %v4923, %v4921
        %v5084 = vpack.c.b16 %v4924, %v4922
        %v5085 = vpack.c.b16 %v4927, %v4925
        %v5086 = vpack.c.b16 %v4928, %v4926
        %v5087 = vpack.c.b16 %v4931, %v4929
        %v5088 = vpack.c.b16 %v4932, %v4930
        %v5089 = vpack.c.b16 %v4935, %v4933
        %v5090 = vpack.c.b16 %v4936, %v4934
        %v5091 = vpack.c.b16 %v4939, %v4937
        %v5092 = vpack.c.b16 %v4940, %v4938
        %v5093 = vpack.c.b16 %v4943, %v4941
        %v5094 = vpack.c.b16 %v4944, %v4942
        %v5095 = vpack.c.b16 %v4947, %v4945
        %v5096 = vpack.c.b16 %v4948, %v4946
        %v5097 = vpack.c.b16 %v4951, %v4949
        %v5098 = vpack.c.b16 %v4952, %v4950
        %v5099 = vpack.c.b16 %v4955, %v4953
        %v5100 = vpack.c.b16 %v4956, %v4954
        %v5101 = vpack.c.b16 %v4959, %v4957
        %v5102 = vpack.c.b16 %v4960, %v4958
        %v5103 = vpack.c.b16 %v4963, %v4961
        %v5104 = vpack.c.b16 %v4964, %v4962
        %v5105 = vpack.c.b16 %v4967, %v4965
        %v5106 = vpack.c.b16 %v4968, %v4966
        %v5107 = vpack.c.b16 %v4971, %v4969
        %v5108 = vpack.c.b16 %v4972, %v4970
        %v5109 = vpack.c.b16 %v4975, %v4973
        %v5110 = vpack.c.b16 %v4976, %v4974
        %v5111 = vpack.c.b16 %v4979, %v4977
        %v5112 = vpack.c.b16 %v4980, %v4978
        %v5113 = vpack.c.b16 %v4983, %v4981
        %v5114 = vpack.c.b16 %v4984, %v4982
        %v5115 = vpack.c.b16 %v4987, %v4985
        %v5116 = vpack.c.b16 %v4988, %v4986
        %5245 = vmatprep.subr.bf16.mxu0 %v5004
        %5246 = vmatpush1.bf16.msra.mxu0 %v5003
        %5247 = vmatprep.subr.bf16.mxu0 %v5002
        %5248 = vmatpush1.bf16.msra.mxu0 %v5001
        %5249 = vmatprep.subr.bf16.mxu0 %v5000
        %5250 = vmatpush1.bf16.msra.mxu0 %v4999
        %5251 = vmatprep.subr.bf16.mxu0 %v4998
        %5252 = vmatpush1.bf16.msra.mxu0 %v4997
        %5253 = vmatprep.subr.bf16.mxu0 %v4996
        %5254 = vmatpush1.bf16.msra.mxu0 %v4995
        %5255 = vmatprep.subr.bf16.mxu0 %v4994
        %5256 = vmatpush1.bf16.msra.mxu0 %v4993
        %5257 = vmatprep.subr.bf16.mxu0 %v4992
        %5258 = vmatpush1.bf16.msra.mxu0 %v4991
        %5259 = vmatprep.subr.bf16.mxu0 %v4990
        %5260 = vmatpush1.bf16.msra.mxu0 %v4989
        %5261 = vmatprep.subr.bf16.mxu0 %v5020
        %5262 = vmatpush2.bf16.msra.mxu0 %v5019
        %5263 = vmatprep.subr.bf16.mxu0 %v5018
        %5264 = vmatpush2.bf16.msra.mxu0 %v5017
        %5265 = vmatprep.subr.bf16.mxu0 %v5016
        %5266 = vmatpush2.bf16.msra.mxu0 %v5015
        %5267 = vmatprep.subr.bf16.mxu0 %v5014
        %5268 = vmatpush2.bf16.msra.mxu0 %v5013
        %5269 = vmatprep.subr.bf16.mxu0 %v5012
        %5270 = vmatpush2.bf16.msra.mxu0 %v5011
        %5271 = vmatprep.subr.bf16.mxu0 %v5010
        %5272 = vmatpush2.bf16.msra.mxu0 %v5009
        %5273 = vmatprep.subr.bf16.mxu0 %v5008
        %5274 = vmatpush2.bf16.msra.mxu0 %v5007
        %5275 = vmatprep.subr.bf16.mxu0 %v5006
        %5276 = vmatpush2.bf16.msra.mxu0 %v5005
        %5277 = vmatprep.mubr.bf16.mxu0 %v4459
        %5278 = vmatmul.mubr.bf16.gmra.mxu0 %v4458
        %v5279 = vpop.f32.mrf.mxu0
        %v5280 = vadd.f32 %v4598, %v5279
        %v5281 = vpop.f32.mrf.mxu0
        %v5282 = vadd.f32 %v4602, %v5281
        %v5283 = vpop.f32.mrf.mxu0
        %v5284 = vpop.f32.mrf.mxu0
        %5285 = vdwg.mxu0
        %5286 = vmatprep.subr.bf16.mxu0 %v5036
        %5287 = vmatpush1.bf16.msra.mxu0 %v5035
        %5288 = vmatprep.subr.bf16.mxu0 %v5034
        %5289 = vmatpush1.bf16.msra.mxu0 %v5033
        %5290 = vmatprep.subr.bf16.mxu0 %v5032
        %5291 = vmatpush1.bf16.msra.mxu0 %v5031
        %5292 = vmatprep.subr.bf16.mxu0 %v5030
        %5293 = vmatpush1.bf16.msra.mxu0 %v5029
        %5294 = vmatprep.subr.bf16.mxu0 %v5028
        %5295 = vmatpush1.bf16.msra.mxu0 %v5027
        %5296 = vmatprep.subr.bf16.mxu0 %v5026
        %5297 = vmatpush1.bf16.msra.mxu0 %v5025
        %5298 = vmatprep.subr.bf16.mxu0 %v5024
        %5299 = vmatpush1.bf16.msra.mxu0 %v5023
        %5300 = vmatprep.subr.bf16.mxu0 %v5022
        %5301 = vmatpush1.bf16.msra.mxu0 %v5021
        %5302 = vmatprep.subr.bf16.mxu0 %v5052
        %5303 = vmatpush2.bf16.msra.mxu0 %v5051
        %5304 = vmatprep.subr.bf16.mxu0 %v5050
        %5305 = vmatpush2.bf16.msra.mxu0 %v5049
        %5306 = vmatprep.subr.bf16.mxu0 %v5048
        %5307 = vmatpush2.bf16.msra.mxu0 %v5047
        %5308 = vmatprep.subr.bf16.mxu0 %v5046
        %5309 = vmatpush2.bf16.msra.mxu0 %v5045
        %5310 = vmatprep.subr.bf16.mxu0 %v5044
        %5311 = vmatpush2.bf16.msra.mxu0 %v5043
        %5312 = vmatprep.subr.bf16.mxu0 %v5042
        %5313 = vmatpush2.bf16.msra.mxu0 %v5041
        %5314 = vmatprep.subr.bf16.mxu0 %v5040
        %5315 = vmatpush2.bf16.msra.mxu0 %v5039
        %5316 = vmatprep.subr.bf16.mxu0 %v5038
        %5317 = vmatpush2.bf16.msra.mxu0 %v5037
        %5318 = vmatprep.mubr.bf16.mxu0 %v4461
        %5319 = vmatmul.mubr.bf16.gmra.mxu0 %v4460
        %v5320 = vpop.f32.mrf.mxu0
        %v5321 = vadd.f32 %v5280, %v5320
        %v5322 = vpop.f32.mrf.mxu0
        %v5323 = vadd.f32 %v5282, %v5322
        %v5324 = vpop.f32.mrf.mxu0
        %v5325 = vpop.f32.mrf.mxu0
        %5326 = vdwg.mxu0
        %5327 = vmatprep.subr.bf16.mxu0 %v5068
        %5328 = vmatpush1.bf16.msra.mxu0 %v5067
        %5329 = vmatprep.subr.bf16.mxu0 %v5066
        %5330 = vmatpush1.bf16.msra.mxu0 %v5065
        %5331 = vmatprep.subr.bf16.mxu0 %v5064
        %5332 = vmatpush1.bf16.msra.mxu0 %v5063
        %5333 = vmatprep.subr.bf16.mxu0 %v5062
        %5334 = vmatpush1.bf16.msra.mxu0 %v5061
        %5335 = vmatprep.subr.bf16.mxu0 %v5060
        %5336 = vmatpush1.bf16.msra.mxu0 %v5059
        %5337 = vmatprep.subr.bf16.mxu0 %v5058
        %5338 = vmatpush1.bf16.msra.mxu0 %v5057
        %5339 = vmatprep.subr.bf16.mxu0 %v5056
        %5340 = vmatpush1.bf16.msra.mxu0 %v5055
        %5341 = vmatprep.subr.bf16.mxu0 %v5054
        %5342 = vmatpush1.bf16.msra.mxu0 %v5053
        %5343 = vmatprep.subr.bf16.mxu0 %v5084
        %5344 = vmatpush2.bf16.msra.mxu0 %v5083
        %5345 = vmatprep.subr.bf16.mxu0 %v5082
        %5346 = vmatpush2.bf16.msra.mxu0 %v5081
        %5347 = vmatprep.subr.bf16.mxu0 %v5080
        %5348 = vmatpush2.bf16.msra.mxu0 %v5079
        %5349 = vmatprep.subr.bf16.mxu0 %v5078
        %5350 = vmatpush2.bf16.msra.mxu0 %v5077
        %5351 = vmatprep.subr.bf16.mxu0 %v5076
        %5352 = vmatpush2.bf16.msra.mxu0 %v5075
        %5353 = vmatprep.subr.bf16.mxu0 %v5074
        %5354 = vmatpush2.bf16.msra.mxu0 %v5073
        %5355 = vmatprep.subr.bf16.mxu0 %v5072
        %5356 = vmatpush2.bf16.msra.mxu0 %v5071
        %5357 = vmatprep.subr.bf16.mxu0 %v5070
        %5358 = vmatpush2.bf16.msra.mxu0 %v5069
        %5359 = vmatprep.mubr.bf16.mxu0 %v4463
        %5360 = vmatmul.mubr.bf16.gmra.mxu0 %v4462
        %v5361 = vpop.f32.mrf.mxu0
        %v5362 = vadd.f32 %v5321, %v5361
        %v5363 = vpop.f32.mrf.mxu0
        %v5364 = vadd.f32 %v5323, %v5363
        %v5365 = vpop.f32.mrf.mxu0
        %v5366 = vpop.f32.mrf.mxu0
        %5367 = vdwg.mxu0
        %5368 = vmatprep.subr.bf16.mxu0 %v5100
        %5369 = vmatpush1.bf16.msra.mxu0 %v5099
        %5370 = vmatprep.subr.bf16.mxu0 %v5098
        %5371 = vmatpush1.bf16.msra.mxu0 %v5097
        %5372 = vmatprep.subr.bf16.mxu0 %v5096
        %5373 = vmatpush1.bf16.msra.mxu0 %v5095
        %5374 = vmatprep.subr.bf16.mxu0 %v5094
        %5375 = vmatpush1.bf16.msra.mxu0 %v5093
        %5376 = vmatprep.subr.bf16.mxu0 %v5092
        %5377 = vmatpush1.bf16.msra.mxu0 %v5091
        %5378 = vmatprep.subr.bf16.mxu0 %v5090
        %5379 = vmatpush1.bf16.msra.mxu0 %v5089
        %5380 = vmatprep.subr.bf16.mxu0 %v5088
        %5381 = vmatpush1.bf16.msra.mxu0 %v5087
        %5382 = vmatprep.subr.bf16.mxu0 %v5086
        %5383 = vmatpush1.bf16.msra.mxu0 %v5085
        %5384 = vmatprep.subr.bf16.mxu0 %v5116
        %5385 = vmatpush2.bf16.msra.mxu0 %v5115
        %5386 = vmatprep.subr.bf16.mxu0 %v5114
        %5387 = vmatpush2.bf16.msra.mxu0 %v5113
        %5388 = vmatprep.subr.bf16.mxu0 %v5112
        %5389 = vmatpush2.bf16.msra.mxu0 %v5111
        %5390 = vmatprep.subr.bf16.mxu0 %v5110
        %5391 = vmatpush2.bf16.msra.mxu0 %v5109
        %5392 = vmatprep.subr.bf16.mxu0 %v5108
        %5393 = vmatpush2.bf16.msra.mxu0 %v5107
        %5394 = vmatprep.subr.bf16.mxu0 %v5106
        %5395 = vmatpush2.bf16.msra.mxu0 %v5105
        %5396 = vmatprep.subr.bf16.mxu0 %v5104
        %5397 = vmatpush2.bf16.msra.mxu0 %v5103
        %5398 = vmatprep.subr.bf16.mxu0 %v5102
        %5399 = vmatpush2.bf16.msra.mxu0 %v5101
        %5400 = vmatprep.mubr.bf16.mxu0 %v4465
        %5401 = vmatmul.mubr.bf16.gmra.mxu0 %v4464
        %v5402 = vpop.f32.mrf.mxu0
        %v5403 = vadd.f32 %v5362, %v5402
        %v5404 = vpop.f32.mrf.mxu0
        %v5405 = vadd.f32 %v5364, %v5404
        %v5406 = vpop.f32.mrf.mxu0
        %v5407 = vpop.f32.mrf.mxu0
        %5408 = vdwg.mxu0
        // Predicated region
        $region45: #{byol_forward.1} parent=39 // pred_check
          %p5409 = pneg %p275
        $region46: #{byol_forward.1} parent=39 // pred_check_branch
          %5411 = sbr.rel (%p5409) target = $region48
        $region47: #{byol_forward.1} parent=39 // pred_region
          %5412 = vst [vmem:[#allocation5] sm:$0xff] %v5403
          %5413 = vst [vmem:[#allocation5 + $0x8] sm:$0xff] %v5405
          %5414 = vst [vmem:[#allocation2] sm:$0xff] %v5403
          %5415 = vst [vmem:[#allocation2 + $0x8] sm:$0xff] %v5405
        $region48: #{byol_forward.1} parent=39 // pred_fallthru
          _
        %p5416 = scmp.eq.s32.totalorder %s20, 1
        // Predicated region
        $region49: #{byol_forward.1} parent=39 // pred_check
          %p5417 = pneg %p5416
        $region50: #{byol_forward.1} parent=39 // pred_check_branch
          %5419 = sbr.rel (%p5417) target = $region52
        $region51: #{byol_forward.1} parent=39 // pred_region
          %5420 = vst [vmem:[#allocation3] sm:$0xff] %v5403
          %5421 = vst [vmem:[#allocation3 + $0x8] sm:$0xff] %v5405
        $region52: #{byol_forward.1} parent=39 // pred_fallthru
          _
        // Predicated region
        $region53: #{byol_forward.1} parent=39 // pred_check
          %p5422 = pneg %p153
        $region54: #{byol_forward.1} parent=39 // pred_check_branch
          %5424 = sbr.rel (%p5422) target = $region56
        $region55: #{byol_forward.1} parent=39 // pred_region
          %s5426 = ssub.s32 256, 256
          %5427 = vsyncadd [#allocation4], %s5426
          %s5429 = sshll.u32 [#allocation3], 4
          %s5430 = int_to_ptr.vmem [resolvable:$true] %s5429
          %5432 = dma.vmem_to_hbm [thread:$0]  %s5430, 256, %s5, [#allocation4]
        $region56: #{byol_forward.1} parent=39 // pred_fallthru
          _
        // Predicated region
        $region57: #{byol_forward.1} parent=39 // pred_check
          %p5433 = pneg %p174
        $region58: #{byol_forward.1} parent=39 // pred_check_branch
          %5435 = sbr.rel (%p5433) target = $region60
        $region59: #{byol_forward.1} parent=39 // pred_region
          %s5437 = ssub.s32 256, 256
          %5438 = vsyncadd [#allocation6], %s5437
          %s5440 = sshll.u32 [#allocation5], 4
          %s5441 = int_to_ptr.vmem [resolvable:$true] %s5440
          %5443 = dma.vmem_to_hbm [thread:$0]  %s5441, 256, %s6, [#allocation6]
        $region60: #{byol_forward.1} parent=39 // pred_fallthru
          _
        // Predicated region
        $region61: #{byol_forward.1} parent=39 // pred_check
          %p5444 = pneg %p153
        $region62: #{byol_forward.1} parent=39 // pred_check_branch
          %5446 = sbr.rel (%p5444) target = $region64
        $region63: #{byol_forward.1} parent=39 // pred_region
          %5447 = dma.done [#allocation4], 256
        $region64: #{byol_forward.1} parent=39 // pred_fallthru
          _
        // Predicated region
        $region65: #{byol_forward.1} parent=39 // pred_check
          %p5448 = pneg %p174
        $region66: #{byol_forward.1} parent=39 // pred_check_branch
          %5450 = sbr.rel (%p5448) target = $region68
        $region67: #{byol_forward.1} parent=39 // pred_region
          %5451 = dma.done [#allocation6], 256
        $region68: #{byol_forward.1} parent=39 // pred_fallthru
          _
      $region40: #{byol_forward.1} parent=5 // pred_fallthru
        _
      %p5452 = scmp.le.s32.totalorder 2, %s15
      // Predicated region
      $region69: #{byol_forward.1} parent=5 // pred_check
        %p5453 = pneg %p5452
      $region70: #{byol_forward.1} parent=5 // pred_check_branch
        %5455 = sbr.rel (%p5453) target = $region72
      $region71: #{byol_forward.1} parent=5 // pred_region
        %s5456 = ssub.s32 %s15, 2
      $region72: #{byol_forward.1} parent=5 // pred_fallthru
        _
    $region6: #{byol_forward.1} parent=1 // loop_footer
      %s19 = sadd.s32 1, %s15
    $region7: #{byol_forward.1} parent=1 // loop_footer_branch
      %14 = sbr.rel target = $region3
    $region8: #{byol_forward.1} parent=1 // loop_exit
      _
    %5457 = vsyncpa [#allocation4], 1
    %s5458 = scalar_lea.sflag [#allocation4], 1
    %5459 = vsyncpa %s5458, 1
    %5460 = vsyncpa [#allocation6], 1

</llo_original>
